<compile_context>
chip_gen: v7x
topology: tpu7x:2x2x1
jax: 0.10.0
libtpu: 0.0.40
codegen_flags: <defaults>
</compile_context>

<pallas_src>
import functools
import math

import numpy as np
import jax
import jax.numpy as jnp
from jax.experimental import pallas as pl
from jax.experimental.pallas import tpu as pltpu


NEG_INF = -1e30   # finite "masked" additive bias (avoids (-inf) - (-inf) = NaN)


def _round_up(x, m):
    return (x + m - 1) // m * m


@functools.lru_cache(maxsize=None)
def _vmem_limit_bytes():
    cap = 128 * 1024 * 1024
    try:
        cap = int(pltpu.get_tpu_info().vmem_capacity_bytes)
    except Exception:
        pass
    # leave headroom for double-buffered pipeline copies:
    # ~96 MiB on v5e/v6e (128 MiB physical), ~48 MiB on v7x (64 MiB physical)
    return max(32 * 1024 * 1024, min(cap * 3 // 4, 100 * 1024 * 1024))


def _pick_batch_tile(B):
    # Prefer >= 2 grid steps (v7x has 2 TensorCores) while still packing several
    # batch elements per step so the projection matmuls see Bt*Sq rows.
    for bt in range(B // 2, 0, -1):
        if B % bt == 0:
            return bt
    return 1


# ---------------------------------------------------------------------------
# Fused attention sublayer kernel (one grid step == Bt batch elements)
#   attention(x_q, x_kv, x_kv) -> +residual -> LayerNorm
# ---------------------------------------------------------------------------

def _attn_sublayer_kernel(*refs, bt, sq, sk, heads, dh, P, inv_scale, eps, pos_mode):
    if pos_mode == "char":
        (xq_ref, xkv_ref, wq_ref, bq_ref, wkv_ref, bkv_ref, epack_ref, relidx_ref,
         bias_ref, wo_ref, bo_ref, g_ref, be_ref, o_ref, ctx_ref) = refs
    else:
        (xq_ref, xkv_ref, wq_ref, bq_ref, wkv_ref, bkv_ref, posw_ref,
         bias_ref, wo_ref, bo_ref, g_ref, be_ref, o_ref, ctx_ref) = refs

    D = heads * dh
    f32 = jnp.float32

    xq = xq_ref[...]                                         # (bt, sq, D) f32 residual
    xq2 = xq.reshape(bt * sq, D).astype(jnp.bfloat16)
    xkv2 = xkv_ref[...].reshape(bt * sk, D).astype(jnp.bfloat16)

    # Full-width projections: one Q matmul, one fused [K|V] matmul (K = D).
    q2 = jnp.dot(xq2, wq_ref[...], preferred_element_type=f32) + bq_ref[...]      # (bt*sq, D)
    kv = jnp.dot(xkv2, wkv_ref[...], preferred_element_type=f32) + bkv_ref[...]   # (bt*sk, 2D)

    q3 = q2.reshape(bt, sq, D)
    k3 = kv[:, :D].reshape(bt, sk, D).astype(jnp.bfloat16)
    v3 = kv[:, D:].reshape(bt, sk, D).astype(jnp.bfloat16)

    bias = bias_ref[...]                                     # (1,sq,sk) or (bt,1,sk) additive

    if pos_mode == "char":
        # All heads' q @ E^T scores in ONE full-width matmul against a block-diagonal
        # (D, H*P) embedding pack.
        s_all = jnp.dot(q2.astype(jnp.bfloat16), epack_ref[...],
                        preferred_element_type=f32).reshape(bt, sq, heads * P)
        # Head-invariant 0/1 diagonal masks, hoisted out of the head loop.
        # TODO(synk): for production Sq/Sk replace this P-term select-accumulate with
        # the relative-shift (pad/roll) trick on the (Sq, P) slab.
        relidx = relidx_ref[...]                             # (sq, sk), values 0..P-1
        rel_masks = [(relidx == float(p)).astype(f32)[None] for p in range(P)]
    else:
        posw = posw_ref[...].astype(jnp.bfloat16)            # (bt, sk, dh)

    dn_qk = (((2,), (2,)), ((0,), (0,)))                     # 'bqd,bkd->bqk'
    dn_pv = (((2,), (1,)), ((0,), (0,)))                     # 'bqk,bkd->bqd'

    for h in range(heads):                                   # static loop: per-head softmax only
        sl = slice(h * dh, (h + 1) * dh)
        qh = q3[:, :, sl].astype(jnp.bfloat16)               # (bt, sq, dh)
        kh = k3[:, :, sl]
        vh = v3[:, :, sl]

        logits = jax.lax.dot_general(qh, kh, dn_qk,
                                     preferred_element_type=f32)          # (bt, sq, sk)

        if pos_mode == "char":
            s_h = s_all[:, :, h * P:(h + 1) * P]             # (bt, sq, P)
            pos = rel_masks[0] * s_h[:, :, 0:1]
            for p in range(1, P):
                pos = pos + rel_masks[p] * s_h[:, :, p:p + 1]
        else:
            pos = jax.lax.dot_general(qh, posw, dn_qk,
                                      preferred_element_type=f32)         # (bt, sq, sk)

        # (qk + pos)/scale, then additive mask bias; softmax stats in f32.
        logits = (logits + pos) * inv_scale + bias
        logits = logits - jnp.max(logits, axis=-1, keepdims=True)
        pexp = jnp.exp(logits)
        probs = pexp * pl.reciprocal(jnp.sum(pexp, axis=-1, keepdims=True), approx=False)

        # Per-head context written at its lane offset -> heads-concat in VMEM scratch.
        ctx_ref[:, :, sl] = jax.lax.dot_general(probs.astype(jnp.bfloat16), vh, dn_pv,
                                                preferred_element_type=f32)

    # Single concat-heads output projection: (bt*sq, D) @ (D, D).
    att = jnp.dot(ctx_ref[...].reshape(bt * sq, D).astype(jnp.bfloat16), wo_ref[...],
                  preferred_element_type=f32) + bo_ref[...]

    # residual add + LayerNorm (f32)
    s = att.reshape(bt, sq, D) + xq
    mu = jnp.mean(s, axis=-1, keepdims=True)
    var = jnp.mean(jnp.square(s - mu), axis=-1, keepdims=True)
    o_ref[...] = ((s - mu) * jax.lax.rsqrt(var + eps) * g_ref[...] + be_ref[...]
                  ).astype(o_ref.dtype)


def attention_sublayer(x_q, x_kv, prm, mask_bias, *, heads, scale, pos_mode,
                       relidx=None, posw=None, eps=1e-5):
    """LayerNorm(attention(x_q, x_kv, x_kv) + x_q) as one fused pallas_call."""
    B, Sq, D = x_q.shape
    Sk = x_kv.shape[1]
    dh = D // heads
    P = prm["pos"].shape[0]
    bt = _pick_batch_tile(B)

    kernel = functools.partial(_attn_sublayer_kernel, bt=bt, sq=Sq, sk=Sk,
                               heads=heads, dh=dh, P=P,
                               inv_scale=1.0 / scale, eps=eps, pos_mode=pos_mode)

    specs = [pl.BlockSpec((bt, Sq, D), lambda b: (b, 0, 0)),      # x_q
             pl.BlockSpec((bt, Sk, D), lambda b: (b, 0, 0)),      # x_kv
             pl.BlockSpec((D, D), lambda b: (0, 0)),              # Wq (head-major cols)
             pl.BlockSpec((1, D), lambda b: (0, 0)),              # bq
             pl.BlockSpec((D, 2 * D), lambda b: (0, 0)),          # W[k|v]
             pl.BlockSpec((1, 2 * D), lambda b: (0, 0))]          # b[k|v]
    args = [x_q, x_kv, prm["wq"], prm["bq"], prm["wkv"], prm["bkv"]]

    if pos_mode == "char":
        specs += [pl.BlockSpec((D, heads * P), lambda b: (0, 0)),  # block-diag E pack
                  pl.BlockSpec((Sq, Sk), lambda b: (0, 0))]        # relative-index map
        args += [prm["epack"], relidx]
    else:
        specs += [pl.BlockSpec((bt, Sk, dh), lambda b: (b, 0, 0))]  # per-word arranged pos
        args += [posw]

    # additive mask bias: (1, Sq, Sk) shared or (B, 1, Sk) key-padding per batch
    if mask_bias.shape[0] == 1:
        specs += [pl.BlockSpec((1, Sq, Sk), lambda b: (0, 0, 0))]
    else:
        specs += [pl.BlockSpec((bt, 1, Sk), lambda b: (b, 0, 0))]
    args += [mask_bias]

    specs += [pl.BlockSpec((D, D), lambda b: (0, 0)),             # Wo (concat-heads rows)
              pl.BlockSpec((1, D), lambda b: (0, 0)),             # bo
              pl.BlockSpec((1, D), lambda b: (0, 0)),             # LN gamma
              pl.BlockSpec((1, D), lambda b: (0, 0))]             # LN beta
    args += [prm["wo"], prm["bo"], prm["ln_g"], prm["ln_b"]]

    return pl.pallas_call(
        kernel,
        out_shape=jax.ShapeDtypeStruct((B, Sq, D), x_q.dtype),
        grid=(B // bt,),
        in_specs=specs,
        out_specs=pl.BlockSpec((bt, Sq, D), lambda b: (b, 0, 0)),
        scratch_shapes=[pltpu.VMEM((bt, Sq, D), jnp.float32)],    # heads-concat buffer
        compiler_params=pltpu.CompilerParams(
            dimension_semantics=("parallel",),
            vmem_limit_bytes=_vmem_limit_bytes()),
    )(*args)


# ---------------------------------------------------------------------------
# Fused feed-forward + residual + LayerNorm kernel (row-tiled)
# ---------------------------------------------------------------------------

def _ffn_ln_kernel(x_ref, w1_ref, b1_ref, w2_ref, b2_ref, g_ref, be_ref, o_ref, *, eps):
    x = x_ref[...]                                   # (tile, D) f32
    h = jnp.dot(x.astype(jnp.bfloat16), w1_ref[...],
                preferred_element_type=jnp.float32) + b1_ref[...]
    h = jnp.maximum(h, 0.0)
    y = jnp.dot(h.astype(jnp.bfloat16), w2_ref[...],
                preferred_element_type=jnp.float32) + b2_ref[...]
    s = y + x
    mu = jnp.mean(s, axis=-1, keepdims=True)
    var = jnp.mean(jnp.square(s - mu), axis=-1, keepdims=True)
    o_ref[...] = ((s - mu) * jax.lax.rsqrt(var + eps) * g_ref[...] + be_ref[...]
                  ).astype(o_ref.dtype)


def ffn_add_layernorm(x2d, w1, b1, w2, b2, gamma, beta, *, eps=1e-5, row_tile=512):
    N, D = x2d.shape
    Dh = w1.shape[1]
    tile = min(row_tile, N)
    if N > 8:
        # aim for >= 2 grid steps (v7x megacore) with sublane-aligned row tiles
        tile = min(tile, _round_up(pl.cdiv(N, 2), 8))
    if tile != N:
        tile = max(8, (tile // 8) * 8)
    grid = (pl.cdiv(N, tile),)                       # tail block handled by Pallas padding
    # TODO(synk): for production D (multi-MB w1/w2) add pl.Buffered(1) on the weight
    # specs or a K-tiled accumulator grid so the constant-index weights aren't
    # double-buffered in VMEM (matters on v7x's 64 MiB).
    return pl.pallas_call(
        functools.partial(_ffn_ln_kernel, eps=eps),
        out_shape=jax.ShapeDtypeStruct((N, D), x2d.dtype),
        grid=grid,
        in_specs=[pl.BlockSpec((tile, D), lambda i: (i, 0)),
                  pl.BlockSpec((D, Dh), lambda i: (0, 0)),
                  pl.BlockSpec((1, Dh), lambda i: (0, 0)),
                  pl.BlockSpec((Dh, D), lambda i: (0, 0)),
                  pl.BlockSpec((1, D), lambda i: (0, 0)),
                  pl.BlockSpec((1, D), lambda i: (0, 0)),
                  pl.BlockSpec((1, D), lambda i: (0, 0))],
        out_specs=pl.BlockSpec((tile, D), lambda i: (i, 0)),
        compiler_params=pltpu.CompilerParams(
            dimension_semantics=("parallel",),
            vmem_limit_bytes=_vmem_limit_bytes()),
    )(x2d, w1, b1, w2, b2, gamma, beta)


# ---------------------------------------------------------------------------
# Host-side glue: relative-position index map / word-position gather / mask bias
# ---------------------------------------------------------------------------

def build_rel_index(len_q, len_k, max_len):
    # relidx[q, k] = clip(k - q, -max_len, max_len) + max_len  (values 0 .. 2*max_len)
    k = np.arange(len_k)
    q = np.arange(len_q)
    idx = np.clip(k[None, :] - q[:, None], -max_len, max_len) + max_len
    return jnp.asarray(idx.astype(np.float32))        # (len_q, len_k)


def arrange_word_pos_embedding(len_k, lens_q, max_len, embedding):
    # TODO(synk): data-dependent gather stays host-side JAX glue; an in-kernel version
    # would use PrefetchScalarGridSpec (indices in SMEM) + pl.ds row gather.
    lens_q = np.asarray(lens_q)
    k = np.arange(len_k)
    q = np.repeat(lens_q - np.cumsum(lens_q), lens_q) + np.arange(int(lens_q.sum()))
    idx = np.clip(k[None, :] - q[:, None], -max_len, max_len) + max_len
    return embedding[jnp.asarray(idx), :]              # (sum(lens_q), len_k, dh)


def mask_to_bias(mask_float):
    # boolean/0-1 mask (1 == masked) -> additive f32 bias (0 / NEG_INF)
    return (mask_float * NEG_INF).astype(jnp.float32)


# ---------------------------------------------------------------------------
# DecoderLayer forward (4 fused pallas_calls)
# ---------------------------------------------------------------------------

def decoder_layer_forward(params, char_enc, word_enc, self_input,
                          look_ahead_bias, char_padding_bias, word_padding_bias,
                          sentence_lengths, heads, max_pos_len):
    B, Sq, D = self_input.shape
    Skc = char_enc.shape[1]
    Skw = word_enc.shape[1]
    scale = math.sqrt(D / heads)

    # sublayer 1: relative-position self-attention + residual + layer_norm_1
    rel_qq = build_rel_index(Sq, Sq, max_pos_len)
    x = attention_sublayer(self_input, self_input, params["a1"], look_ahead_bias,
                           heads=heads, scale=scale, pos_mode="char", relidx=rel_qq)

    # sublayer 2: cross-attention to char encoder (char-relative) + residual + layer_norm_2
    rel_qc = build_rel_index(Sq, Skc, max_pos_len)
    x = attention_sublayer(x, char_enc, params["a2"], char_padding_bias,
                           heads=heads, scale=scale, pos_mode="char", relidx=rel_qc)

    # sublayer 3: cross-attention to word encoder (word-relative) + residual + layer_norm_3
    pos_w = arrange_word_pos_embedding(Skw, sentence_lengths, max_pos_len,
                                       params["a3"]["pos"])
    x = attention_sublayer(x, word_enc, params["a3"], word_padding_bias,
                           heads=heads, scale=scale, pos_mode="word", posw=pos_w)

    # nonlinear sublayer + residual + LayerNorm; the PyTorch module reuses layer_norm_3.
    f = params["ffn"]
    out2d = ffn_add_layernorm(x.reshape(B * Sq, D), f["w1"], f["b1"], f["w2"], f["b2"],
                              params["a3"]["ln_g"], params["a3"]["ln_b"])
    return out2d.reshape(B, Sq, D)


# ---------------------------------------------------------------------------
# Parameter init (weights stored pre-packed, bf16 for MXU operands)
# ---------------------------------------------------------------------------

def init_params(key, d, heads, max_pos_len):
    dh = d // heads
    P = 2 * max_pos_len + 1
    keys = iter(jax.random.split(key, 64))

    def lin(din, dout):
        kw, kb = jax.random.split(next(keys))
        return (jax.random.normal(kw, (din, dout), jnp.float32) * 0.05,
                jax.random.normal(kb, (dout,), jnp.float32) * 0.05)

    def pack_epack(E):
        # block-diagonal (d, heads*P): epack[h*dh + j, h*P + p] = E[p, j]
        ep = jnp.zeros((d, heads * P), jnp.float32)
        for h in range(heads):
            ep = ep.at[h * dh:(h + 1) * dh, h * P:(h + 1) * P].set(E.T)
        return ep.astype(jnp.bfloat16)

    def ln():
        return jnp.ones((1, d), jnp.float32), jnp.zeros((1, d), jnp.float32)

    params = {}

    # attention_1: UniformAttentionSublayer — fused Linear(d, 3d); per head the 3*dh
    # output block is [q | k | v]; split into head-major Wq (d,d) and W[k|v] (d,2d).
    w_in, b_in = lin(d, 3 * d)
    w4 = w_in.reshape(d, heads, 3, dh)
    b4 = b_in.reshape(heads, 3, dh)
    wq = w4[:, :, 0, :].reshape(d, d)
    wk = w4[:, :, 1, :].reshape(d, d)
    wv = w4[:, :, 2, :].reshape(d, d)
    wo, bo = lin(d, d)
    E1 = jax.random.normal(next(keys), (P, dh), jnp.float32)
    a1 = {"wq": wq.astype(jnp.bfloat16),
          "bq": b4[:, 0, :].reshape(1, d),
          "wkv": jnp.concatenate([wk, wv], axis=1).astype(jnp.bfloat16),
          "bkv": jnp.concatenate([b4[:, 1, :].reshape(1, d),
                                  b4[:, 2, :].reshape(1, d)], axis=1),
          "wo": wo.astype(jnp.bfloat16), "bo": bo.reshape(1, d),
          "pos": E1, "epack": pack_epack(E1)}
    a1["ln_g"], a1["ln_b"] = ln()
    params["a1"] = a1

    # attention_2 / attention_3: DividedAttentionSublayer (separate q/k/v Linears;
    # a Linear(d,d) already yields head-major columns under _split_heads)
    for name in ("a2", "a3"):
        wq, bq = lin(d, d)
        wk, bk = lin(d, d)
        wv, bv = lin(d, d)
        wo, bo = lin(d, d)
        E = jax.random.normal(next(keys), (P, dh), jnp.float32)
        a = {"wq": wq.astype(jnp.bfloat16), "bq": bq.reshape(1, d),
             "wkv": jnp.concatenate([wk, wv], axis=1).astype(jnp.bfloat16),
             "bkv": jnp.concatenate([bk, bv]).reshape(1, 2 * d),
             "wo": wo.astype(jnp.bfloat16), "bo": bo.reshape(1, d),
             "pos": E, "epack": pack_epack(E)}
        a["ln_g"], a["ln_b"] = ln()
        params[name] = a

    # nonlinear sublayer
    w1, b1 = lin(d, 4 * d)
    w2, b2 = lin(4 * d, d)
    params["ffn"] = {"w1": w1.astype(jnp.bfloat16), "b1": b1.reshape(1, 4 * d),
                     "w2": w2.astype(jnp.bfloat16), "b2": b2.reshape(1, d)}
    return params


# ---------------------------------------------------------------------------
# Main
# ---------------------------------------------------------------------------

if __name__ == "__main__":
    D, H, MAXPOS = 32, 4, 8
    # batch = total number of words across sentences; sum(sentence_lengths) == B
    sentence_lengths = np.array([1, 3], dtype=np.int32)
    B = int(sentence_lengths.sum())   # 4
    Sq, Skc, Skw = 8, 8, 4

    key = jax.random.PRNGKey(0)
    kp, k1, k2, k3 = jax.random.split(key, 4)
    params = init_params(kp, D, H, MAXPOS)

    char_enc = jax.random.normal(k1, (B, Skc, D), jnp.float32)
    word_enc = jax.random.normal(k2, (B, Skw, D), jnp.float32)
    self_inp = jax.random.normal(k3, (B, Sq, D), jnp.float32)

    # masks (1.0 == masked), kept compact and converted to additive -1e30 biases
    look_ahead_mask = jnp.triu(jnp.ones((Sq, Sq), jnp.float32), k=1)[None]                 # (1,Sq,Sq)
    char_lens = np.array([8, 6, 7, 5])
    char_padding_mask = jnp.asarray(
        (np.arange(Skc)[None, :] >= char_lens[:, None]).astype(np.float32))[:, None, :]    # (B,1,Skc)
    words_per_sentence = np.repeat(sentence_lengths, sentence_lengths)
    word_padding_mask = jnp.asarray(
        (np.arange(Skw)[None, :] >= words_per_sentence[:, None]).astype(np.float32))[:, None, :]  # (B,1,Skw)

    out = decoder_layer_forward(params, char_enc, word_enc, self_inp,
                                mask_to_bias(look_ahead_mask),
                                mask_to_bias(char_padding_mask),
                                mask_to_bias(word_padding_mask),
                                sentence_lengths, H, MAXPOS)
    out = jax.block_until_ready(out)
    assert out.shape == (B, Sq, D), out.shape
    assert bool(jnp.all(jnp.isfinite(out)))
    print("KERNEL_OK")
</pallas_src>

<mosaic_0001>
module attributes {stable_mosaic.version = 11 : i64} {
  func.func @_attn_sublayer_kernel(%arg0: i32, %arg1: memref<2x8x32xf32, #tpu.memory_space<vmem>>, %arg2: memref<2x8x32xf32, #tpu.memory_space<vmem>>, %arg3: memref<32x32xbf16, #tpu.memory_space<vmem>>, %arg4: memref<1x32xf32, #tpu.memory_space<vmem>>, %arg5: memref<32x64xbf16, #tpu.memory_space<vmem>>, %arg6: memref<1x64xf32, #tpu.memory_space<vmem>>, %arg7: memref<32x68xbf16, #tpu.memory_space<vmem>>, %arg8: memref<8x8xf32, #tpu.memory_space<vmem>>, %arg9: memref<1x8x8xf32, #tpu.memory_space<vmem>>, %arg10: memref<32x32xbf16, #tpu.memory_space<vmem>>, %arg11: memref<1x32xf32, #tpu.memory_space<vmem>>, %arg12: memref<1x32xf32, #tpu.memory_space<vmem>>, %arg13: memref<1x32xf32, #tpu.memory_space<vmem>>, %arg14: memref<2x8x32xf32, #tpu.memory_space<vmem>>, %arg15: memref<2x8x32xf32, #tpu.memory_space<vmem>>) attributes {dimension_semantics = [#tpu.dimension_semantics<parallel>], iteration_bounds = array<i64: 2>, scalar_prefetch = 0 : i64, scratch_operands = 1 : i64, tpu.core_type = #tpu.core_type<tc>, window_params = [{transform_indices = @transform_0, window_bounds = array<i64: 2, 8, 32>}, {transform_indices = @transform_1, window_bounds = array<i64: 2, 8, 32>}, {pipeline_mode = #tpu.pipeline_mode<synchronous>, transform_indices = @transform_2, window_bounds = array<i64: 32, 32>}, {pipeline_mode = #tpu.pipeline_mode<synchronous>, transform_indices = @transform_3, window_bounds = array<i64: 1, 32>}, {pipeline_mode = #tpu.pipeline_mode<synchronous>, transform_indices = @transform_4, window_bounds = array<i64: 32, 64>}, {pipeline_mode = #tpu.pipeline_mode<synchronous>, transform_indices = @transform_5, window_bounds = array<i64: 1, 64>}, {pipeline_mode = #tpu.pipeline_mode<synchronous>, transform_indices = @transform_6, window_bounds = array<i64: 32, 68>}, {pipeline_mode = #tpu.pipeline_mode<synchronous>, transform_indices = @transform_7, window_bounds = array<i64: 8, 8>}, {pipeline_mode = #tpu.pipeline_mode<synchronous>, transform_indices = @transform_8, window_bounds = array<i64: 1, 8, 8>}, {pipeline_mode = #tpu.pipeline_mode<synchronous>, transform_indices = @transform_9, window_bounds = array<i64: 32, 32>}, {pipeline_mode = #tpu.pipeline_mode<synchronous>, transform_indices = @transform_10, window_bounds = array<i64: 1, 32>}, {pipeline_mode = #tpu.pipeline_mode<synchronous>, transform_indices = @transform_11, window_bounds = array<i64: 1, 32>}, {pipeline_mode = #tpu.pipeline_mode<synchronous>, transform_indices = @transform_12, window_bounds = array<i64: 1, 32>}, {transform_indices = @transform_13, window_bounds = array<i64: 2, 8, 32>}]} {
    %c0 = arith.constant 0 : index
    %c0_0 = arith.constant 0 : index
    %c0_1 = arith.constant 0 : index
    %0 = vector.load %arg1[%c0, %c0_0, %c0_1] : memref<2x8x32xf32, #tpu.memory_space<vmem>>, vector<2x8x32xf32>
    %1 = vector.shape_cast %0 : vector<2x8x32xf32> to vector<16x32xf32>
    %2 = arith.truncf %1 : vector<16x32xf32> to vector<16x32xbf16>
    %c0_2 = arith.constant 0 : index
    %c0_3 = arith.constant 0 : index
    %c0_4 = arith.constant 0 : index
    %3 = vector.load %arg2[%c0_2, %c0_3, %c0_4] : memref<2x8x32xf32, #tpu.memory_space<vmem>>, vector<2x8x32xf32>
    %4 = vector.shape_cast %3 : vector<2x8x32xf32> to vector<16x32xf32>
    %5 = arith.truncf %4 : vector<16x32xf32> to vector<16x32xbf16>
    %c0_5 = arith.constant 0 : index
    %c0_6 = arith.constant 0 : index
    %6 = vector.load %arg3[%c0_5, %c0_6] : memref<32x32xbf16, #tpu.memory_space<vmem>>, vector<32x32xbf16>
    %cst = arith.constant dense<0.000000e+00> : vector<16x32xf32>
    %7 = tpu.matmul %2, %6, %cst {dimension_numbers = #tpu.dot_dimension_numbers<[1], [0], [0], [1], [0, 0, 1, 1], [], []>} : vector<16x32xbf16>, vector<32x32xbf16>, vector<16x32xf32> -> vector<16x32xf32>
    %c0_7 = arith.constant 0 : index
    %c0_8 = arith.constant 0 : index
    %8 = vector.load %arg4[%c0_7, %c0_8] : memref<1x32xf32, #tpu.memory_space<vmem>>, vector<1x32xf32>
    %9 = vector.broadcast %8 : vector<1x32xf32> to vector<16x32xf32>
    %10 = arith.addf %7, %9 : vector<16x32xf32>
    %c0_9 = arith.constant 0 : index
    %c0_10 = arith.constant 0 : index
    %11 = vector.load %arg5[%c0_9, %c0_10] : memref<32x64xbf16, #tpu.memory_space<vmem>>, vector<32x64xbf16>
    %cst_11 = arith.constant dense<0.000000e+00> : vector<16x64xf32>
    %12 = tpu.matmul %5, %11, %cst_11 {dimension_numbers = #tpu.dot_dimension_numbers<[1], [0], [0], [1], [0, 0, 1, 1], [], []>} : vector<16x32xbf16>, vector<32x64xbf16>, vector<16x64xf32> -> vector<16x64xf32>
    %c0_12 = arith.constant 0 : index
    %c0_13 = arith.constant 0 : index
    %13 = vector.load %arg6[%c0_12, %c0_13] : memref<1x64xf32, #tpu.memory_space<vmem>>, vector<1x64xf32>
    %14 = vector.broadcast %13 : vector<1x64xf32> to vector<16x64xf32>
    %15 = arith.addf %12, %14 : vector<16x64xf32>
    %16 = vector.shape_cast %10 : vector<16x32xf32> to vector<2x8x32xf32>
    %17 = vector.extract_strided_slice %15 {offsets = [0, 0], sizes = [16, 32], strides = [1, 1]} : vector<16x64xf32> to vector<16x32xf32>
    %18 = vector.shape_cast %17 : vector<16x32xf32> to vector<2x8x32xf32>
    %19 = arith.truncf %18 : vector<2x8x32xf32> to vector<2x8x32xbf16>
    %20 = vector.extract_strided_slice %15 {offsets = [0, 32], sizes = [16, 32], strides = [1, 1]} : vector<16x64xf32> to vector<16x32xf32>
    %21 = vector.shape_cast %20 : vector<16x32xf32> to vector<2x8x32xf32>
    %22 = arith.truncf %21 : vector<2x8x32xf32> to vector<2x8x32xbf16>
    %c0_14 = arith.constant 0 : index
    %c0_15 = arith.constant 0 : index
    %c0_16 = arith.constant 0 : index
    %23 = vector.load %arg9[%c0_14, %c0_15, %c0_16] : memref<1x8x8xf32, #tpu.memory_space<vmem>>, vector<1x8x8xf32>
    %24 = arith.truncf %10 : vector<16x32xf32> to vector<16x32xbf16>
    %c0_17 = arith.constant 0 : index
    %c0_18 = arith.constant 0 : index
    %25 = vector.load %arg7[%c0_17, %c0_18] : memref<32x68xbf16, #tpu.memory_space<vmem>>, vector<32x68xbf16>
    %cst_19 = arith.constant dense<0.000000e+00> : vector<16x68xf32>
    %26 = tpu.matmul %24, %25, %cst_19 {dimension_numbers = #tpu.dot_dimension_numbers<[1], [0], [0], [1], [0, 0, 1, 1], [], []>} : vector<16x32xbf16>, vector<32x68xbf16>, vector<16x68xf32> -> vector<16x68xf32>
    %27 = vector.shape_cast %26 : vector<16x68xf32> to vector<2x8x68xf32>
    %c0_20 = arith.constant 0 : index
    %c0_21 = arith.constant 0 : index
    %28 = vector.load %arg8[%c0_20, %c0_21] : memref<8x8xf32, #tpu.memory_space<vmem>>, vector<8x8xf32>
    %cst_22 = arith.constant 0.000000e+00 : f32
    %29 = vector.broadcast %cst_22 : f32 to vector<8x8xf32>
    %30 = arith.cmpf oeq, %28, %29 : vector<8x8xf32>
    %31 = arith.extui %30 : vector<8x8xi1> to vector<8x8xi32>
    %32 = arith.sitofp %31 : vector<8x8xi32> to vector<8x8xf32>
    %33 = vector.shape_cast %32 : vector<8x8xf32> to vector<1x8x8xf32>
    %cst_23 = arith.constant 1.000000e+00 : f32
    %34 = vector.broadcast %cst_23 : f32 to vector<8x8xf32>
    %35 = arith.cmpf oeq, %28, %34 : vector<8x8xf32>
    %36 = arith.extui %35 : vector<8x8xi1> to vector<8x8xi32>
    %37 = arith.sitofp %36 : vector<8x8xi32> to vector<8x8xf32>
    %38 = vector.shape_cast %37 : vector<8x8xf32> to vector<1x8x8xf32>
    %cst_24 = arith.constant 2.000000e+00 : f32
    %39 = vector.broadcast %cst_24 : f32 to vector<8x8xf32>
    %40 = arith.cmpf oeq, %28, %39 : vector<8x8xf32>
    %41 = arith.extui %40 : vector<8x8xi1> to vector<8x8xi32>
    %42 = arith.sitofp %41 : vector<8x8xi32> to vector<8x8xf32>
    %43 = vector.shape_cast %42 : vector<8x8xf32> to vector<1x8x8xf32>
    %cst_25 = arith.constant 3.000000e+00 : f32
    %44 = vector.broadcast %cst_25 : f32 to vector<8x8xf32>
    %45 = arith.cmpf oeq, %28, %44 : vector<8x8xf32>
    %46 = arith.extui %45 : vector<8x8xi1> to vector<8x8xi32>
    %47 = arith.sitofp %46 : vector<8x8xi32> to vector<8x8xf32>
    %48 = vector.shape_cast %47 : vector<8x8xf32> to vector<1x8x8xf32>
    %cst_26 = arith.constant 4.000000e+00 : f32
    %49 = vector.broadcast %cst_26 : f32 to vector<8x8xf32>
    %50 = arith.cmpf oeq, %28, %49 : vector<8x8xf32>
    %51 = arith.extui %50 : vector<8x8xi1> to vector<8x8xi32>
    %52 = arith.sitofp %51 : vector<8x8xi32> to vector<8x8xf32>
    %53 = vector.shape_cast %52 : vector<8x8xf32> to vector<1x8x8xf32>
    %cst_27 = arith.constant 5.000000e+00 : f32
    %54 = vector.broadcast %cst_27 : f32 to vector<8x8xf32>
    %55 = arith.cmpf oeq, %28, %54 : vector<8x8xf32>
    %56 = arith.extui %55 : vector<8x8xi1> to vector<8x8xi32>
    %57 = arith.sitofp %56 : vector<8x8xi32> to vector<8x8xf32>
    %58 = vector.shape_cast %57 : vector<8x8xf32> to vector<1x8x8xf32>
    %cst_28 = arith.constant 6.000000e+00 : f32
    %59 = vector.broadcast %cst_28 : f32 to vector<8x8xf32>
    %60 = arith.cmpf oeq, %28, %59 : vector<8x8xf32>
    %61 = arith.extui %60 : vector<8x8xi1> to vector<8x8xi32>
    %62 = arith.sitofp %61 : vector<8x8xi32> to vector<8x8xf32>
    %63 = vector.shape_cast %62 : vector<8x8xf32> to vector<1x8x8xf32>
    %cst_29 = arith.constant 7.000000e+00 : f32
    %64 = vector.broadcast %cst_29 : f32 to vector<8x8xf32>
    %65 = arith.cmpf oeq, %28, %64 : vector<8x8xf32>
    %66 = arith.extui %65 : vector<8x8xi1> to vector<8x8xi32>
    %67 = arith.sitofp %66 : vector<8x8xi32> to vector<8x8xf32>
    %68 = vector.shape_cast %67 : vector<8x8xf32> to vector<1x8x8xf32>
    %cst_30 = arith.constant 8.000000e+00 : f32
    %69 = vector.broadcast %cst_30 : f32 to vector<8x8xf32>
    %70 = arith.cmpf oeq, %28, %69 : vector<8x8xf32>
    %71 = arith.extui %70 : vector<8x8xi1> to vector<8x8xi32>
    %72 = arith.sitofp %71 : vector<8x8xi32> to vector<8x8xf32>
    %73 = vector.shape_cast %72 : vector<8x8xf32> to vector<1x8x8xf32>
    %cst_31 = arith.constant 9.000000e+00 : f32
    %74 = vector.broadcast %cst_31 : f32 to vector<8x8xf32>
    %75 = arith.cmpf oeq, %28, %74 : vector<8x8xf32>
    %76 = arith.extui %75 : vector<8x8xi1> to vector<8x8xi32>
    %77 = arith.sitofp %76 : vector<8x8xi32> to vector<8x8xf32>
    %78 = vector.shape_cast %77 : vector<8x8xf32> to vector<1x8x8xf32>
    %cst_32 = arith.constant 1.000000e+01 : f32
    %79 = vector.broadcast %cst_32 : f32 to vector<8x8xf32>
    %80 = arith.cmpf oeq, %28, %79 : vector<8x8xf32>
    %81 = arith.extui %80 : vector<8x8xi1> to vector<8x8xi32>
    %82 = arith.sitofp %81 : vector<8x8xi32> to vector<8x8xf32>
    %83 = vector.shape_cast %82 : vector<8x8xf32> to vector<1x8x8xf32>
    %cst_33 = arith.constant 1.100000e+01 : f32
    %84 = vector.broadcast %cst_33 : f32 to vector<8x8xf32>
    %85 = arith.cmpf oeq, %28, %84 : vector<8x8xf32>
    %86 = arith.extui %85 : vector<8x8xi1> to vector<8x8xi32>
    %87 = arith.sitofp %86 : vector<8x8xi32> to vector<8x8xf32>
    %88 = vector.shape_cast %87 : vector<8x8xf32> to vector<1x8x8xf32>
    %cst_34 = arith.constant 1.200000e+01 : f32
    %89 = vector.broadcast %cst_34 : f32 to vector<8x8xf32>
    %90 = arith.cmpf oeq, %28, %89 : vector<8x8xf32>
    %91 = arith.extui %90 : vector<8x8xi1> to vector<8x8xi32>
    %92 = arith.sitofp %91 : vector<8x8xi32> to vector<8x8xf32>
    %93 = vector.shape_cast %92 : vector<8x8xf32> to vector<1x8x8xf32>
    %cst_35 = arith.constant 1.300000e+01 : f32
    %94 = vector.broadcast %cst_35 : f32 to vector<8x8xf32>
    %95 = arith.cmpf oeq, %28, %94 : vector<8x8xf32>
    %96 = arith.extui %95 : vector<8x8xi1> to vector<8x8xi32>
    %97 = arith.sitofp %96 : vector<8x8xi32> to vector<8x8xf32>
    %98 = vector.shape_cast %97 : vector<8x8xf32> to vector<1x8x8xf32>
    %cst_36 = arith.constant 1.400000e+01 : f32
    %99 = vector.broadcast %cst_36 : f32 to vector<8x8xf32>
    %100 = arith.cmpf oeq, %28, %99 : vector<8x8xf32>
    %101 = arith.extui %100 : vector<8x8xi1> to vector<8x8xi32>
    %102 = arith.sitofp %101 : vector<8x8xi32> to vector<8x8xf32>
    %103 = vector.shape_cast %102 : vector<8x8xf32> to vector<1x8x8xf32>
    %cst_37 = arith.constant 1.500000e+01 : f32
    %104 = vector.broadcast %cst_37 : f32 to vector<8x8xf32>
    %105 = arith.cmpf oeq, %28, %104 : vector<8x8xf32>
    %106 = arith.extui %105 : vector<8x8xi1> to vector<8x8xi32>
    %107 = arith.sitofp %106 : vector<8x8xi32> to vector<8x8xf32>
    %108 = vector.shape_cast %107 : vector<8x8xf32> to vector<1x8x8xf32>
    %cst_38 = arith.constant 1.600000e+01 : f32
    %109 = vector.broadcast %cst_38 : f32 to vector<8x8xf32>
    %110 = arith.cmpf oeq, %28, %109 : vector<8x8xf32>
    %111 = arith.extui %110 : vector<8x8xi1> to vector<8x8xi32>
    %112 = arith.sitofp %111 : vector<8x8xi32> to vector<8x8xf32>
    %113 = vector.shape_cast %112 : vector<8x8xf32> to vector<1x8x8xf32>
    %114 = vector.extract_strided_slice %16 {offsets = [0, 0, 0], sizes = [2, 8, 8], strides = [1, 1, 1]} : vector<2x8x32xf32> to vector<2x8x8xf32>
    %115 = arith.truncf %114 : vector<2x8x8xf32> to vector<2x8x8xbf16>
    %116 = vector.extract_strided_slice %19 {offsets = [0, 0, 0], sizes = [2, 8, 8], strides = [1, 1, 1]} : vector<2x8x32xbf16> to vector<2x8x8xbf16>
    %117 = vector.extract_strided_slice %22 {offsets = [0, 0, 0], sizes = [2, 8, 8], strides = [1, 1, 1]} : vector<2x8x32xbf16> to vector<2x8x8xbf16>
    %cst_39 = arith.constant dense<0.000000e+00> : vector<2x8x8xf32>
    %118 = tpu.matmul %115, %116, %cst_39 {dimension_numbers = #tpu.dot_dimension_numbers<[2], [2], [1], [1], [0, 0, 0, 1, 1, 1], [0], [0]>} : vector<2x8x8xbf16>, vector<2x8x8xbf16>, vector<2x8x8xf32> -> vector<2x8x8xf32>
    %119 = vector.extract_strided_slice %27 {offsets = [0, 0, 0], sizes = [2, 8, 17], strides = [1, 1, 1]} : vector<2x8x68xf32> to vector<2x8x17xf32>
    %120 = vector.extract_strided_slice %119 {offsets = [0, 0, 0], sizes = [2, 8, 1], strides = [1, 1, 1]} : vector<2x8x17xf32> to vector<2x8x1xf32>
    %121 = vector.broadcast %33 : vector<1x8x8xf32> to vector<2x8x8xf32>
    %122 = vector.broadcast %120 : vector<2x8x1xf32> to vector<2x8x8xf32>
    %123 = arith.mulf %121, %122 : vector<2x8x8xf32>
    %124 = vector.extract_strided_slice %119 {offsets = [0, 0, 1], sizes = [2, 8, 1], strides = [1, 1, 1]} : vector<2x8x17xf32> to vector<2x8x1xf32>
    %125 = vector.broadcast %38 : vector<1x8x8xf32> to vector<2x8x8xf32>
    %126 = vector.broadcast %124 : vector<2x8x1xf32> to vector<2x8x8xf32>
    %127 = arith.mulf %125, %126 : vector<2x8x8xf32>
    %128 = arith.addf %123, %127 : vector<2x8x8xf32>
    %129 = vector.extract_strided_slice %119 {offsets = [0, 0, 2], sizes = [2, 8, 1], strides = [1, 1, 1]} : vector<2x8x17xf32> to vector<2x8x1xf32>
    %130 = vector.broadcast %43 : vector<1x8x8xf32> to vector<2x8x8xf32>
    %131 = vector.broadcast %129 : vector<2x8x1xf32> to vector<2x8x8xf32>
    %132 = arith.mulf %130, %131 : vector<2x8x8xf32>
    %133 = arith.addf %128, %132 : vector<2x8x8xf32>
    %134 = vector.extract_strided_slice %119 {offsets = [0, 0, 3], sizes = [2, 8, 1], strides = [1, 1, 1]} : vector<2x8x17xf32> to vector<2x8x1xf32>
    %135 = vector.broadcast %48 : vector<1x8x8xf32> to vector<2x8x8xf32>
    %136 = vector.broadcast %134 : vector<2x8x1xf32> to vector<2x8x8xf32>
    %137 = arith.mulf %135, %136 : vector<2x8x8xf32>
    %138 = arith.addf %133, %137 : vector<2x8x8xf32>
    %139 = vector.extract_strided_slice %119 {offsets = [0, 0, 4], sizes = [2, 8, 1], strides = [1, 1, 1]} : vector<2x8x17xf32> to vector<2x8x1xf32>
    %140 = vector.broadcast %53 : vector<1x8x8xf32> to vector<2x8x8xf32>
    %141 = vector.broadcast %139 : vector<2x8x1xf32> to vector<2x8x8xf32>
    %142 = arith.mulf %140, %141 : vector<2x8x8xf32>
    %143 = arith.addf %138, %142 : vector<2x8x8xf32>
    %144 = vector.extract_strided_slice %119 {offsets = [0, 0, 5], sizes = [2, 8, 1], strides = [1, 1, 1]} : vector<2x8x17xf32> to vector<2x8x1xf32>
    %145 = vector.broadcast %58 : vector<1x8x8xf32> to vector<2x8x8xf32>
    %146 = vector.broadcast %144 : vector<2x8x1xf32> to vector<2x8x8xf32>
    %147 = arith.mulf %145, %146 : vector<2x8x8xf32>
    %148 = arith.addf %143, %147 : vector<2x8x8xf32>
    %149 = vector.extract_strided_slice %119 {offsets = [0, 0, 6], sizes = [2, 8, 1], strides = [1, 1, 1]} : vector<2x8x17xf32> to vector<2x8x1xf32>
    %150 = vector.broadcast %63 : vector<1x8x8xf32> to vector<2x8x8xf32>
    %151 = vector.broadcast %149 : vector<2x8x1xf32> to vector<2x8x8xf32>
    %152 = arith.mulf %150, %151 : vector<2x8x8xf32>
    %153 = arith.addf %148, %152 : vector<2x8x8xf32>
    %154 = vector.extract_strided_slice %119 {offsets = [0, 0, 7], sizes = [2, 8, 1], strides = [1, 1, 1]} : vector<2x8x17xf32> to vector<2x8x1xf32>
    %155 = vector.broadcast %68 : vector<1x8x8xf32> to vector<2x8x8xf32>
    %156 = vector.broadcast %154 : vector<2x8x1xf32> to vector<2x8x8xf32>
    %157 = arith.mulf %155, %156 : vector<2x8x8xf32>
    %158 = arith.addf %153, %157 : vector<2x8x8xf32>
    %159 = vector.extract_strided_slice %119 {offsets = [0, 0, 8], sizes = [2, 8, 1], strides = [1, 1, 1]} : vector<2x8x17xf32> to vector<2x8x1xf32>
    %160 = vector.broadcast %73 : vector<1x8x8xf32> to vector<2x8x8xf32>
    %161 = vector.broadcast %159 : vector<2x8x1xf32> to vector<2x8x8xf32>
    %162 = arith.mulf %160, %161 : vector<2x8x8xf32>
    %163 = arith.addf %158, %162 : vector<2x8x8xf32>
    %164 = vector.extract_strided_slice %119 {offsets = [0, 0, 9], sizes = [2, 8, 1], strides = [1, 1, 1]} : vector<2x8x17xf32> to vector<2x8x1xf32>
    %165 = vector.broadcast %78 : vector<1x8x8xf32> to vector<2x8x8xf32>
    %166 = vector.broadcast %164 : vector<2x8x1xf32> to vector<2x8x8xf32>
    %167 = arith.mulf %165, %166 : vector<2x8x8xf32>
    %168 = arith.addf %163, %167 : vector<2x8x8xf32>
    %169 = vector.extract_strided_slice %119 {offsets = [0, 0, 10], sizes = [2, 8, 1], strides = [1, 1, 1]} : vector<2x8x17xf32> to vector<2x8x1xf32>
    %170 = vector.broadcast %83 : vector<1x8x8xf32> to vector<2x8x8xf32>
    %171 = vector.broadcast %169 : vector<2x8x1xf32> to vector<2x8x8xf32>
    %172 = arith.mulf %170, %171 : vector<2x8x8xf32>
    %173 = arith.addf %168, %172 : vector<2x8x8xf32>
    %174 = vector.extract_strided_slice %119 {offsets = [0, 0, 11], sizes = [2, 8, 1], strides = [1, 1, 1]} : vector<2x8x17xf32> to vector<2x8x1xf32>
    %175 = vector.broadcast %88 : vector<1x8x8xf32> to vector<2x8x8xf32>
    %176 = vector.broadcast %174 : vector<2x8x1xf32> to vector<2x8x8xf32>
    %177 = arith.mulf %175, %176 : vector<2x8x8xf32>
    %178 = arith.addf %173, %177 : vector<2x8x8xf32>
    %179 = vector.extract_strided_slice %119 {offsets = [0, 0, 12], sizes = [2, 8, 1], strides = [1, 1, 1]} : vector<2x8x17xf32> to vector<2x8x1xf32>
    %180 = vector.broadcast %93 : vector<1x8x8xf32> to vector<2x8x8xf32>
    %181 = vector.broadcast %179 : vector<2x8x1xf32> to vector<2x8x8xf32>
    %182 = arith.mulf %180, %181 : vector<2x8x8xf32>
    %183 = arith.addf %178, %182 : vector<2x8x8xf32>
    %184 = vector.extract_strided_slice %119 {offsets = [0, 0, 13], sizes = [2, 8, 1], strides = [1, 1, 1]} : vector<2x8x17xf32> to vector<2x8x1xf32>
    %185 = vector.broadcast %98 : vector<1x8x8xf32> to vector<2x8x8xf32>
    %186 = vector.broadcast %184 : vector<2x8x1xf32> to vector<2x8x8xf32>
    %187 = arith.mulf %185, %186 : vector<2x8x8xf32>
    %188 = arith.addf %183, %187 : vector<2x8x8xf32>
    %189 = vector.extract_strided_slice %119 {offsets = [0, 0, 14], sizes = [2, 8, 1], strides = [1, 1, 1]} : vector<2x8x17xf32> to vector<2x8x1xf32>
    %190 = vector.broadcast %103 : vector<1x8x8xf32> to vector<2x8x8xf32>
    %191 = vector.broadcast %189 : vector<2x8x1xf32> to vector<2x8x8xf32>
    %192 = arith.mulf %190, %191 : vector<2x8x8xf32>
    %193 = arith.addf %188, %192 : vector<2x8x8xf32>
    %194 = vector.extract_strided_slice %119 {offsets = [0, 0, 15], sizes = [2, 8, 1], strides = [1, 1, 1]} : vector<2x8x17xf32> to vector<2x8x1xf32>
    %195 = vector.broadcast %108 : vector<1x8x8xf32> to vector<2x8x8xf32>
    %196 = vector.broadcast %194 : vector<2x8x1xf32> to vector<2x8x8xf32>
    %197 = arith.mulf %195, %196 : vector<2x8x8xf32>
    %198 = arith.addf %193, %197 : vector<2x8x8xf32>
    %199 = vector.extract_strided_slice %119 {offsets = [0, 0, 16], sizes = [2, 8, 1], strides = [1, 1, 1]} : vector<2x8x17xf32> to vector<2x8x1xf32>
    %200 = vector.broadcast %113 : vector<1x8x8xf32> to vector<2x8x8xf32>
    %201 = vector.broadcast %199 : vector<2x8x1xf32> to vector<2x8x8xf32>
    %202 = arith.mulf %200, %201 : vector<2x8x8xf32>
    %203 = arith.addf %198, %202 : vector<2x8x8xf32>
    %204 = arith.addf %118, %203 : vector<2x8x8xf32>
    %cst_40 = arith.constant 0.353553385 : f32
    %205 = vector.broadcast %cst_40 : f32 to vector<2x8x8xf32>
    %206 = arith.mulf %204, %205 : vector<2x8x8xf32>
    %207 = vector.broadcast %23 : vector<1x8x8xf32> to vector<2x8x8xf32>
    %208 = arith.addf %206, %207 : vector<2x8x8xf32>
    %cst_41 = arith.constant dense<0xFF800000> : vector<2x8xf32>
    %209 = vector.multi_reduction <maximumf>, %208, %cst_41 [2] : vector<2x8x8xf32> to vector<2x8xf32>
    %210 = vector.shape_cast %209 : vector<2x8xf32> to vector<2x8x1xf32>
    %211 = vector.broadcast %210 : vector<2x8x1xf32> to vector<2x8x8xf32>
    %212 = arith.subf %208, %211 : vector<2x8x8xf32>
    %213 = math.exp %212 : vector<2x8x8xf32>
    %cst_42 = arith.constant dense<0.000000e+00> : vector<2x8xf32>
    %214 = vector.multi_reduction <add>, %213, %cst_42 [2] : vector<2x8x8xf32> to vector<2x8xf32>
    %215 = vector.shape_cast %214 : vector<2x8xf32> to vector<2x8x1xf32>
    %216 = tpu.reciprocal %215 : vector<2x8x1xf32> -> vector<2x8x1xf32>
    %217 = vector.broadcast %216 : vector<2x8x1xf32> to vector<2x8x8xf32>
    %218 = arith.mulf %213, %217 : vector<2x8x8xf32>
    %219 = arith.truncf %218 : vector<2x8x8xf32> to vector<2x8x8xbf16>
    %cst_43 = arith.constant dense<0.000000e+00> : vector<2x8x8xf32>
    %220 = tpu.matmul %219, %117, %cst_43 {dimension_numbers = #tpu.dot_dimension_numbers<[2], [1], [1], [2], [0, 0, 0, 1, 1, 2], [0], [0]>} : vector<2x8x8xbf16>, vector<2x8x8xbf16>, vector<2x8x8xf32> -> vector<2x8x8xf32>
    %c0_44 = arith.constant 0 : index
    %c0_45 = arith.constant 0 : index
    %c0_46 = arith.constant 0 : index
    %221 = vector.load %arg15[%c0_44, %c0_45, %c0_46] : memref<2x8x32xf32, #tpu.memory_space<vmem>>, vector<2x8x8xf32>
    tpu.vector_store %arg15[%c0_44, %c0_45, %c0_46], %220 {strides = array<i32>} : memref<2x8x32xf32, #tpu.memory_space<vmem>>, vector<2x8x8xf32>,
    %222 = vector.extract_strided_slice %16 {offsets = [0, 0, 8], sizes = [2, 8, 8], strides = [1, 1, 1]} : vector<2x8x32xf32> to vector<2x8x8xf32>
    %223 = arith.truncf %222 : vector<2x8x8xf32> to vector<2x8x8xbf16>
    %224 = vector.extract_strided_slice %19 {offsets = [0, 0, 8], sizes = [2, 8, 8], strides = [1, 1, 1]} : vector<2x8x32xbf16> to vector<2x8x8xbf16>
    %225 = vector.extract_strided_slice %22 {offsets = [0, 0, 8], sizes = [2, 8, 8], strides = [1, 1, 1]} : vector<2x8x32xbf16> to vector<2x8x8xbf16>
    %cst_47 = arith.constant dense<0.000000e+00> : vector<2x8x8xf32>
    %226 = tpu.matmul %223, %224, %cst_47 {dimension_numbers = #tpu.dot_dimension_numbers<[2], [2], [1], [1], [0, 0, 0, 1, 1, 1], [0], [0]>} : vector<2x8x8xbf16>, vector<2x8x8xbf16>, vector<2x8x8xf32> -> vector<2x8x8xf32>
    %227 = vector.extract_strided_slice %27 {offsets = [0, 0, 17], sizes = [2, 8, 17], strides = [1, 1, 1]} : vector<2x8x68xf32> to vector<2x8x17xf32>
    %228 = vector.extract_strided_slice %227 {offsets = [0, 0, 0], sizes = [2, 8, 1], strides = [1, 1, 1]} : vector<2x8x17xf32> to vector<2x8x1xf32>
    %229 = vector.broadcast %33 : vector<1x8x8xf32> to vector<2x8x8xf32>
    %230 = vector.broadcast %228 : vector<2x8x1xf32> to vector<2x8x8xf32>
    %231 = arith.mulf %229, %230 : vector<2x8x8xf32>
    %232 = vector.extract_strided_slice %227 {offsets = [0, 0, 1], sizes = [2, 8, 1], strides = [1, 1, 1]} : vector<2x8x17xf32> to vector<2x8x1xf32>
    %233 = vector.broadcast %38 : vector<1x8x8xf32> to vector<2x8x8xf32>
    %234 = vector.broadcast %232 : vector<2x8x1xf32> to vector<2x8x8xf32>
    %235 = arith.mulf %233, %234 : vector<2x8x8xf32>
    %236 = arith.addf %231, %235 : vector<2x8x8xf32>
    %237 = vector.extract_strided_slice %227 {offsets = [0, 0, 2], sizes = [2, 8, 1], strides = [1, 1, 1]} : vector<2x8x17xf32> to vector<2x8x1xf32>
    %238 = vector.broadcast %43 : vector<1x8x8xf32> to vector<2x8x8xf32>
    %239 = vector.broadcast %237 : vector<2x8x1xf32> to vector<2x8x8xf32>
    %240 = arith.mulf %238, %239 : vector<2x8x8xf32>
    %241 = arith.addf %236, %240 : vector<2x8x8xf32>
    %242 = vector.extract_strided_slice %227 {offsets = [0, 0, 3], sizes = [2, 8, 1], strides = [1, 1, 1]} : vector<2x8x17xf32> to vector<2x8x1xf32>
    %243 = vector.broadcast %48 : vector<1x8x8xf32> to vector<2x8x8xf32>
    %244 = vector.broadcast %242 : vector<2x8x1xf32> to vector<2x8x8xf32>
    %245 = arith.mulf %243, %244 : vector<2x8x8xf32>
    %246 = arith.addf %241, %245 : vector<2x8x8xf32>
    %247 = vector.extract_strided_slice %227 {offsets = [0, 0, 4], sizes = [2, 8, 1], strides = [1, 1, 1]} : vector<2x8x17xf32> to vector<2x8x1xf32>
    %248 = vector.broadcast %53 : vector<1x8x8xf32> to vector<2x8x8xf32>
    %249 = vector.broadcast %247 : vector<2x8x1xf32> to vector<2x8x8xf32>
    %250 = arith.mulf %248, %249 : vector<2x8x8xf32>
    %251 = arith.addf %246, %250 : vector<2x8x8xf32>
    %252 = vector.extract_strided_slice %227 {offsets = [0, 0, 5], sizes = [2, 8, 1], strides = [1, 1, 1]} : vector<2x8x17xf32> to vector<2x8x1xf32>
    %253 = vector.broadcast %58 : vector<1x8x8xf32> to vector<2x8x8xf32>
    %254 = vector.broadcast %252 : vector<2x8x1xf32> to vector<2x8x8xf32>
    %255 = arith.mulf %253, %254 : vector<2x8x8xf32>
    %256 = arith.addf %251, %255 : vector<2x8x8xf32>
    %257 = vector.extract_strided_slice %227 {offsets = [0, 0, 6], sizes = [2, 8, 1], strides = [1, 1, 1]} : vector<2x8x17xf32> to vector<2x8x1xf32>
    %258 = vector.broadcast %63 : vector<1x8x8xf32> to vector<2x8x8xf32>
    %259 = vector.broadcast %257 : vector<2x8x1xf32> to vector<2x8x8xf32>
    %260 = arith.mulf %258, %259 : vector<2x8x8xf32>
    %261 = arith.addf %256, %260 : vector<2x8x8xf32>
    %262 = vector.extract_strided_slice %227 {offsets = [0, 0, 7], sizes = [2, 8, 1], strides = [1, 1, 1]} : vector<2x8x17xf32> to vector<2x8x1xf32>
    %263 = vector.broadcast %68 : vector<1x8x8xf32> to vector<2x8x8xf32>
    %264 = vector.broadcast %262 : vector<2x8x1xf32> to vector<2x8x8xf32>
    %265 = arith.mulf %263, %264 : vector<2x8x8xf32>
    %266 = arith.addf %261, %265 : vector<2x8x8xf32>
    %267 = vector.extract_strided_slice %227 {offsets = [0, 0, 8], sizes = [2, 8, 1], strides = [1, 1, 1]} : vector<2x8x17xf32> to vector<2x8x1xf32>
    %268 = vector.broadcast %73 : vector<1x8x8xf32> to vector<2x8x8xf32>
    %269 = vector.broadcast %267 : vector<2x8x1xf32> to vector<2x8x8xf32>
    %270 = arith.mulf %268, %269 : vector<2x8x8xf32>
    %271 = arith.addf %266, %270 : vector<2x8x8xf32>
    %272 = vector.extract_strided_slice %227 {offsets = [0, 0, 9], sizes = [2, 8, 1], strides = [1, 1, 1]} : vector<2x8x17xf32> to vector<2x8x1xf32>
    %273 = vector.broadcast %78 : vector<1x8x8xf32> to vector<2x8x8xf32>
    %274 = vector.broadcast %272 : vector<2x8x1xf32> to vector<2x8x8xf32>
    %275 = arith.mulf %273, %274 : vector<2x8x8xf32>
    %276 = arith.addf %271, %275 : vector<2x8x8xf32>
    %277 = vector.extract_strided_slice %227 {offsets = [0, 0, 10], sizes = [2, 8, 1], strides = [1, 1, 1]} : vector<2x8x17xf32> to vector<2x8x1xf32>
    %278 = vector.broadcast %83 : vector<1x8x8xf32> to vector<2x8x8xf32>
    %279 = vector.broadcast %277 : vector<2x8x1xf32> to vector<2x8x8xf32>
    %280 = arith.mulf %278, %279 : vector<2x8x8xf32>
    %281 = arith.addf %276, %280 : vector<2x8x8xf32>
    %282 = vector.extract_strided_slice %227 {offsets = [0, 0, 11], sizes = [2, 8, 1], strides = [1, 1, 1]} : vector<2x8x17xf32> to vector<2x8x1xf32>
    %283 = vector.broadcast %88 : vector<1x8x8xf32> to vector<2x8x8xf32>
    %284 = vector.broadcast %282 : vector<2x8x1xf32> to vector<2x8x8xf32>
    %285 = arith.mulf %283, %284 : vector<2x8x8xf32>
    %286 = arith.addf %281, %285 : vector<2x8x8xf32>
    %287 = vector.extract_strided_slice %227 {offsets = [0, 0, 12], sizes = [2, 8, 1], strides = [1, 1, 1]} : vector<2x8x17xf32> to vector<2x8x1xf32>
    %288 = vector.broadcast %93 : vector<1x8x8xf32> to vector<2x8x8xf32>
    %289 = vector.broadcast %287 : vector<2x8x1xf32> to vector<2x8x8xf32>
    %290 = arith.mulf %288, %289 : vector<2x8x8xf32>
    %291 = arith.addf %286, %290 : vector<2x8x8xf32>
    %292 = vector.extract_strided_slice %227 {offsets = [0, 0, 13], sizes = [2, 8, 1], strides = [1, 1, 1]} : vector<2x8x17xf32> to vector<2x8x1xf32>
    %293 = vector.broadcast %98 : vector<1x8x8xf32> to vector<2x8x8xf32>
    %294 = vector.broadcast %292 : vector<2x8x1xf32> to vector<2x8x8xf32>
    %295 = arith.mulf %293, %294 : vector<2x8x8xf32>
    %296 = arith.addf %291, %295 : vector<2x8x8xf32>
    %297 = vector.extract_strided_slice %227 {offsets = [0, 0, 14], sizes = [2, 8, 1], strides = [1, 1, 1]} : vector<2x8x17xf32> to vector<2x8x1xf32>
    %298 = vector.broadcast %103 : vector<1x8x8xf32> to vector<2x8x8xf32>
    %299 = vector.broadcast %297 : vector<2x8x1xf32> to vector<2x8x8xf32>
    %300 = arith.mulf %298, %299 : vector<2x8x8xf32>
    %301 = arith.addf %296, %300 : vector<2x8x8xf32>
    %302 = vector.extract_strided_slice %227 {offsets = [0, 0, 15], sizes = [2, 8, 1], strides = [1, 1, 1]} : vector<2x8x17xf32> to vector<2x8x1xf32>
    %303 = vector.broadcast %108 : vector<1x8x8xf32> to vector<2x8x8xf32>
    %304 = vector.broadcast %302 : vector<2x8x1xf32> to vector<2x8x8xf32>
    %305 = arith.mulf %303, %304 : vector<2x8x8xf32>
    %306 = arith.addf %301, %305 : vector<2x8x8xf32>
    %307 = vector.extract_strided_slice %227 {offsets = [0, 0, 16], sizes = [2, 8, 1], strides = [1, 1, 1]} : vector<2x8x17xf32> to vector<2x8x1xf32>
    %308 = vector.broadcast %113 : vector<1x8x8xf32> to vector<2x8x8xf32>
    %309 = vector.broadcast %307 : vector<2x8x1xf32> to vector<2x8x8xf32>
    %310 = arith.mulf %308, %309 : vector<2x8x8xf32>
    %311 = arith.addf %306, %310 : vector<2x8x8xf32>
    %312 = arith.addf %226, %311 : vector<2x8x8xf32>
    %cst_48 = arith.constant 0.353553385 : f32
    %313 = vector.broadcast %cst_48 : f32 to vector<2x8x8xf32>
    %314 = arith.mulf %312, %313 : vector<2x8x8xf32>
    %315 = vector.broadcast %23 : vector<1x8x8xf32> to vector<2x8x8xf32>
    %316 = arith.addf %314, %315 : vector<2x8x8xf32>
    %cst_49 = arith.constant dense<0xFF800000> : vector<2x8xf32>
    %317 = vector.multi_reduction <maximumf>, %316, %cst_49 [2] : vector<2x8x8xf32> to vector<2x8xf32>
    %318 = vector.shape_cast %317 : vector<2x8xf32> to vector<2x8x1xf32>
    %319 = vector.broadcast %318 : vector<2x8x1xf32> to vector<2x8x8xf32>
    %320 = arith.subf %316, %319 : vector<2x8x8xf32>
    %321 = math.exp %320 : vector<2x8x8xf32>
    %cst_50 = arith.constant dense<0.000000e+00> : vector<2x8xf32>
    %322 = vector.multi_reduction <add>, %321, %cst_50 [2] : vector<2x8x8xf32> to vector<2x8xf32>
    %323 = vector.shape_cast %322 : vector<2x8xf32> to vector<2x8x1xf32>
    %324 = tpu.reciprocal %323 : vector<2x8x1xf32> -> vector<2x8x1xf32>
    %325 = vector.broadcast %324 : vector<2x8x1xf32> to vector<2x8x8xf32>
    %326 = arith.mulf %321, %325 : vector<2x8x8xf32>
    %327 = arith.truncf %326 : vector<2x8x8xf32> to vector<2x8x8xbf16>
    %cst_51 = arith.constant dense<0.000000e+00> : vector<2x8x8xf32>
    %328 = tpu.matmul %327, %225, %cst_51 {dimension_numbers = #tpu.dot_dimension_numbers<[2], [1], [1], [2], [0, 0, 0, 1, 1, 2], [0], [0]>} : vector<2x8x8xbf16>, vector<2x8x8xbf16>, vector<2x8x8xf32> -> vector<2x8x8xf32>
    %c0_52 = arith.constant 0 : index
    %c0_53 = arith.constant 0 : index
    %c8 = arith.constant 8 : index
    %329 = vector.load %arg15[%c0_52, %c0_53, %c8] : memref<2x8x32xf32, #tpu.memory_space<vmem>>, vector<2x8x8xf32>
    tpu.vector_store %arg15[%c0_52, %c0_53, %c8], %328 {strides = array<i32>} : memref<2x8x32xf32, #tpu.memory_space<vmem>>, vector<2x8x8xf32>,
    %330 = vector.extract_strided_slice %16 {offsets = [0, 0, 16], sizes = [2, 8, 8], strides = [1, 1, 1]} : vector<2x8x32xf32> to vector<2x8x8xf32>
    %331 = arith.truncf %330 : vector<2x8x8xf32> to vector<2x8x8xbf16>
    %332 = vector.extract_strided_slice %19 {offsets = [0, 0, 16], sizes = [2, 8, 8], strides = [1, 1, 1]} : vector<2x8x32xbf16> to vector<2x8x8xbf16>
    %333 = vector.extract_strided_slice %22 {offsets = [0, 0, 16], sizes = [2, 8, 8], strides = [1, 1, 1]} : vector<2x8x32xbf16> to vector<2x8x8xbf16>
    %cst_54 = arith.constant dense<0.000000e+00> : vector<2x8x8xf32>
    %334 = tpu.matmul %331, %332, %cst_54 {dimension_numbers = #tpu.dot_dimension_numbers<[2], [2], [1], [1], [0, 0, 0, 1, 1, 1], [0], [0]>} : vector<2x8x8xbf16>, vector<2x8x8xbf16>, vector<2x8x8xf32> -> vector<2x8x8xf32>
    %335 = vector.extract_strided_slice %27 {offsets = [0, 0, 34], sizes = [2, 8, 17], strides = [1, 1, 1]} : vector<2x8x68xf32> to vector<2x8x17xf32>
    %336 = vector.extract_strided_slice %335 {offsets = [0, 0, 0], sizes = [2, 8, 1], strides = [1, 1, 1]} : vector<2x8x17xf32> to vector<2x8x1xf32>
    %337 = vector.broadcast %33 : vector<1x8x8xf32> to vector<2x8x8xf32>
    %338 = vector.broadcast %336 : vector<2x8x1xf32> to vector<2x8x8xf32>
    %339 = arith.mulf %337, %338 : vector<2x8x8xf32>
    %340 = vector.extract_strided_slice %335 {offsets = [0, 0, 1], sizes = [2, 8, 1], strides = [1, 1, 1]} : vector<2x8x17xf32> to vector<2x8x1xf32>
    %341 = vector.broadcast %38 : vector<1x8x8xf32> to vector<2x8x8xf32>
    %342 = vector.broadcast %340 : vector<2x8x1xf32> to vector<2x8x8xf32>
    %343 = arith.mulf %341, %342 : vector<2x8x8xf32>
    %344 = arith.addf %339, %343 : vector<2x8x8xf32>
    %345 = vector.extract_strided_slice %335 {offsets = [0, 0, 2], sizes = [2, 8, 1], strides = [1, 1, 1]} : vector<2x8x17xf32> to vector<2x8x1xf32>
    %346 = vector.broadcast %43 : vector<1x8x8xf32> to vector<2x8x8xf32>
    %347 = vector.broadcast %345 : vector<2x8x1xf32> to vector<2x8x8xf32>
    %348 = arith.mulf %346, %347 : vector<2x8x8xf32>
    %349 = arith.addf %344, %348 : vector<2x8x8xf32>
    %350 = vector.extract_strided_slice %335 {offsets = [0, 0, 3], sizes = [2, 8, 1], strides = [1, 1, 1]} : vector<2x8x17xf32> to vector<2x8x1xf32>
    %351 = vector.broadcast %48 : vector<1x8x8xf32> to vector<2x8x8xf32>
    %352 = vector.broadcast %350 : vector<2x8x1xf32> to vector<2x8x8xf32>
    %353 = arith.mulf %351, %352 : vector<2x8x8xf32>
    %354 = arith.addf %349, %353 : vector<2x8x8xf32>
    %355 = vector.extract_strided_slice %335 {offsets = [0, 0, 4], sizes = [2, 8, 1], strides = [1, 1, 1]} : vector<2x8x17xf32> to vector<2x8x1xf32>
    %356 = vector.broadcast %53 : vector<1x8x8xf32> to vector<2x8x8xf32>
    %357 = vector.broadcast %355 : vector<2x8x1xf32> to vector<2x8x8xf32>
    %358 = arith.mulf %356, %357 : vector<2x8x8xf32>
    %359 = arith.addf %354, %358 : vector<2x8x8xf32>
    %360 = vector.extract_strided_slice %335 {offsets = [0, 0, 5], sizes = [2, 8, 1], strides = [1, 1, 1]} : vector<2x8x17xf32> to vector<2x8x1xf32>
    %361 = vector.broadcast %58 : vector<1x8x8xf32> to vector<2x8x8xf32>
    %362 = vector.broadcast %360 : vector<2x8x1xf32> to vector<2x8x8xf32>
    %363 = arith.mulf %361, %362 : vector<2x8x8xf32>
    %364 = arith.addf %359, %363 : vector<2x8x8xf32>
    %365 = vector.extract_strided_slice %335 {offsets = [0, 0, 6], sizes = [2, 8, 1], strides = [1, 1, 1]} : vector<2x8x17xf32> to vector<2x8x1xf32>
    %366 = vector.broadcast %63 : vector<1x8x8xf32> to vector<2x8x8xf32>
    %367 = vector.broadcast %365 : vector<2x8x1xf32> to vector<2x8x8xf32>
    %368 = arith.mulf %366, %367 : vector<2x8x8xf32>
    %369 = arith.addf %364, %368 : vector<2x8x8xf32>
    %370 = vector.extract_strided_slice %335 {offsets = [0, 0, 7], sizes = [2, 8, 1], strides = [1, 1, 1]} : vector<2x8x17xf32> to vector<2x8x1xf32>
    %371 = vector.broadcast %68 : vector<1x8x8xf32> to vector<2x8x8xf32>
    %372 = vector.broadcast %370 : vector<2x8x1xf32> to vector<2x8x8xf32>
    %373 = arith.mulf %371, %372 : vector<2x8x8xf32>
    %374 = arith.addf %369, %373 : vector<2x8x8xf32>
    %375 = vector.extract_strided_slice %335 {offsets = [0, 0, 8], sizes = [2, 8, 1], strides = [1, 1, 1]} : vector<2x8x17xf32> to vector<2x8x1xf32>
    %376 = vector.broadcast %73 : vector<1x8x8xf32> to vector<2x8x8xf32>
    %377 = vector.broadcast %375 : vector<2x8x1xf32> to vector<2x8x8xf32>
    %378 = arith.mulf %376, %377 : vector<2x8x8xf32>
    %379 = arith.addf %374, %378 : vector<2x8x8xf32>
    %380 = vector.extract_strided_slice %335 {offsets = [0, 0, 9], sizes = [2, 8, 1], strides = [1, 1, 1]} : vector<2x8x17xf32> to vector<2x8x1xf32>
    %381 = vector.broadcast %78 : vector<1x8x8xf32> to vector<2x8x8xf32>
    %382 = vector.broadcast %380 : vector<2x8x1xf32> to vector<2x8x8xf32>
    %383 = arith.mulf %381, %382 : vector<2x8x8xf32>
    %384 = arith.addf %379, %383 : vector<2x8x8xf32>
    %385 = vector.extract_strided_slice %335 {offsets = [0, 0, 10], sizes = [2, 8, 1], strides = [1, 1, 1]} : vector<2x8x17xf32> to vector<2x8x1xf32>
    %386 = vector.broadcast %83 : vector<1x8x8xf32> to vector<2x8x8xf32>
    %387 = vector.broadcast %385 : vector<2x8x1xf32> to vector<2x8x8xf32>
    %388 = arith.mulf %386, %387 : vector<2x8x8xf32>
    %389 = arith.addf %384, %388 : vector<2x8x8xf32>
    %390 = vector.extract_strided_slice %335 {offsets = [0, 0, 11], sizes = [2, 8, 1], strides = [1, 1, 1]} : vector<2x8x17xf32> to vector<2x8x1xf32>
    %391 = vector.broadcast %88 : vector<1x8x8xf32> to vector<2x8x8xf32>
    %392 = vector.broadcast %390 : vector<2x8x1xf32> to vector<2x8x8xf32>
    %393 = arith.mulf %391, %392 : vector<2x8x8xf32>
    %394 = arith.addf %389, %393 : vector<2x8x8xf32>
    %395 = vector.extract_strided_slice %335 {offsets = [0, 0, 12], sizes = [2, 8, 1], strides = [1, 1, 1]} : vector<2x8x17xf32> to vector<2x8x1xf32>
    %396 = vector.broadcast %93 : vector<1x8x8xf32> to vector<2x8x8xf32>
    %397 = vector.broadcast %395 : vector<2x8x1xf32> to vector<2x8x8xf32>
    %398 = arith.mulf %396, %397 : vector<2x8x8xf32>
    %399 = arith.addf %394, %398 : vector<2x8x8xf32>
    %400 = vector.extract_strided_slice %335 {offsets = [0, 0, 13], sizes = [2, 8, 1], strides = [1, 1, 1]} : vector<2x8x17xf32> to vector<2x8x1xf32>
    %401 = vector.broadcast %98 : vector<1x8x8xf32> to vector<2x8x8xf32>
    %402 = vector.broadcast %400 : vector<2x8x1xf32> to vector<2x8x8xf32>
    %403 = arith.mulf %401, %402 : vector<2x8x8xf32>
    %404 = arith.addf %399, %403 : vector<2x8x8xf32>
    %405 = vector.extract_strided_slice %335 {offsets = [0, 0, 14], sizes = [2, 8, 1], strides = [1, 1, 1]} : vector<2x8x17xf32> to vector<2x8x1xf32>
    %406 = vector.broadcast %103 : vector<1x8x8xf32> to vector<2x8x8xf32>
    %407 = vector.broadcast %405 : vector<2x8x1xf32> to vector<2x8x8xf32>
    %408 = arith.mulf %406, %407 : vector<2x8x8xf32>
    %409 = arith.addf %404, %408 : vector<2x8x8xf32>
    %410 = vector.extract_strided_slice %335 {offsets = [0, 0, 15], sizes = [2, 8, 1], strides = [1, 1, 1]} : vector<2x8x17xf32> to vector<2x8x1xf32>
    %411 = vector.broadcast %108 : vector<1x8x8xf32> to vector<2x8x8xf32>
    %412 = vector.broadcast %410 : vector<2x8x1xf32> to vector<2x8x8xf32>
    %413 = arith.mulf %411, %412 : vector<2x8x8xf32>
    %414 = arith.addf %409, %413 : vector<2x8x8xf32>
    %415 = vector.extract_strided_slice %335 {offsets = [0, 0, 16], sizes = [2, 8, 1], strides = [1, 1, 1]} : vector<2x8x17xf32> to vector<2x8x1xf32>
    %416 = vector.broadcast %113 : vector<1x8x8xf32> to vector<2x8x8xf32>
    %417 = vector.broadcast %415 : vector<2x8x1xf32> to vector<2x8x8xf32>
    %418 = arith.mulf %416, %417 : vector<2x8x8xf32>
    %419 = arith.addf %414, %418 : vector<2x8x8xf32>
    %420 = arith.addf %334, %419 : vector<2x8x8xf32>
    %cst_55 = arith.constant 0.353553385 : f32
    %421 = vector.broadcast %cst_55 : f32 to vector<2x8x8xf32>
    %422 = arith.mulf %420, %421 : vector<2x8x8xf32>
    %423 = vector.broadcast %23 : vector<1x8x8xf32> to vector<2x8x8xf32>
    %424 = arith.addf %422, %423 : vector<2x8x8xf32>
    %cst_56 = arith.constant dense<0xFF800000> : vector<2x8xf32>
    %425 = vector.multi_reduction <maximumf>, %424, %cst_56 [2] : vector<2x8x8xf32> to vector<2x8xf32>
    %426 = vector.shape_cast %425 : vector<2x8xf32> to vector<2x8x1xf32>
    %427 = vector.broadcast %426 : vector<2x8x1xf32> to vector<2x8x8xf32>
    %428 = arith.subf %424, %427 : vector<2x8x8xf32>
    %429 = math.exp %428 : vector<2x8x8xf32>
    %cst_57 = arith.constant dense<0.000000e+00> : vector<2x8xf32>
    %430 = vector.multi_reduction <add>, %429, %cst_57 [2] : vector<2x8x8xf32> to vector<2x8xf32>
    %431 = vector.shape_cast %430 : vector<2x8xf32> to vector<2x8x1xf32>
    %432 = tpu.reciprocal %431 : vector<2x8x1xf32> -> vector<2x8x1xf32>
    %433 = vector.broadcast %432 : vector<2x8x1xf32> to vector<2x8x8xf32>
    %434 = arith.mulf %429, %433 : vector<2x8x8xf32>
    %435 = arith.truncf %434 : vector<2x8x8xf32> to vector<2x8x8xbf16>
    %cst_58 = arith.constant dense<0.000000e+00> : vector<2x8x8xf32>
    %436 = tpu.matmul %435, %333, %cst_58 {dimension_numbers = #tpu.dot_dimension_numbers<[2], [1], [1], [2], [0, 0, 0, 1, 1, 2], [0], [0]>} : vector<2x8x8xbf16>, vector<2x8x8xbf16>, vector<2x8x8xf32> -> vector<2x8x8xf32>
    %c0_59 = arith.constant 0 : index
    %c0_60 = arith.constant 0 : index
    %c16 = arith.constant 16 : index
    %437 = vector.load %arg15[%c0_59, %c0_60, %c16] : memref<2x8x32xf32, #tpu.memory_space<vmem>>, vector<2x8x8xf32>
    tpu.vector_store %arg15[%c0_59, %c0_60, %c16], %436 {strides = array<i32>} : memref<2x8x32xf32, #tpu.memory_space<vmem>>, vector<2x8x8xf32>,
    %438 = vector.extract_strided_slice %16 {offsets = [0, 0, 24], sizes = [2, 8, 8], strides = [1, 1, 1]} : vector<2x8x32xf32> to vector<2x8x8xf32>
    %439 = arith.truncf %438 : vector<2x8x8xf32> to vector<2x8x8xbf16>
    %440 = vector.extract_strided_slice %19 {offsets = [0, 0, 24], sizes = [2, 8, 8], strides = [1, 1, 1]} : vector<2x8x32xbf16> to vector<2x8x8xbf16>
    %441 = vector.extract_strided_slice %22 {offsets = [0, 0, 24], sizes = [2, 8, 8], strides = [1, 1, 1]} : vector<2x8x32xbf16> to vector<2x8x8xbf16>
    %cst_61 = arith.constant dense<0.000000e+00> : vector<2x8x8xf32>
    %442 = tpu.matmul %439, %440, %cst_61 {dimension_numbers = #tpu.dot_dimension_numbers<[2], [2], [1], [1], [0, 0, 0, 1, 1, 1], [0], [0]>} : vector<2x8x8xbf16>, vector<2x8x8xbf16>, vector<2x8x8xf32> -> vector<2x8x8xf32>
    %443 = vector.extract_strided_slice %27 {offsets = [0, 0, 51], sizes = [2, 8, 17], strides = [1, 1, 1]} : vector<2x8x68xf32> to vector<2x8x17xf32>
    %444 = vector.extract_strided_slice %443 {offsets = [0, 0, 0], sizes = [2, 8, 1], strides = [1, 1, 1]} : vector<2x8x17xf32> to vector<2x8x1xf32>
    %445 = vector.broadcast %33 : vector<1x8x8xf32> to vector<2x8x8xf32>
    %446 = vector.broadcast %444 : vector<2x8x1xf32> to vector<2x8x8xf32>
    %447 = arith.mulf %445, %446 : vector<2x8x8xf32>
    %448 = vector.extract_strided_slice %443 {offsets = [0, 0, 1], sizes = [2, 8, 1], strides = [1, 1, 1]} : vector<2x8x17xf32> to vector<2x8x1xf32>
    %449 = vector.broadcast %38 : vector<1x8x8xf32> to vector<2x8x8xf32>
    %450 = vector.broadcast %448 : vector<2x8x1xf32> to vector<2x8x8xf32>
    %451 = arith.mulf %449, %450 : vector<2x8x8xf32>
    %452 = arith.addf %447, %451 : vector<2x8x8xf32>
    %453 = vector.extract_strided_slice %443 {offsets = [0, 0, 2], sizes = [2, 8, 1], strides = [1, 1, 1]} : vector<2x8x17xf32> to vector<2x8x1xf32>
    %454 = vector.broadcast %43 : vector<1x8x8xf32> to vector<2x8x8xf32>
    %455 = vector.broadcast %453 : vector<2x8x1xf32> to vector<2x8x8xf32>
    %456 = arith.mulf %454, %455 : vector<2x8x8xf32>
    %457 = arith.addf %452, %456 : vector<2x8x8xf32>
    %458 = vector.extract_strided_slice %443 {offsets = [0, 0, 3], sizes = [2, 8, 1], strides = [1, 1, 1]} : vector<2x8x17xf32> to vector<2x8x1xf32>
    %459 = vector.broadcast %48 : vector<1x8x8xf32> to vector<2x8x8xf32>
    %460 = vector.broadcast %458 : vector<2x8x1xf32> to vector<2x8x8xf32>
    %461 = arith.mulf %459, %460 : vector<2x8x8xf32>
    %462 = arith.addf %457, %461 : vector<2x8x8xf32>
    %463 = vector.extract_strided_slice %443 {offsets = [0, 0, 4], sizes = [2, 8, 1], strides = [1, 1, 1]} : vector<2x8x17xf32> to vector<2x8x1xf32>
    %464 = vector.broadcast %53 : vector<1x8x8xf32> to vector<2x8x8xf32>
    %465 = vector.broadcast %463 : vector<2x8x1xf32> to vector<2x8x8xf32>
    %466 = arith.mulf %464, %465 : vector<2x8x8xf32>
    %467 = arith.addf %462, %466 : vector<2x8x8xf32>
    %468 = vector.extract_strided_slice %443 {offsets = [0, 0, 5], sizes = [2, 8, 1], strides = [1, 1, 1]} : vector<2x8x17xf32> to vector<2x8x1xf32>
    %469 = vector.broadcast %58 : vector<1x8x8xf32> to vector<2x8x8xf32>
    %470 = vector.broadcast %468 : vector<2x8x1xf32> to vector<2x8x8xf32>
    %471 = arith.mulf %469, %470 : vector<2x8x8xf32>
    %472 = arith.addf %467, %471 : vector<2x8x8xf32>
    %473 = vector.extract_strided_slice %443 {offsets = [0, 0, 6], sizes = [2, 8, 1], strides = [1, 1, 1]} : vector<2x8x17xf32> to vector<2x8x1xf32>
    %474 = vector.broadcast %63 : vector<1x8x8xf32> to vector<2x8x8xf32>
    %475 = vector.broadcast %473 : vector<2x8x1xf32> to vector<2x8x8xf32>
    %476 = arith.mulf %474, %475 : vector<2x8x8xf32>
    %477 = arith.addf %472, %476 : vector<2x8x8xf32>
    %478 = vector.extract_strided_slice %443 {offsets = [0, 0, 7], sizes = [2, 8, 1], strides = [1, 1, 1]} : vector<2x8x17xf32> to vector<2x8x1xf32>
    %479 = vector.broadcast %68 : vector<1x8x8xf32> to vector<2x8x8xf32>
    %480 = vector.broadcast %478 : vector<2x8x1xf32> to vector<2x8x8xf32>
    %481 = arith.mulf %479, %480 : vector<2x8x8xf32>
    %482 = arith.addf %477, %481 : vector<2x8x8xf32>
    %483 = vector.extract_strided_slice %443 {offsets = [0, 0, 8], sizes = [2, 8, 1], strides = [1, 1, 1]} : vector<2x8x17xf32> to vector<2x8x1xf32>
    %484 = vector.broadcast %73 : vector<1x8x8xf32> to vector<2x8x8xf32>
    %485 = vector.broadcast %483 : vector<2x8x1xf32> to vector<2x8x8xf32>
    %486 = arith.mulf %484, %485 : vector<2x8x8xf32>
    %487 = arith.addf %482, %486 : vector<2x8x8xf32>
    %488 = vector.extract_strided_slice %443 {offsets = [0, 0, 9], sizes = [2, 8, 1], strides = [1, 1, 1]} : vector<2x8x17xf32> to vector<2x8x1xf32>
    %489 = vector.broadcast %78 : vector<1x8x8xf32> to vector<2x8x8xf32>
    %490 = vector.broadcast %488 : vector<2x8x1xf32> to vector<2x8x8xf32>
    %491 = arith.mulf %489, %490 : vector<2x8x8xf32>
    %492 = arith.addf %487, %491 : vector<2x8x8xf32>
    %493 = vector.extract_strided_slice %443 {offsets = [0, 0, 10], sizes = [2, 8, 1], strides = [1, 1, 1]} : vector<2x8x17xf32> to vector<2x8x1xf32>
    %494 = vector.broadcast %83 : vector<1x8x8xf32> to vector<2x8x8xf32>
    %495 = vector.broadcast %493 : vector<2x8x1xf32> to vector<2x8x8xf32>
    %496 = arith.mulf %494, %495 : vector<2x8x8xf32>
    %497 = arith.addf %492, %496 : vector<2x8x8xf32>
    %498 = vector.extract_strided_slice %443 {offsets = [0, 0, 11], sizes = [2, 8, 1], strides = [1, 1, 1]} : vector<2x8x17xf32> to vector<2x8x1xf32>
    %499 = vector.broadcast %88 : vector<1x8x8xf32> to vector<2x8x8xf32>
    %500 = vector.broadcast %498 : vector<2x8x1xf32> to vector<2x8x8xf32>
    %501 = arith.mulf %499, %500 : vector<2x8x8xf32>
    %502 = arith.addf %497, %501 : vector<2x8x8xf32>
    %503 = vector.extract_strided_slice %443 {offsets = [0, 0, 12], sizes = [2, 8, 1], strides = [1, 1, 1]} : vector<2x8x17xf32> to vector<2x8x1xf32>
    %504 = vector.broadcast %93 : vector<1x8x8xf32> to vector<2x8x8xf32>
    %505 = vector.broadcast %503 : vector<2x8x1xf32> to vector<2x8x8xf32>
    %506 = arith.mulf %504, %505 : vector<2x8x8xf32>
    %507 = arith.addf %502, %506 : vector<2x8x8xf32>
    %508 = vector.extract_strided_slice %443 {offsets = [0, 0, 13], sizes = [2, 8, 1], strides = [1, 1, 1]} : vector<2x8x17xf32> to vector<2x8x1xf32>
    %509 = vector.broadcast %98 : vector<1x8x8xf32> to vector<2x8x8xf32>
    %510 = vector.broadcast %508 : vector<2x8x1xf32> to vector<2x8x8xf32>
    %511 = arith.mulf %509, %510 : vector<2x8x8xf32>
    %512 = arith.addf %507, %511 : vector<2x8x8xf32>
    %513 = vector.extract_strided_slice %443 {offsets = [0, 0, 14], sizes = [2, 8, 1], strides = [1, 1, 1]} : vector<2x8x17xf32> to vector<2x8x1xf32>
    %514 = vector.broadcast %103 : vector<1x8x8xf32> to vector<2x8x8xf32>
    %515 = vector.broadcast %513 : vector<2x8x1xf32> to vector<2x8x8xf32>
    %516 = arith.mulf %514, %515 : vector<2x8x8xf32>
    %517 = arith.addf %512, %516 : vector<2x8x8xf32>
    %518 = vector.extract_strided_slice %443 {offsets = [0, 0, 15], sizes = [2, 8, 1], strides = [1, 1, 1]} : vector<2x8x17xf32> to vector<2x8x1xf32>
    %519 = vector.broadcast %108 : vector<1x8x8xf32> to vector<2x8x8xf32>
    %520 = vector.broadcast %518 : vector<2x8x1xf32> to vector<2x8x8xf32>
    %521 = arith.mulf %519, %520 : vector<2x8x8xf32>
    %522 = arith.addf %517, %521 : vector<2x8x8xf32>
    %523 = vector.extract_strided_slice %443 {offsets = [0, 0, 16], sizes = [2, 8, 1], strides = [1, 1, 1]} : vector<2x8x17xf32> to vector<2x8x1xf32>
    %524 = vector.broadcast %113 : vector<1x8x8xf32> to vector<2x8x8xf32>
    %525 = vector.broadcast %523 : vector<2x8x1xf32> to vector<2x8x8xf32>
    %526 = arith.mulf %524, %525 : vector<2x8x8xf32>
    %527 = arith.addf %522, %526 : vector<2x8x8xf32>
    %528 = arith.addf %442, %527 : vector<2x8x8xf32>
    %cst_62 = arith.constant 0.353553385 : f32
    %529 = vector.broadcast %cst_62 : f32 to vector<2x8x8xf32>
    %530 = arith.mulf %528, %529 : vector<2x8x8xf32>
    %531 = vector.broadcast %23 : vector<1x8x8xf32> to vector<2x8x8xf32>
    %532 = arith.addf %530, %531 : vector<2x8x8xf32>
    %cst_63 = arith.constant dense<0xFF800000> : vector<2x8xf32>
    %533 = vector.multi_reduction <maximumf>, %532, %cst_63 [2] : vector<2x8x8xf32> to vector<2x8xf32>
    %534 = vector.shape_cast %533 : vector<2x8xf32> to vector<2x8x1xf32>
    %535 = vector.broadcast %534 : vector<2x8x1xf32> to vector<2x8x8xf32>
    %536 = arith.subf %532, %535 : vector<2x8x8xf32>
    %537 = math.exp %536 : vector<2x8x8xf32>
    %cst_64 = arith.constant dense<0.000000e+00> : vector<2x8xf32>
    %538 = vector.multi_reduction <add>, %537, %cst_64 [2] : vector<2x8x8xf32> to vector<2x8xf32>
    %539 = vector.shape_cast %538 : vector<2x8xf32> to vector<2x8x1xf32>
    %540 = tpu.reciprocal %539 : vector<2x8x1xf32> -> vector<2x8x1xf32>
    %541 = vector.broadcast %540 : vector<2x8x1xf32> to vector<2x8x8xf32>
    %542 = arith.mulf %537, %541 : vector<2x8x8xf32>
    %543 = arith.truncf %542 : vector<2x8x8xf32> to vector<2x8x8xbf16>
    %cst_65 = arith.constant dense<0.000000e+00> : vector<2x8x8xf32>
    %544 = tpu.matmul %543, %441, %cst_65 {dimension_numbers = #tpu.dot_dimension_numbers<[2], [1], [1], [2], [0, 0, 0, 1, 1, 2], [0], [0]>} : vector<2x8x8xbf16>, vector<2x8x8xbf16>, vector<2x8x8xf32> -> vector<2x8x8xf32>
    %c0_66 = arith.constant 0 : index
    %c0_67 = arith.constant 0 : index
    %c24 = arith.constant 24 : index
    %545 = vector.load %arg15[%c0_66, %c0_67, %c24] : memref<2x8x32xf32, #tpu.memory_space<vmem>>, vector<2x8x8xf32>
    tpu.vector_store %arg15[%c0_66, %c0_67, %c24], %544 {strides = array<i32>} : memref<2x8x32xf32, #tpu.memory_space<vmem>>, vector<2x8x8xf32>,
    %c0_68 = arith.constant 0 : index
    %c0_69 = arith.constant 0 : index
    %c0_70 = arith.constant 0 : index
    %546 = vector.load %arg15[%c0_68, %c0_69, %c0_70] : memref<2x8x32xf32, #tpu.memory_space<vmem>>, vector<2x8x32xf32>
    %547 = vector.shape_cast %546 : vector<2x8x32xf32> to vector<16x32xf32>
    %548 = arith.truncf %547 : vector<16x32xf32> to vector<16x32xbf16>
    %c0_71 = arith.constant 0 : index
    %c0_72 = arith.constant 0 : index
    %549 = vector.load %arg10[%c0_71, %c0_72] : memref<32x32xbf16, #tpu.memory_space<vmem>>, vector<32x32xbf16>
    %cst_73 = arith.constant dense<0.000000e+00> : vector<16x32xf32>
    %550 = tpu.matmul %548, %549, %cst_73 {dimension_numbers = #tpu.dot_dimension_numbers<[1], [0], [0], [1], [0, 0, 1, 1], [], []>} : vector<16x32xbf16>, vector<32x32xbf16>, vector<16x32xf32> -> vector<16x32xf32>
    %c0_74 = arith.constant 0 : index
    %c0_75 = arith.constant 0 : index
    %551 = vector.load %arg11[%c0_74, %c0_75] : memref<1x32xf32, #tpu.memory_space<vmem>>, vector<1x32xf32>
    %552 = vector.broadcast %551 : vector<1x32xf32> to vector<16x32xf32>
    %553 = arith.addf %550, %552 : vector<16x32xf32>
    %554 = vector.shape_cast %553 : vector<16x32xf32> to vector<2x8x32xf32>
    %555 = arith.addf %554, %0 : vector<2x8x32xf32>
    %cst_76 = arith.constant dense<0.000000e+00> : vector<2x8xf32>
    %556 = vector.multi_reduction <add>, %555, %cst_76 [2] : vector<2x8x32xf32> to vector<2x8xf32>
    %557 = vector.shape_cast %556 : vector<2x8xf32> to vector<2x8x1xf32>
    %cst_77 = arith.constant 3.200000e+01 : f32
    %558 = vector.broadcast %cst_77 : f32 to vector<2x8x1xf32>
    %559 = arith.divf %557, %558 : vector<2x8x1xf32>
    %560 = vector.broadcast %559 : vector<2x8x1xf32> to vector<2x8x32xf32>
    %561 = arith.subf %555, %560 : vector<2x8x32xf32>
    %562 = arith.mulf %561, %561 : vector<2x8x32xf32>
    %cst_78 = arith.constant dense<0.000000e+00> : vector<2x8xf32>
    %563 = vector.multi_reduction <add>, %562, %cst_78 [2] : vector<2x8x32xf32> to vector<2x8xf32>
    %564 = vector.shape_cast %563 : vector<2x8xf32> to vector<2x8x1xf32>
    %cst_79 = arith.constant 3.200000e+01 : f32
    %565 = vector.broadcast %cst_79 : f32 to vector<2x8x1xf32>
    %566 = arith.divf %564, %565 : vector<2x8x1xf32>
    %567 = vector.broadcast %559 : vector<2x8x1xf32> to vector<2x8x32xf32>
    %568 = arith.subf %555, %567 : vector<2x8x32xf32>
    %cst_80 = arith.constant 9.99999974E-6 : f32
    %569 = vector.broadcast %cst_80 : f32 to vector<2x8x1xf32>
    %570 = arith.addf %566, %569 : vector<2x8x1xf32>
    %571 = math.rsqrt %570 : vector<2x8x1xf32>
    %572 = vector.broadcast %571 : vector<2x8x1xf32> to vector<2x8x32xf32>
    %573 = arith.mulf %568, %572 : vector<2x8x32xf32>
    %c0_81 = arith.constant 0 : index
    %c0_82 = arith.constant 0 : index
    %574 = vector.load %arg12[%c0_81, %c0_82] : memref<1x32xf32, #tpu.memory_space<vmem>>, vector<1x32xf32>
    %575 = vector.shape_cast %574 : vector<1x32xf32> to vector<1x1x32xf32>
    %576 = vector.broadcast %575 : vector<1x1x32xf32> to vector<2x8x32xf32>
    %577 = arith.mulf %573, %576 : vector<2x8x32xf32>
    %c0_83 = arith.constant 0 : index
    %c0_84 = arith.constant 0 : index
    %578 = vector.load %arg13[%c0_83, %c0_84] : memref<1x32xf32, #tpu.memory_space<vmem>>, vector<1x32xf32>
    %579 = vector.shape_cast %578 : vector<1x32xf32> to vector<1x1x32xf32>
    %580 = vector.broadcast %579 : vector<1x1x32xf32> to vector<2x8x32xf32>
    %581 = arith.addf %577, %580 : vector<2x8x32xf32>
    %c0_85 = arith.constant 0 : index
    %c0_86 = arith.constant 0 : index
    %c0_87 = arith.constant 0 : index
    %582 = vector.load %arg14[%c0_85, %c0_86, %c0_87] : memref<2x8x32xf32, #tpu.memory_space<vmem>>, vector<2x8x32xf32>
    tpu.vector_store %arg14[%c0_85, %c0_86, %c0_87], %581 {strides = array<i32>} : memref<2x8x32xf32, #tpu.memory_space<vmem>>, vector<2x8x32xf32>,
    return
  }
  func.func @transform_0(%arg0: i32) -> (i32, i32, i32) {
    %c0_i32 = arith.constant 0 : i32
    %c0_i32_0 = arith.constant 0 : i32
    %c0_i32_1 = arith.constant 0 : i32
    return %arg0, %c0_i32, %c0_i32_0 : i32, i32, i32
  }
  func.func @transform_1(%arg0: i32) -> (i32, i32, i32) {
    %c0_i32 = arith.constant 0 : i32
    %c0_i32_0 = arith.constant 0 : i32
    %c0_i32_1 = arith.constant 0 : i32
    return %arg0, %c0_i32, %c0_i32_0 : i32, i32, i32
  }
  func.func @transform_2(%arg0: i32) -> (i32, i32) {
    %c0_i32 = arith.constant 0 : i32
    %c0_i32_0 = arith.constant 0 : i32
    %c0_i32_1 = arith.constant 0 : i32
    return %c0_i32, %c0_i32_0 : i32, i32
  }
  func.func @transform_3(%arg0: i32) -> (i32, i32) {
    %c0_i32 = arith.constant 0 : i32
    %c0_i32_0 = arith.constant 0 : i32
    %c0_i32_1 = arith.constant 0 : i32
    return %c0_i32, %c0_i32_0 : i32, i32
  }
  func.func @transform_4(%arg0: i32) -> (i32, i32) {
    %c0_i32 = arith.constant 0 : i32
    %c0_i32_0 = arith.constant 0 : i32
    %c0_i32_1 = arith.constant 0 : i32
    return %c0_i32, %c0_i32_0 : i32, i32
  }
  func.func @transform_5(%arg0: i32) -> (i32, i32) {
    %c0_i32 = arith.constant 0 : i32
    %c0_i32_0 = arith.constant 0 : i32
    %c0_i32_1 = arith.constant 0 : i32
    return %c0_i32, %c0_i32_0 : i32, i32
  }
  func.func @transform_6(%arg0: i32) -> (i32, i32) {
    %c0_i32 = arith.constant 0 : i32
    %c0_i32_0 = arith.constant 0 : i32
    %c0_i32_1 = arith.constant 0 : i32
    return %c0_i32, %c0_i32_0 : i32, i32
  }
  func.func @transform_7(%arg0: i32) -> (i32, i32) {
    %c0_i32 = arith.constant 0 : i32
    %c0_i32_0 = arith.constant 0 : i32
    %c0_i32_1 = arith.constant 0 : i32
    return %c0_i32, %c0_i32_0 : i32, i32
  }
  func.func @transform_8(%arg0: i32) -> (i32, i32, i32) {
    %c0_i32 = arith.constant 0 : i32
    %c0_i32_0 = arith.constant 0 : i32
    %c0_i32_1 = arith.constant 0 : i32
    %c0_i32_2 = arith.constant 0 : i32
    return %c0_i32, %c0_i32_0, %c0_i32_1 : i32, i32, i32
  }
  func.func @transform_9(%arg0: i32) -> (i32, i32) {
    %c0_i32 = arith.constant 0 : i32
    %c0_i32_0 = arith.constant 0 : i32
    %c0_i32_1 = arith.constant 0 : i32
    return %c0_i32, %c0_i32_0 : i32, i32
  }
  func.func @transform_10(%arg0: i32) -> (i32, i32) {
    %c0_i32 = arith.constant 0 : i32
    %c0_i32_0 = arith.constant 0 : i32
    %c0_i32_1 = arith.constant 0 : i32
    return %c0_i32, %c0_i32_0 : i32, i32
  }
  func.func @transform_11(%arg0: i32) -> (i32, i32) {
    %c0_i32 = arith.constant 0 : i32
    %c0_i32_0 = arith.constant 0 : i32
    %c0_i32_1 = arith.constant 0 : i32
    return %c0_i32, %c0_i32_0 : i32, i32
  }
  func.func @transform_12(%arg0: i32) -> (i32, i32) {
    %c0_i32 = arith.constant 0 : i32
    %c0_i32_0 = arith.constant 0 : i32
    %c0_i32_1 = arith.constant 0 : i32
    return %c0_i32, %c0_i32_0 : i32, i32
  }
  func.func @transform_13(%arg0: i32) -> (i32, i32, i32) {
    %c0_i32 = arith.constant 0 : i32
    %c0_i32_0 = arith.constant 0 : i32
    %c0_i32_1 = arith.constant 0 : i32
    return %arg0, %c0_i32, %c0_i32_0 : i32, i32, i32
  }
}

</mosaic_0001>

<llo_original>
// kernel: tpu_custom_call.1
$region0: #{tpu_custom_call.1}
  #allocation0 [shape = 'u32[]', space=smem, size = 0x4, offset = 0x4, fixed_abs, tag = 'smem constant byte address 0x4 - core index']
  #allocation1 [shape = 'u32[144,128]{1,0:T(1,128)}', space=vmem, size = 0x12000, scoped, tag = 'internal scratch']
  #allocation2 [shape = 'f32[2,8,32]{2,1,0:T(8,128)}', space=vmem, size = 0x2000, scoped, tag = 'scratch operand']
  %s0 = inlined_call_operand.hbm [shape: f32[4,8,32], index: 0, kind: input, shape index: {}]
  %s1 = inlined_call_operand.hbm [shape: f32[4,8,32], index: 1, kind: input, shape index: {}]
  %s2 = inlined_call_operand.hbm [shape: bf16[32,32], index: 2, kind: input, shape index: {}]
  %s3 = inlined_call_operand.hbm [shape: f32[1,32], index: 3, kind: input, shape index: {}]
  %s4 = inlined_call_operand.hbm [shape: bf16[32,64], index: 4, kind: input, shape index: {}]
  %s5 = inlined_call_operand.hbm [shape: f32[1,64], index: 5, kind: input, shape index: {}]
  %s6 = inlined_call_operand.hbm [shape: bf16[32,68], index: 6, kind: input, shape index: {}]
  %s7 = inlined_call_operand.hbm [shape: f32[8,8], index: 7, kind: input, shape index: {}]
  %s8 = inlined_call_operand.hbm [shape: f32[1,8,8], index: 8, kind: input, shape index: {}]
  %s9 = inlined_call_operand.hbm [shape: bf16[32,32], index: 9, kind: input, shape index: {}]
  %s10 = inlined_call_operand.hbm [shape: f32[1,32], index: 10, kind: input, shape index: {}]
  %s11 = inlined_call_operand.hbm [shape: f32[1,32], index: 11, kind: input, shape index: {}]
  %s12 = inlined_call_operand.hbm [shape: f32[1,32], index: 12, kind: input, shape index: {}]
  %s13 = inlined_call_operand.hbm [shape: f32[4,8,32], index: 13, kind: output, shape index: {}]
  %s14 = sld [smem:[#allocation0]]
  $region137: #{tpu_custom_call.1} parent=0
    _
  %s16 = ssub.s32 1, %s14
  %s17 = scalar_select 0, %s16, %s14
  $region1: #{tpu_custom_call.1} parent=0
    #allocation3 [shape = 'u8[16384]{0}', space=vmem, size = 0x4000, scoped, tag = 'input window, operand 0']
    #allocation4 [shape = 's32[2]{0}', space=sflag, size = 0x8, scoped, tag = 'scoped memory for tpu_custom_call.1']
    #allocation5 [shape = 's32[2]{0}', space=sflag, size = 0x8, scoped, tag = 'scoped memory for tpu_custom_call.1']
    #allocation6 [shape = 'u8[16384]{0}', space=vmem, size = 0x4000, scoped, tag = 'input window, operand 1']
    #allocation7 [shape = 's32[2]{0}', space=sflag, size = 0x8, scoped, tag = 'scoped memory for tpu_custom_call.1']
    #allocation8 [shape = 'u8[8192]{0}', space=vmem, size = 0x2000, scoped, tag = 'input window, operand 2, single buffered']
    #allocation9 [shape = 'u8[512]{0}', space=vmem, size = 0x400, scoped, tag = 'input window, operand 3, single buffered']
    #allocation10 [shape = 's32[1]{0}', space=sflag, size = 0x4, scoped, tag = 'scoped memory for tpu_custom_call.1']
    #allocation11 [shape = 'u8[8192]{0}', space=vmem, size = 0x2000, scoped, tag = 'input window, operand 4, single buffered']
    #allocation12 [shape = 'u8[512]{0}', space=vmem, size = 0x400, scoped, tag = 'input window, operand 5, single buffered']
    #allocation13 [shape = 's32[1]{0}', space=sflag, size = 0x4, scoped, tag = 'scoped memory for tpu_custom_call.1']
    #allocation14 [shape = 'u8[8192]{0}', space=vmem, size = 0x2000, scoped, tag = 'input window, operand 6, single buffered']
    #allocation15 [shape = 'u8[4096]{0}', space=vmem, size = 0x1000, scoped, tag = 'input window, operand 7, single buffered']
    #allocation16 [shape = 's32[1]{0}', space=sflag, size = 0x4, scoped, tag = 'scoped memory for tpu_custom_call.1']
    #allocation17 [shape = 'u8[4096]{0}', space=vmem, size = 0x1000, scoped, tag = 'input window, operand 8, single buffered']
    #allocation18 [shape = 'u8[8192]{0}', space=vmem, size = 0x2000, scoped, tag = 'input window, operand 9, single buffered']
    #allocation19 [shape = 's32[1]{0}', space=sflag, size = 0x4, scoped, tag = 'scoped memory for tpu_custom_call.1']
    #allocation20 [shape = 'u8[512]{0}', space=vmem, size = 0x400, scoped, tag = 'input window, operand 10, single buffered']
    #allocation21 [shape = 'u8[512]{0}', space=vmem, size = 0x400, scoped, tag = 'input window, operand 11, single buffered']
    #allocation22 [shape = 's32[1]{0}', space=sflag, size = 0x4, scoped, tag = 'scoped memory for tpu_custom_call.1']
    #allocation23 [shape = 'u8[512]{0}', space=vmem, size = 0x400, scoped, tag = 'input window, operand 12, single buffered']
    #allocation24 [shape = 'u8[16384]{0}', space=vmem, size = 0x4000, scoped, tag = 'output window, operand 0']
    %18 = vsyncpa [#allocation4], 0
    %s19 = scalar_lea.sflag [#allocation4], 1
    %20 = vsyncpa %s19, 0
    %21 = vsyncpa [#allocation7], 0
    %s22 = scalar_lea.sflag [#allocation7], 1
    %23 = vsyncpa %s22, 0
    %24 = vsyncpa [#allocation10], 0
    %25 = vsyncpa [#allocation13], 0
    %26 = vsyncpa [#allocation16], 0
    %27 = vsyncpa [#allocation19], 0
    %28 = vsyncpa [#allocation22], 0
    %29 = vsyncpa [#allocation5], 0
    %s30 = scalar_lea.sflag [#allocation5], 1
    %31 = vsyncpa %s30, 0
    loop: start=0, step=1, limit=4
    $region2: #{tpu_custom_call.1} parent=1 // loop_pre_header
      _
    $region3: #{tpu_custom_call.1} parent=1 // loop_header
      %s33 = sphi 0, %s37
      %p34 = scmp.ge.s32.totalorder %s33, 4
      %s43 = sphi 0, %s45
      %s46 = sphi 0, %s43
      %s47 = sphi 0, %s46
      %s63 = sphi 0, %s47
      %s69 = sphi 0, %s71
      %s72 = sphi 0, %s69
      %s73 = sphi 0, %s72
      %s89 = sphi 0, %s73
      %s93 = sphi 0, %s93
      %s95 = sphi 0, %s93
      %s96 = sphi 0, %s95
      %s110 = sphi 0, %s96
      %s114 = sphi 0, %s114
      %s116 = sphi 0, %s114
      %s117 = sphi 0, %s116
      %s131 = sphi 0, %s117
      %s135 = sphi 0, %s135
      %s137 = sphi 0, %s135
      %s138 = sphi 0, %s137
      %s152 = sphi 0, %s138
      %s156 = sphi 0, %s156
      %s158 = sphi 0, %s156
      %s159 = sphi 0, %s158
      %s173 = sphi 0, %s159
      %s177 = sphi 0, %s177
      %s179 = sphi 0, %s177
      %s180 = sphi 0, %s179
      %s194 = sphi 0, %s180
      %s198 = sphi 0, %s198
      %s200 = sphi 0, %s198
      %s201 = sphi 0, %s200
      %s215 = sphi 0, %s201
      %s219 = sphi 0, %s219
      %s221 = sphi 0, %s219
      %s222 = sphi 0, %s221
      %s236 = sphi 0, %s222
      %s240 = sphi 0, %s240
      %s242 = sphi 0, %s240
      %s243 = sphi 0, %s242
      %s257 = sphi 0, %s243
      %s261 = sphi 0, %s261
      %s263 = sphi 0, %s261
      %s264 = sphi 0, %s263
      %s278 = sphi 0, %s264
      %s282 = sphi 0, %s282
      %s284 = sphi 0, %s282
      %s285 = sphi 0, %s284
      %s299 = sphi 0, %s285
      %s303 = sphi 0, %s303
      %s305 = sphi 0, %s303
      %s306 = sphi 0, %s305
      %s320 = sphi 0, %s306
      %s326 = sphi 0, %s328
      %s329 = sphi 0, %s326
      %s330 = sphi 0, %s329
      %s346 = sphi 0, %s330
    $region4: #{tpu_custom_call.1} parent=1 // loop_header_branch
      %36 = sbr.rel (%p34) target = $region8
    $region5: #{tpu_custom_call.1} parent=1 // loop_body
      %s38 = ssub.s32 %s33, 1
      %s39 = ssub.s32 %s33, 2
      %s40 = sadd.s32 %s33, 1
      %s41 = ssub.s32 %s33, %s40
      %p42 = scmp.eq.s32.totalorder %s41, 0
      %s44 = sadd.s32 %s43, 1
      %s45 = scalar_select %p42, %s43, %s44
      %p48 = pneg %p42
      %p49 = scmp.eq.s32.totalorder %s33, 1
      %p50 = por %p48, %p49
      %p51 = scmp.ne.s32.totalorder %s43, %s46
      %p52 = scmp.eq.s32.totalorder %s33, 0
      %p53 = por %p51, %p52
      %p54 = scmp.ne.s32.totalorder %s43, %s46
      %p55 = scmp.eq.s32.totalorder %s38, 1
      %p56 = por %p54, %p55
      %p57 = scmp.ne.s32.totalorder %s46, %s47
      %p58 = scmp.eq.s32.totalorder %s38, 0
      %p59 = por %p57, %p58
      %p60 = scmp.ne.s32.totalorder %s46, %s47
      %p61 = scmp.eq.s32.totalorder %s39, 1
      %p62 = por %p60, %p61
      %p64 = scmp.ne.s32.totalorder %s47, %s63
      %p65 = scmp.eq.s32.totalorder %s39, 0
      %p66 = por %p64, %p65
      %s67 = ssub.s32 %s33, %s40
      %p68 = scmp.eq.s32.totalorder %s67, 0
      %s70 = sadd.s32 %s69, 1
      %s71 = scalar_select %p68, %s69, %s70
      %p74 = pneg %p68
      %p75 = scmp.eq.s32.totalorder %s33, 1
      %p76 = por %p74, %p75
      %p77 = scmp.ne.s32.totalorder %s69, %s72
      %p78 = scmp.eq.s32.totalorder %s33, 0
      %p79 = por %p77, %p78
      %p80 = scmp.ne.s32.totalorder %s69, %s72
      %p81 = scmp.eq.s32.totalorder %s38, 1
      %p82 = por %p80, %p81
      %p83 = scmp.ne.s32.totalorder %s72, %s73
      %p84 = scmp.eq.s32.totalorder %s38, 0
      %p85 = por %p83, %p84
      %p86 = scmp.ne.s32.totalorder %s72, %s73
      %p87 = scmp.eq.s32.totalorder %s39, 1
      %p88 = por %p86, %p87
      %p90 = scmp.ne.s32.totalorder %s73, %s89
      %p91 = scmp.eq.s32.totalorder %s39, 0
      %p92 = por %p90, %p91
      %s94 = sadd.s32 %s93, 1
      %p97 = scmp.eq.s32.totalorder %s33, 1
      %p98 = scmp.ne.s32.totalorder %s93, %s95
      %p99 = scmp.eq.s32.totalorder %s33, 0
      %p100 = por %p98, %p99
      %p101 = scmp.ne.s32.totalorder %s93, %s95
      %p102 = scmp.eq.s32.totalorder %s38, 1
      %p103 = por %p101, %p102
      %p104 = scmp.ne.s32.totalorder %s95, %s96
      %p105 = scmp.eq.s32.totalorder %s38, 0
      %p106 = por %p104, %p105
      %p107 = scmp.ne.s32.totalorder %s95, %s96
      %p108 = scmp.eq.s32.totalorder %s39, 1
      %p109 = por %p107, %p108
      %p111 = scmp.ne.s32.totalorder %s96, %s110
      %p112 = scmp.eq.s32.totalorder %s39, 0
      %p113 = por %p111, %p112
      %s115 = sadd.s32 %s114, 1
      %p118 = scmp.eq.s32.totalorder %s33, 1
      %p119 = scmp.ne.s32.totalorder %s114, %s116
      %p120 = scmp.eq.s32.totalorder %s33, 0
      %p121 = por %p119, %p120
      %p122 = scmp.ne.s32.totalorder %s114, %s116
      %p123 = scmp.eq.s32.totalorder %s38, 1
      %p124 = por %p122, %p123
      %p125 = scmp.ne.s32.totalorder %s116, %s117
      %p126 = scmp.eq.s32.totalorder %s38, 0
      %p127 = por %p125, %p126
      %p128 = scmp.ne.s32.totalorder %s116, %s117
      %p129 = scmp.eq.s32.totalorder %s39, 1
      %p130 = por %p128, %p129
      %p132 = scmp.ne.s32.totalorder %s117, %s131
      %p133 = scmp.eq.s32.totalorder %s39, 0
      %p134 = por %p132, %p133
      %s136 = sadd.s32 %s135, 1
      %p139 = scmp.eq.s32.totalorder %s33, 1
      %p140 = scmp.ne.s32.totalorder %s135, %s137
      %p141 = scmp.eq.s32.totalorder %s33, 0
      %p142 = por %p140, %p141
      %p143 = scmp.ne.s32.totalorder %s135, %s137
      %p144 = scmp.eq.s32.totalorder %s38, 1
      %p145 = por %p143, %p144
      %p146 = scmp.ne.s32.totalorder %s137, %s138
      %p147 = scmp.eq.s32.totalorder %s38, 0
      %p148 = por %p146, %p147
      %p149 = scmp.ne.s32.totalorder %s137, %s138
      %p150 = scmp.eq.s32.totalorder %s39, 1
      %p151 = por %p149, %p150
      %p153 = scmp.ne.s32.totalorder %s138, %s152
      %p154 = scmp.eq.s32.totalorder %s39, 0
      %p155 = por %p153, %p154
      %s157 = sadd.s32 %s156, 1
      %p160 = scmp.eq.s32.totalorder %s33, 1
      %p161 = scmp.ne.s32.totalorder %s156, %s158
      %p162 = scmp.eq.s32.totalorder %s33, 0
      %p163 = por %p161, %p162
      %p164 = scmp.ne.s32.totalorder %s156, %s158
      %p165 = scmp.eq.s32.totalorder %s38, 1
      %p166 = por %p164, %p165
      %p167 = scmp.ne.s32.totalorder %s158, %s159
      %p168 = scmp.eq.s32.totalorder %s38, 0
      %p169 = por %p167, %p168
      %p170 = scmp.ne.s32.totalorder %s158, %s159
      %p171 = scmp.eq.s32.totalorder %s39, 1
      %p172 = por %p170, %p171
      %p174 = scmp.ne.s32.totalorder %s159, %s173
      %p175 = scmp.eq.s32.totalorder %s39, 0
      %p176 = por %p174, %p175
      %s178 = sadd.s32 %s177, 1
      %p181 = scmp.eq.s32.totalorder %s33, 1
      %p182 = scmp.ne.s32.totalorder %s177, %s179
      %p183 = scmp.eq.s32.totalorder %s33, 0
      %p184 = por %p182, %p183
      %p185 = scmp.ne.s32.totalorder %s177, %s179
      %p186 = scmp.eq.s32.totalorder %s38, 1
      %p187 = por %p185, %p186
      %p188 = scmp.ne.s32.totalorder %s179, %s180
      %p189 = scmp.eq.s32.totalorder %s38, 0
      %p190 = por %p188, %p189
      %p191 = scmp.ne.s32.totalorder %s179, %s180
      %p192 = scmp.eq.s32.totalorder %s39, 1
      %p193 = por %p191, %p192
      %p195 = scmp.ne.s32.totalorder %s180, %s194
      %p196 = scmp.eq.s32.totalorder %s39, 0
      %p197 = por %p195, %p196
      %s199 = sadd.s32 %s198, 1
      %p202 = scmp.eq.s32.totalorder %s33, 1
      %p203 = scmp.ne.s32.totalorder %s198, %s200
      %p204 = scmp.eq.s32.totalorder %s33, 0
      %p205 = por %p203, %p204
      %p206 = scmp.ne.s32.totalorder %s198, %s200
      %p207 = scmp.eq.s32.totalorder %s38, 1
      %p208 = por %p206, %p207
      %p209 = scmp.ne.s32.totalorder %s200, %s201
      %p210 = scmp.eq.s32.totalorder %s38, 0
      %p211 = por %p209, %p210
      %p212 = scmp.ne.s32.totalorder %s200, %s201
      %p213 = scmp.eq.s32.totalorder %s39, 1
      %p214 = por %p212, %p213
      %p216 = scmp.ne.s32.totalorder %s201, %s215
      %p217 = scmp.eq.s32.totalorder %s39, 0
      %p218 = por %p216, %p217
      %s220 = sadd.s32 %s219, 1
      %p223 = scmp.eq.s32.totalorder %s33, 1
      %p224 = scmp.ne.s32.totalorder %s219, %s221
      %p225 = scmp.eq.s32.totalorder %s33, 0
      %p226 = por %p224, %p225
      %p227 = scmp.ne.s32.totalorder %s219, %s221
      %p228 = scmp.eq.s32.totalorder %s38, 1
      %p229 = por %p227, %p228
      %p230 = scmp.ne.s32.totalorder %s221, %s222
      %p231 = scmp.eq.s32.totalorder %s38, 0
      %p232 = por %p230, %p231
      %p233 = scmp.ne.s32.totalorder %s221, %s222
      %p234 = scmp.eq.s32.totalorder %s39, 1
      %p235 = por %p233, %p234
      %p237 = scmp.ne.s32.totalorder %s222, %s236
      %p238 = scmp.eq.s32.totalorder %s39, 0
      %p239 = por %p237, %p238
      %s241 = sadd.s32 %s240, 1
      %p244 = scmp.eq.s32.totalorder %s33, 1
      %p245 = scmp.ne.s32.totalorder %s240, %s242
      %p246 = scmp.eq.s32.totalorder %s33, 0
      %p247 = por %p245, %p246
      %p248 = scmp.ne.s32.totalorder %s240, %s242
      %p249 = scmp.eq.s32.totalorder %s38, 1
      %p250 = por %p248, %p249
      %p251 = scmp.ne.s32.totalorder %s242, %s243
      %p252 = scmp.eq.s32.totalorder %s38, 0
      %p253 = por %p251, %p252
      %p254 = scmp.ne.s32.totalorder %s242, %s243
      %p255 = scmp.eq.s32.totalorder %s39, 1
      %p256 = por %p254, %p255
      %p258 = scmp.ne.s32.totalorder %s243, %s257
      %p259 = scmp.eq.s32.totalorder %s39, 0
      %p260 = por %p258, %p259
      %s262 = sadd.s32 %s261, 1
      %p265 = scmp.eq.s32.totalorder %s33, 1
      %p266 = scmp.ne.s32.totalorder %s261, %s263
      %p267 = scmp.eq.s32.totalorder %s33, 0
      %p268 = por %p266, %p267
      %p269 = scmp.ne.s32.totalorder %s261, %s263
      %p270 = scmp.eq.s32.totalorder %s38, 1
      %p271 = por %p269, %p270
      %p272 = scmp.ne.s32.totalorder %s263, %s264
      %p273 = scmp.eq.s32.totalorder %s38, 0
      %p274 = por %p272, %p273
      %p275 = scmp.ne.s32.totalorder %s263, %s264
      %p276 = scmp.eq.s32.totalorder %s39, 1
      %p277 = por %p275, %p276
      %p279 = scmp.ne.s32.totalorder %s264, %s278
      %p280 = scmp.eq.s32.totalorder %s39, 0
      %p281 = por %p279, %p280
      %s283 = sadd.s32 %s282, 1
      %p286 = scmp.eq.s32.totalorder %s33, 1
      %p287 = scmp.ne.s32.totalorder %s282, %s284
      %p288 = scmp.eq.s32.totalorder %s33, 0
      %p289 = por %p287, %p288
      %p290 = scmp.ne.s32.totalorder %s282, %s284
      %p291 = scmp.eq.s32.totalorder %s38, 1
      %p292 = por %p290, %p291
      %p293 = scmp.ne.s32.totalorder %s284, %s285
      %p294 = scmp.eq.s32.totalorder %s38, 0
      %p295 = por %p293, %p294
      %p296 = scmp.ne.s32.totalorder %s284, %s285
      %p297 = scmp.eq.s32.totalorder %s39, 1
      %p298 = por %p296, %p297
      %p300 = scmp.ne.s32.totalorder %s285, %s299
      %p301 = scmp.eq.s32.totalorder %s39, 0
      %p302 = por %p300, %p301
      %s304 = sadd.s32 %s303, 1
      %p307 = scmp.eq.s32.totalorder %s33, 1
      %p308 = scmp.ne.s32.totalorder %s303, %s305
      %p309 = scmp.eq.s32.totalorder %s33, 0
      %p310 = por %p308, %p309
      %p311 = scmp.ne.s32.totalorder %s303, %s305
      %p312 = scmp.eq.s32.totalorder %s38, 1
      %p313 = por %p311, %p312
      %p314 = scmp.ne.s32.totalorder %s305, %s306
      %p315 = scmp.eq.s32.totalorder %s38, 0
      %p316 = por %p314, %p315
      %p317 = scmp.ne.s32.totalorder %s305, %s306
      %p318 = scmp.eq.s32.totalorder %s39, 1
      %p319 = por %p317, %p318
      %p321 = scmp.ne.s32.totalorder %s306, %s320
      %p322 = scmp.eq.s32.totalorder %s39, 0
      %p323 = por %p321, %p322
      %s324 = ssub.s32 %s33, %s40
      %p325 = scmp.eq.s32.totalorder %s324, 0
      %s327 = sadd.s32 %s326, 1
      %s328 = scalar_select %p325, %s326, %s327
      %p331 = pneg %p325
      %p332 = scmp.eq.s32.totalorder %s33, 1
      %p333 = por %p331, %p332
      %p334 = scmp.ne.s32.totalorder %s326, %s329
      %p335 = scmp.eq.s32.totalorder %s33, 0
      %p336 = por %p334, %p335
      %p337 = scmp.ne.s32.totalorder %s326, %s329
      %p338 = scmp.eq.s32.totalorder %s38, 1
      %p339 = por %p337, %p338
      %p340 = scmp.ne.s32.totalorder %s329, %s330
      %p341 = scmp.eq.s32.totalorder %s38, 0
      %p342 = por %p340, %p341
      %p343 = scmp.ne.s32.totalorder %s329, %s330
      %p344 = scmp.eq.s32.totalorder %s39, 1
      %p345 = por %p343, %p344
      %p347 = scmp.ne.s32.totalorder %s330, %s346
      %p348 = scmp.eq.s32.totalorder %s39, 0
      %p349 = por %p347, %p348
      %p350 = scmp.le.s32.totalorder 1, %s33
      %p351 = scmp.lt.s32.totalorder %s33, 3
      %p352 = pnand %p350, %p351
      %p353 = pneg %p352
      // Predicated region
      $region9: #{tpu_custom_call.1} parent=5 // pred_check
        _
      $region10: #{tpu_custom_call.1} parent=5 // pred_check_branch
        %355 = sbr.rel (%p352) target = $region12
      $region11: #{tpu_custom_call.1} parent=5 // pred_region
        %s356 = ssub.s32 %s33, 1
        // Predicated region
        $region13: #{tpu_custom_call.1} parent=11 // pred_check
          %p357 = pneg %p106
        $region14: #{tpu_custom_call.1} parent=11 // pred_check_branch
          %359 = sbr.rel (%p357) target = $region16
        $region15: #{tpu_custom_call.1} parent=11 // pred_region
          %s361 = ssub.s32 256, 256
          %362 = vsyncadd [#allocation7], %s361
          %s363 = sshll.u32 [#allocation8], 4
          %s364 = int_to_ptr.vmem [resolvable:$true] %s363
          %369 = dma.hbm_to_vmem [thread:$0]  %s2, 256, %s364, [#allocation7], 64, 64, 4
        $region16: #{tpu_custom_call.1} parent=11 // pred_fallthru
          _
        // Predicated region
        $region17: #{tpu_custom_call.1} parent=11 // pred_check
          %p370 = pneg %p127
        $region18: #{tpu_custom_call.1} parent=11 // pred_check_branch
          %372 = sbr.rel (%p370) target = $region20
        $region19: #{tpu_custom_call.1} parent=11 // pred_region
          %s374 = ssub.s32 16, 16
          %375 = vsyncadd [#allocation10], %s374
          %s377 = sshll.u32 [#allocation9], 4
          %s378 = int_to_ptr.vmem [resolvable:$true] %s377
          %380 = dma.hbm_to_vmem [thread:$0]  %s3, 16, %s378, [#allocation10]
        $region20: #{tpu_custom_call.1} parent=11 // pred_fallthru
          _
        // Predicated region
        $region21: #{tpu_custom_call.1} parent=11 // pred_check
          %p381 = pneg %p148
        $region22: #{tpu_custom_call.1} parent=11 // pred_check_branch
          %383 = sbr.rel (%p381) target = $region24
        $region23: #{tpu_custom_call.1} parent=11 // pred_region
          %s385 = ssub.s32 256, 256
          %386 = vsyncadd [#allocation10], %s385
          %s387 = sshll.u32 [#allocation11], 4
          %s388 = int_to_ptr.vmem [resolvable:$true] %s387
          %393 = dma.hbm_to_vmem [thread:$0]  %s4, 256, %s388, [#allocation10], 64, 64, 4
        $region24: #{tpu_custom_call.1} parent=11 // pred_fallthru
          _
        // Predicated region
        $region25: #{tpu_custom_call.1} parent=11 // pred_check
          %p394 = pneg %p169
        $region26: #{tpu_custom_call.1} parent=11 // pred_check_branch
          %396 = sbr.rel (%p394) target = $region28
        $region27: #{tpu_custom_call.1} parent=11 // pred_region
          %s398 = ssub.s32 16, 16
          %399 = vsyncadd [#allocation13], %s398
          %s401 = sshll.u32 [#allocation12], 4
          %s402 = int_to_ptr.vmem [resolvable:$true] %s401
          %404 = dma.hbm_to_vmem [thread:$0]  %s5, 16, %s402, [#allocation13]
        $region28: #{tpu_custom_call.1} parent=11 // pred_fallthru
          _
        // Predicated region
        $region29: #{tpu_custom_call.1} parent=11 // pred_check
          %p405 = pneg %p190
        $region30: #{tpu_custom_call.1} parent=11 // pred_check_branch
          %407 = sbr.rel (%p405) target = $region32
        $region31: #{tpu_custom_call.1} parent=11 // pred_region
          %s409 = ssub.s32 256, 256
          %410 = vsyncadd [#allocation13], %s409
          %s411 = sshll.u32 [#allocation14], 4
          %s412 = int_to_ptr.vmem [resolvable:$true] %s411
          %417 = dma.hbm_to_vmem [thread:$0]  %s6, 256, %s412, [#allocation13], 64, 64, 4
        $region32: #{tpu_custom_call.1} parent=11 // pred_fallthru
          _
        // Predicated region
        $region33: #{tpu_custom_call.1} parent=11 // pred_check
          %p418 = pneg %p211
        $region34: #{tpu_custom_call.1} parent=11 // pred_check_branch
          %420 = sbr.rel (%p418) target = $region36
        $region35: #{tpu_custom_call.1} parent=11 // pred_region
          %s422 = ssub.s32 128, 128
          %423 = vsyncadd [#allocation16], %s422
          %s425 = sshll.u32 [#allocation15], 4
          %s426 = int_to_ptr.vmem [resolvable:$true] %s425
          %428 = dma.hbm_to_vmem [thread:$0]  %s7, 128, %s426, [#allocation16]
        $region36: #{tpu_custom_call.1} parent=11 // pred_fallthru
          _
        // Predicated region
        $region37: #{tpu_custom_call.1} parent=11 // pred_check
          %p429 = pneg %p232
        $region38: #{tpu_custom_call.1} parent=11 // pred_check_branch
          %431 = sbr.rel (%p429) target = $region40
        $region39: #{tpu_custom_call.1} parent=11 // pred_region
          %s433 = ssub.s32 128, 128
          %434 = vsyncadd [#allocation16], %s433
          %s436 = sshll.u32 [#allocation17], 4
          %s437 = int_to_ptr.vmem [resolvable:$true] %s436
          %439 = dma.hbm_to_vmem [thread:$0]  %s8, 128, %s437, [#allocation16]
        $region40: #{tpu_custom_call.1} parent=11 // pred_fallthru
          _
        // Predicated region
        $region41: #{tpu_custom_call.1} parent=11 // pred_check
          %p440 = pneg %p253
        $region42: #{tpu_custom_call.1} parent=11 // pred_check_branch
          %442 = sbr.rel (%p440) target = $region44
        $region43: #{tpu_custom_call.1} parent=11 // pred_region
          %s444 = ssub.s32 256, 256
          %445 = vsyncadd [#allocation19], %s444
          %s446 = sshll.u32 [#allocation18], 4
          %s447 = int_to_ptr.vmem [resolvable:$true] %s446
          %452 = dma.hbm_to_vmem [thread:$0]  %s9, 256, %s447, [#allocation19], 64, 64, 4
        $region44: #{tpu_custom_call.1} parent=11 // pred_fallthru
          _
        // Predicated region
        $region45: #{tpu_custom_call.1} parent=11 // pred_check
          %p453 = pneg %p274
        $region46: #{tpu_custom_call.1} parent=11 // pred_check_branch
          %455 = sbr.rel (%p453) target = $region48
        $region47: #{tpu_custom_call.1} parent=11 // pred_region
          %s457 = ssub.s32 16, 16
          %458 = vsyncadd [#allocation19], %s457
          %s460 = sshll.u32 [#allocation20], 4
          %s461 = int_to_ptr.vmem [resolvable:$true] %s460
          %463 = dma.hbm_to_vmem [thread:$0]  %s10, 16, %s461, [#allocation19]
        $region48: #{tpu_custom_call.1} parent=11 // pred_fallthru
          _
        // Predicated region
        $region49: #{tpu_custom_call.1} parent=11 // pred_check
          %p464 = pneg %p295
        $region50: #{tpu_custom_call.1} parent=11 // pred_check_branch
          %466 = sbr.rel (%p464) target = $region52
        $region51: #{tpu_custom_call.1} parent=11 // pred_region
          %s468 = ssub.s32 16, 16
          %469 = vsyncadd [#allocation22], %s468
          %s471 = sshll.u32 [#allocation21], 4
          %s472 = int_to_ptr.vmem [resolvable:$true] %s471
          %474 = dma.hbm_to_vmem [thread:$0]  %s11, 16, %s472, [#allocation22]
        $region52: #{tpu_custom_call.1} parent=11 // pred_fallthru
          _
        // Predicated region
        $region53: #{tpu_custom_call.1} parent=11 // pred_check
          %p475 = pneg %p316
        $region54: #{tpu_custom_call.1} parent=11 // pred_check_branch
          %477 = sbr.rel (%p475) target = $region56
        $region55: #{tpu_custom_call.1} parent=11 // pred_region
          %s479 = ssub.s32 16, 16
          %480 = vsyncadd [#allocation22], %s479
          %s482 = sshll.u32 [#allocation23], 4
          %s483 = int_to_ptr.vmem [resolvable:$true] %s482
          %485 = dma.hbm_to_vmem [thread:$0]  %s12, 16, %s483, [#allocation22]
        $region56: #{tpu_custom_call.1} parent=11 // pred_fallthru
          _
      $region12: #{tpu_custom_call.1} parent=5 // pred_fallthru
        _
      %p486 = scmp.lt.s32.totalorder %s33, 2
      // Predicated region
      $region57: #{tpu_custom_call.1} parent=5 // pred_check
        %p487 = pneg %p486
      $region58: #{tpu_custom_call.1} parent=5 // pred_check_branch
        %489 = sbr.rel (%p487) target = $region60
      $region59: #{tpu_custom_call.1} parent=5 // pred_region
        // Predicated region
        $region61: #{tpu_custom_call.1} parent=59 // pred_check
          %p490 = pneg %p53
        $region62: #{tpu_custom_call.1} parent=59 // pred_check_branch
          %492 = sbr.rel (%p490) target = $region64
        $region63: #{tpu_custom_call.1} parent=59 // pred_region
          %s493 = sand.u32 %s43, 1
          %s494 = scalar_lea.sflag [#allocation4], %s493
          %s495 = sand.u32 %s43, 1
          %s496 = smul.addr %s495, 16
          %s497 = scalar_lea.vmem [#allocation3], %s496
          %s498 = smul.u32 2, %s33
          %s500 = ssub.s32 256, 256
          %501 = vsyncadd %s494, %s500
          %s502 = smul.addr %s498, 128
          %s503 = scalar_lea.hbm %s0, %s502
          %s504 = sshll.u32 %s497, 4
          %s505 = int_to_ptr.vmem [resolvable:$true] %s504
          %510 = dma.hbm_to_vmem [thread:$0]  %s503, 256, %s505, %s494, 128, 128, 8
        $region64: #{tpu_custom_call.1} parent=59 // pred_fallthru
          _
        // Predicated region
        $region65: #{tpu_custom_call.1} parent=59 // pred_check
          %p511 = pneg %p79
        $region66: #{tpu_custom_call.1} parent=59 // pred_check_branch
          %513 = sbr.rel (%p511) target = $region68
        $region67: #{tpu_custom_call.1} parent=59 // pred_region
          %s514 = sand.u32 %s33, 1
          %s515 = scalar_lea.sflag [#allocation7], %s514
          %s516 = sand.u32 %s69, 1
          %s517 = smul.addr %s516, 16
          %s518 = scalar_lea.vmem [#allocation6], %s517
          %s519 = smul.u32 2, %s33
          %s521 = ssub.s32 256, 256
          %522 = vsyncadd %s515, %s521
          %s523 = smul.addr %s519, 128
          %s524 = scalar_lea.hbm %s1, %s523
          %s525 = sshll.u32 %s518, 4
          %s526 = int_to_ptr.vmem [resolvable:$true] %s525
          %531 = dma.hbm_to_vmem [thread:$0]  %s524, 256, %s526, %s515, 128, 128, 8
        $region68: #{tpu_custom_call.1} parent=59 // pred_fallthru
          _
      $region60: #{tpu_custom_call.1} parent=5 // pred_fallthru
        _
      %p532 = scmp.le.s32.totalorder 1, %s33
      %p533 = scmp.lt.s32.totalorder %s33, 3
      %p534 = pnand %p532, %p533
      %p535 = pneg %p534
      // Predicated region
      $region69: #{tpu_custom_call.1} parent=5 // pred_check
        _
      $region70: #{tpu_custom_call.1} parent=5 // pred_check_branch
        %537 = sbr.rel (%p534) target = $region72
      $region71: #{tpu_custom_call.1} parent=5 // pred_region
        %s538 = ssub.s32 %s33, 1
        %s539 = sand.u32 %s46, 1
        %s540 = scalar_lea.sflag [#allocation4], %s539
        %s541 = sand.u32 %s46, 1
        %s542 = smul.addr %s541, 16
        %s543 = scalar_lea.vmem [#allocation3], %s542
        // Predicated region
        $region73: #{tpu_custom_call.1} parent=71 // pred_check
          %p544 = pneg %p59
        $region74: #{tpu_custom_call.1} parent=71 // pred_check_branch
          %546 = sbr.rel (%p544) target = $region76
        $region75: #{tpu_custom_call.1} parent=71 // pred_region
          %547 = dma.done %s540, 256
        $region76: #{tpu_custom_call.1} parent=71 // pred_fallthru
          _
        %s548 = sand.u32 %s38, 1
        %s549 = scalar_lea.sflag [#allocation7], %s548
        %s550 = sand.u32 %s72, 1
        %s551 = smul.addr %s550, 16
        %s552 = scalar_lea.vmem [#allocation6], %s551
        // Predicated region
        $region77: #{tpu_custom_call.1} parent=71 // pred_check
          %p553 = pneg %p85
        $region78: #{tpu_custom_call.1} parent=71 // pred_check_branch
          %555 = sbr.rel (%p553) target = $region80
        $region79: #{tpu_custom_call.1} parent=71 // pred_region
          %556 = dma.done %s549, 256
        $region80: #{tpu_custom_call.1} parent=71 // pred_fallthru
          _
        // Predicated region
        $region81: #{tpu_custom_call.1} parent=71 // pred_check
          %p557 = pneg %p106
        $region82: #{tpu_custom_call.1} parent=71 // pred_check_branch
          %559 = sbr.rel (%p557) target = $region84
        $region83: #{tpu_custom_call.1} parent=71 // pred_region
          %560 = dma.done [#allocation7], 256
        $region84: #{tpu_custom_call.1} parent=71 // pred_fallthru
          _
        // Predicated region
        $region85: #{tpu_custom_call.1} parent=71 // pred_check
          %p561 = pneg %p127
        $region86: #{tpu_custom_call.1} parent=71 // pred_check_branch
          %563 = sbr.rel (%p561) target = $region88
        $region87: #{tpu_custom_call.1} parent=71 // pred_region
          %564 = dma.done [#allocation10], 16
        $region88: #{tpu_custom_call.1} parent=71 // pred_fallthru
          _
        // Predicated region
        $region89: #{tpu_custom_call.1} parent=71 // pred_check
          %p565 = pneg %p148
        $region90: #{tpu_custom_call.1} parent=71 // pred_check_branch
          %567 = sbr.rel (%p565) target = $region92
        $region91: #{tpu_custom_call.1} parent=71 // pred_region
          %568 = dma.done [#allocation10], 256
        $region92: #{tpu_custom_call.1} parent=71 // pred_fallthru
          _
        // Predicated region
        $region93: #{tpu_custom_call.1} parent=71 // pred_check
          %p569 = pneg %p169
        $region94: #{tpu_custom_call.1} parent=71 // pred_check_branch
          %571 = sbr.rel (%p569) target = $region96
        $region95: #{tpu_custom_call.1} parent=71 // pred_region
          %572 = dma.done [#allocation13], 16
        $region96: #{tpu_custom_call.1} parent=71 // pred_fallthru
          _
        // Predicated region
        $region97: #{tpu_custom_call.1} parent=71 // pred_check
          %p573 = pneg %p190
        $region98: #{tpu_custom_call.1} parent=71 // pred_check_branch
          %575 = sbr.rel (%p573) target = $region100
        $region99: #{tpu_custom_call.1} parent=71 // pred_region
          %576 = dma.done [#allocation13], 256
        $region100: #{tpu_custom_call.1} parent=71 // pred_fallthru
          _
        // Predicated region
        $region101: #{tpu_custom_call.1} parent=71 // pred_check
          %p577 = pneg %p211
        $region102: #{tpu_custom_call.1} parent=71 // pred_check_branch
          %579 = sbr.rel (%p577) target = $region104
        $region103: #{tpu_custom_call.1} parent=71 // pred_region
          %580 = dma.done [#allocation16], 128
        $region104: #{tpu_custom_call.1} parent=71 // pred_fallthru
          _
        // Predicated region
        $region105: #{tpu_custom_call.1} parent=71 // pred_check
          %p581 = pneg %p232
        $region106: #{tpu_custom_call.1} parent=71 // pred_check_branch
          %583 = sbr.rel (%p581) target = $region108
        $region107: #{tpu_custom_call.1} parent=71 // pred_region
          %584 = dma.done [#allocation16], 128
        $region108: #{tpu_custom_call.1} parent=71 // pred_fallthru
          _
        // Predicated region
        $region109: #{tpu_custom_call.1} parent=71 // pred_check
          %p585 = pneg %p253
        $region110: #{tpu_custom_call.1} parent=71 // pred_check_branch
          %587 = sbr.rel (%p585) target = $region112
        $region111: #{tpu_custom_call.1} parent=71 // pred_region
          %588 = dma.done [#allocation19], 256
        $region112: #{tpu_custom_call.1} parent=71 // pred_fallthru
          _
        // Predicated region
        $region113: #{tpu_custom_call.1} parent=71 // pred_check
          %p589 = pneg %p274
        $region114: #{tpu_custom_call.1} parent=71 // pred_check_branch
          %591 = sbr.rel (%p589) target = $region116
        $region115: #{tpu_custom_call.1} parent=71 // pred_region
          %592 = dma.done [#allocation19], 16
        $region116: #{tpu_custom_call.1} parent=71 // pred_fallthru
          _
        // Predicated region
        $region117: #{tpu_custom_call.1} parent=71 // pred_check
          %p593 = pneg %p295
        $region118: #{tpu_custom_call.1} parent=71 // pred_check_branch
          %595 = sbr.rel (%p593) target = $region120
        $region119: #{tpu_custom_call.1} parent=71 // pred_region
          %596 = dma.done [#allocation22], 16
        $region120: #{tpu_custom_call.1} parent=71 // pred_fallthru
          _
        // Predicated region
        $region121: #{tpu_custom_call.1} parent=71 // pred_check
          %p597 = pneg %p316
        $region122: #{tpu_custom_call.1} parent=71 // pred_check_branch
          %599 = sbr.rel (%p597) target = $region124
        $region123: #{tpu_custom_call.1} parent=71 // pred_region
          %600 = dma.done [#allocation22], 16
        $region124: #{tpu_custom_call.1} parent=71 // pred_fallthru
          _
        %s601 = sand.u32 %s46, 1
        %s602 = scalar_lea.sflag [#allocation4], %s601
        %s603 = sand.u32 %s46, 1
        %s604 = smul.addr %s603, 16
        %s605 = scalar_lea.vmem [#allocation3], %s604
        %p606 = pneg %p59
        %p607 = pneg %p56
        %s608 = sand.u32 %s38, 1
        %s609 = scalar_lea.sflag [#allocation7], %s608
        %s610 = sand.u32 %s72, 1
        %s611 = smul.addr %s610, 16
        %s612 = scalar_lea.vmem [#allocation6], %s611
        %p613 = pneg %p85
        %p614 = pneg %p82
        %p615 = pneg %p106
        %p616 = pneg %p103
        %p617 = pneg %p127
        %p618 = pneg %p124
        %p619 = pneg %p148
        %p620 = pneg %p145
        %p621 = pneg %p169
        %p622 = pneg %p166
        %p623 = pneg %p190
        %p624 = pneg %p187
        %p625 = pneg %p211
        %p626 = pneg %p208
        %p627 = pneg %p232
        %p628 = pneg %p229
        %p629 = pneg %p253
        %p630 = pneg %p250
        %p631 = pneg %p274
        %p632 = pneg %p271
        %p633 = pneg %p295
        %p634 = pneg %p292
        %p635 = pneg %p316
        %p636 = pneg %p313
        %p637 = pneg %p342
        %p638 = pneg %p339
        %s639 = sand.u32 %s329, 1
        %s640 = scalar_lea.sflag [#allocation5], %s639
        %s641 = sand.u32 %s329, 1
        %s642 = smul.addr %s641, 16
        %s643 = scalar_lea.vmem [#allocation24], %s642
        %s644 = smul.u32 2, %s38
        %s645 = smul.u32 2, %s38
        %s646 = smul.u32 2, %s38
        %v648 = vld [vmem:[%s543] sm:$0xff]
        %v649 = vld [vmem:[%s543 + $0x8] sm:$0xff]
        %v650 = vpack.c.bf16 %v649, %v648
        %v651 = vld [vmem:[%s552] sm:$0xff]
        %v652 = vld [vmem:[%s552 + $0x8] sm:$0xff]
        %v653 = vpack.c.bf16 %v652, %v651
        %v654 = vld [vmem:[#allocation8] sm:$0xf]
        %v655 = vld [vmem:[#allocation8 + $0x4] sm:$0xf]
        %v656 = vld [vmem:[#allocation8 + $0x8] sm:$0xf]
        %v657 = vld [vmem:[#allocation8 + $0xc] sm:$0xf]
        %v658 = vld [vmem:[#allocation9] sm:$0x1]
        %v660 = vlaneseq
        %v661 = vshrl.u32 %v660, 7
        %v662 = vsub.s32 0, %v661
        %v663 = vrot.slane %v658, %v662
        %v669 = vunpack.c.l.b16 %v654
        %v670 = vunpack.c.l.b16 %v655
        %v671 = vunpack.c.l.b16 %v656
        %v672 = vunpack.c.l.b16 %v657
        %v673 = vpack.c.b16 %v670, %v669
        %v674 = vpack.c.b16 %v672, %v671
        %vm677 = vcmask 261120
        %v679 = vsel %vm677, %v650, 0
        %681 = vmatprep.subr.bf16.mxu0 0
        %682 = vmatpush1.bf16.msra.mxu0 %v673
        %683 = vmatprep.subr.bf16.mxu0 0
        %684 = vmatpush1.bf16.msra.mxu0 %v674
        %685 = vmatprep.subr.bf16.mxu0 0
        %686 = vmatpush1.bf16.msra.mxu0 0
        %687 = vmatprep.subr.bf16.mxu0 0
        %688 = vmatpush1.bf16.msra.mxu0 0
        %689 = vmatprep.subr.bf16.mxu0 0
        %690 = vmatpush1.bf16.msra.mxu0 0
        %691 = vmatprep.subr.bf16.mxu0 0
        %692 = vmatpush1.bf16.msra.mxu0 0
        %693 = vmatprep.subr.bf16.mxu0 0
        %694 = vmatpush1.bf16.msra.mxu0 0
        %695 = vmatprep.subr.bf16.mxu0 0
        %696 = vmatpush1.bf16.msra.mxu0 0
        %697 = vmatprep.subr.bf16.mxu0 0
        %698 = vmatpush1.bf16.msra.mxu0 0
        %699 = vmatprep.subr.bf16.mxu0 0
        %700 = vmatpush1.bf16.msra.mxu0 0
        %701 = vmatprep.subr.bf16.mxu0 0
        %702 = vmatpush1.bf16.msra.mxu0 0
        %703 = vmatprep.subr.bf16.mxu0 0
        %704 = vmatpush1.bf16.msra.mxu0 0
        %705 = vmatprep.subr.bf16.mxu0 0
        %706 = vmatpush1.bf16.msra.mxu0 0
        %707 = vmatprep.subr.bf16.mxu0 0
        %708 = vmatpush1.bf16.msra.mxu0 0
        %709 = vmatprep.subr.bf16.mxu0 0
        %710 = vmatpush1.bf16.msra.mxu0 0
        %711 = vmatprep.subr.bf16.mxu0 0
        %712 = vmatpush1.bf16.msra.mxu0 0
        %713 = vmatprep.mubr.bf16.mxu0 0
        %714 = vmatmul.mubr.bf16.gmra.mrb[0].mxu0 %v679
        %v715 = vpop.f32.mrb[0].mxu0
        %v716 = vadd.f32 %v663, %v715
        %v717 = vpop.f32.mrb[0].mxu0
        %v718 = vpop.f32.mrb[0].mxu0
        %v719 = vadd.f32 %v663, %v718
        %v720 = vpop.f32.mrb[0].mxu0
        %721 = vdwg.mxu0
        %v722 = vld [vmem:[#allocation11] sm:$0xf]
        %v723 = vld [vmem:[#allocation11 + $0x4] sm:$0xf]
        %v724 = vld [vmem:[#allocation11 + $0x8] sm:$0xf]
        %v725 = vld [vmem:[#allocation11 + $0xc] sm:$0xf]
        %v726 = vld [vmem:[#allocation12] sm:$0x1]
        %v728 = vlaneseq
        %v729 = vshrl.u32 %v728, 7
        %v730 = vsub.s32 0, %v729
        %v731 = vrot.slane %v726, %v730
        %v737 = vunpack.c.l.b16 %v722
        %v738 = vunpack.c.l.b16 %v723
        %v739 = vunpack.c.l.b16 %v724
        %v740 = vunpack.c.l.b16 %v725
        %v741 = vpack.c.b16 %v738, %v737
        %v742 = vpack.c.b16 %v740, %v739
        %v746 = vsel %vm677, %v653, 0
        %748 = vmatprep.subr.bf16.mxu0 0
        %749 = vmatpush1.bf16.msra.mxu0 %v741
        %750 = vmatprep.subr.bf16.mxu0 0
        %751 = vmatpush1.bf16.msra.mxu0 %v742
        %752 = vmatprep.subr.bf16.mxu0 0
        %753 = vmatpush1.bf16.msra.mxu0 0
        %754 = vmatprep.subr.bf16.mxu0 0
        %755 = vmatpush1.bf16.msra.mxu0 0
        %756 = vmatprep.subr.bf16.mxu0 0
        %757 = vmatpush1.bf16.msra.mxu0 0
        %758 = vmatprep.subr.bf16.mxu0 0
        %759 = vmatpush1.bf16.msra.mxu0 0
        %760 = vmatprep.subr.bf16.mxu0 0
        %761 = vmatpush1.bf16.msra.mxu0 0
        %762 = vmatprep.subr.bf16.mxu0 0
        %763 = vmatpush1.bf16.msra.mxu0 0
        %764 = vmatprep.subr.bf16.mxu0 0
        %765 = vmatpush1.bf16.msra.mxu0 0
        %766 = vmatprep.subr.bf16.mxu0 0
        %767 = vmatpush1.bf16.msra.mxu0 0
        %768 = vmatprep.subr.bf16.mxu0 0
        %769 = vmatpush1.bf16.msra.mxu0 0
        %770 = vmatprep.subr.bf16.mxu0 0
        %771 = vmatpush1.bf16.msra.mxu0 0
        %772 = vmatprep.subr.bf16.mxu0 0
        %773 = vmatpush1.bf16.msra.mxu0 0
        %774 = vmatprep.subr.bf16.mxu0 0
        %775 = vmatpush1.bf16.msra.mxu0 0
        %776 = vmatprep.subr.bf16.mxu0 0
        %777 = vmatpush1.bf16.msra.mxu0 0
        %778 = vmatprep.subr.bf16.mxu0 0
        %779 = vmatpush1.bf16.msra.mxu0 0
        %780 = vmatprep.mubr.bf16.mxu0 0
        %781 = vmatmul.mubr.bf16.gmra.mrb[0].mxu0 %v746
        %v782 = vpop.f32.mrb[0].mxu0
        %v783 = vadd.f32 %v731, %v782
        %v784 = vpop.f32.mrb[0].mxu0
        %v785 = vpop.f32.mrb[0].mxu0
        %v786 = vadd.f32 %v731, %v785
        %v787 = vpop.f32.mrb[0].mxu0
        %788 = vdwg.mxu0
        %v789 = vpack.c.bf16 %v783, %v783
        %v790 = vpack.c.bf16 %v786, %v786
        %v791 = vld [vmem:[#allocation17] sm:$0xff]
        %v792 = vpack.c.bf16 %v719, %v716
        %v793 = vld [vmem:[#allocation14] sm:$0xf]
        %v794 = vld [vmem:[#allocation14 + $0x4] sm:$0xf]
        %v795 = vld [vmem:[#allocation14 + $0x8] sm:$0xf]
        %v796 = vld [vmem:[#allocation14 + $0xc] sm:$0xf]
        %v801 = vunpack.c.l.b16 %v793
        %v802 = vunpack.c.l.b16 %v794
        %v803 = vunpack.c.l.b16 %v795
        %v804 = vunpack.c.l.b16 %v796
        %v805 = vpack.c.b16 %v802, %v801
        %v806 = vpack.c.b16 %v804, %v803
        %v810 = vsel %vm677, %v792, 0
        %812 = vmatprep.subr.bf16.mxu0 0
        %813 = vmatpush1.bf16.msra.mxu0 %v805
        %814 = vmatprep.subr.bf16.mxu0 0
        %815 = vmatpush1.bf16.msra.mxu0 %v806
        %816 = vmatprep.subr.bf16.mxu0 0
        %817 = vmatpush1.bf16.msra.mxu0 0
        %818 = vmatprep.subr.bf16.mxu0 0
        %819 = vmatpush1.bf16.msra.mxu0 0
        %820 = vmatprep.subr.bf16.mxu0 0
        %821 = vmatpush1.bf16.msra.mxu0 0
        %822 = vmatprep.subr.bf16.mxu0 0
        %823 = vmatpush1.bf16.msra.mxu0 0
        %824 = vmatprep.subr.bf16.mxu0 0
        %825 = vmatpush1.bf16.msra.mxu0 0
        %826 = vmatprep.subr.bf16.mxu0 0
        %827 = vmatpush1.bf16.msra.mxu0 0
        %828 = vmatprep.subr.bf16.mxu0 0
        %829 = vmatpush1.bf16.msra.mxu0 0
        %830 = vmatprep.subr.bf16.mxu0 0
        %831 = vmatpush1.bf16.msra.mxu0 0
        %832 = vmatprep.subr.bf16.mxu0 0
        %833 = vmatpush1.bf16.msra.mxu0 0
        %834 = vmatprep.subr.bf16.mxu0 0
        %835 = vmatpush1.bf16.msra.mxu0 0
        %836 = vmatprep.subr.bf16.mxu0 0
        %837 = vmatpush1.bf16.msra.mxu0 0
        %838 = vmatprep.subr.bf16.mxu0 0
        %839 = vmatpush1.bf16.msra.mxu0 0
        %840 = vmatprep.subr.bf16.mxu0 0
        %841 = vmatpush1.bf16.msra.mxu0 0
        %842 = vmatprep.subr.bf16.mxu0 0
        %843 = vmatpush1.bf16.msra.mxu0 0
        %844 = vmatprep.mubr.bf16.mxu0 0
        %845 = vmatmul.mubr.bf16.gmra.mrb[0].mxu0 %v810
        %v846 = vpop.f32.mrb[0].mxu0
        %v847 = vadd.f32 0.0, %v846
        %v848 = vpop.f32.mrb[0].mxu0
        %v849 = vpop.f32.mrb[0].mxu0
        %v850 = vadd.f32 0.0, %v849
        %v851 = vpop.f32.mrb[0].mxu0
        %852 = vdwg.mxu0
        %v853 = vld [vmem:[#allocation15] sm:$0xff]
        %vm854 = vcmp.eq.f32.partialorder %v853, 0.0
        %v855 = vsel %vm854, 1, 0
        %v856 = vcvt.s32.f32 %v855
        %vm857 = vcmp.eq.f32.partialorder %v853, 1.0
        %v858 = vsel %vm857, 1, 0
        %v859 = vcvt.s32.f32 %v858
        %vm860 = vcmp.eq.f32.partialorder %v853, 2.0
        %v861 = vsel %vm860, 1, 0
        %v862 = vcvt.s32.f32 %v861
        %vm863 = vcmp.eq.f32.partialorder %v853, 3.0
        %v864 = vsel %vm863, 1, 0
        %v865 = vcvt.s32.f32 %v864
        %vm866 = vcmp.eq.f32.partialorder %v853, 4.0
        %v867 = vsel %vm866, 1, 0
        %v868 = vcvt.s32.f32 %v867
        %vm869 = vcmp.eq.f32.partialorder %v853, 5.0
        %v870 = vsel %vm869, 1, 0
        %v871 = vcvt.s32.f32 %v870
        %vm872 = vcmp.eq.f32.partialorder %v853, 6.0
        %v873 = vsel %vm872, 1, 0
        %v874 = vcvt.s32.f32 %v873
        %vm875 = vcmp.eq.f32.partialorder %v853, 7.0
        %v876 = vsel %vm875, 1, 0
        %v877 = vcvt.s32.f32 %v876
        %vm878 = vcmp.eq.f32.partialorder %v853, 8.0
        %v879 = vsel %vm878, 1, 0
        %v880 = vcvt.s32.f32 %v879
        %vm881 = vcmp.eq.f32.partialorder %v853, 9.0
        %v882 = vsel %vm881, 1, 0
        %v883 = vcvt.s32.f32 %v882
        %vm884 = vcmp.eq.f32.partialorder %v853, 10.0
        %v885 = vsel %vm884, 1, 0
        %v886 = vcvt.s32.f32 %v885
        %vm887 = vcmp.eq.f32.partialorder %v853, 11.0
        %v888 = vsel %vm887, 1, 0
        %v889 = vcvt.s32.f32 %v888
        %vm890 = vcmp.eq.f32.partialorder %v853, 12.0
        %v891 = vsel %vm890, 1, 0
        %v892 = vcvt.s32.f32 %v891
        %vm893 = vcmp.eq.f32.partialorder %v853, 13.0
        %v894 = vsel %vm893, 1, 0
        %v895 = vcvt.s32.f32 %v894
        %vm896 = vcmp.eq.f32.partialorder %v853, 14.0
        %v897 = vsel %vm896, 1, 0
        %v898 = vcvt.s32.f32 %v897
        %vm899 = vcmp.eq.f32.partialorder %v853, 15.0
        %v900 = vsel %vm899, 1, 0
        %v901 = vcvt.s32.f32 %v900
        %vm902 = vcmp.eq.f32.partialorder %v853, 16.0
        %v903 = vsel %vm902, 1, 0
        %v904 = vcvt.s32.f32 %v903
        %v905 = vpack.c.bf16 %v716, %v716
        %v906 = vpack.c.bf16 %v719, %v719
        %908 = vset.pattern.permute.xlu0 0
        %909 = vperm.xlu0 %908, %v847
        %v910 = vpop.permute.xlu0 %909
        %913 = vset.pattern.permute.xlu0 0
        %914 = vperm.xlu0 %913, %v850
        %v915 = vpop.permute.xlu0 %914
        %v917 = vmul.f32 %v856, %v910
        %v918 = vmul.f32 %v856, %v915
        %919 = vset.pattern.permute.xlu0 1
        %920 = vperm.xlu0 %919, %v847
        %v921 = vpop.permute.xlu0 %920
        %923 = vset.pattern.permute.xlu0 1
        %924 = vperm.xlu0 %923, %v850
        %v925 = vpop.permute.xlu0 %924
        %v927 = vmul.f32 %v859, %v921
        %v928 = vmul.f32 %v859, %v925
        %v929 = vadd.f32 %v917, %v927
        %v930 = vadd.f32 %v918, %v928
        %931 = vset.pattern.permute.xlu0 2
        %932 = vperm.xlu0 %931, %v847
        %v933 = vpop.permute.xlu0 %932
        %935 = vset.pattern.permute.xlu0 2
        %936 = vperm.xlu0 %935, %v850
        %v937 = vpop.permute.xlu0 %936
        %v939 = vmul.f32 %v862, %v933
        %v940 = vmul.f32 %v862, %v937
        %v941 = vadd.f32 %v929, %v939
        %v942 = vadd.f32 %v930, %v940
        %943 = vset.pattern.permute.xlu0 3
        %944 = vperm.xlu0 %943, %v847
        %v945 = vpop.permute.xlu0 %944
        %947 = vset.pattern.permute.xlu0 3
        %948 = vperm.xlu0 %947, %v850
        %v949 = vpop.permute.xlu0 %948
        %v951 = vmul.f32 %v865, %v945
        %v952 = vmul.f32 %v865, %v949
        %v953 = vadd.f32 %v941, %v951
        %v954 = vadd.f32 %v942, %v952
        %955 = vset.pattern.permute.xlu0 4
        %956 = vperm.xlu0 %955, %v847
        %v957 = vpop.permute.xlu0 %956
        %959 = vset.pattern.permute.xlu0 4
        %960 = vperm.xlu0 %959, %v850
        %v961 = vpop.permute.xlu0 %960
        %v963 = vmul.f32 %v868, %v957
        %v964 = vmul.f32 %v868, %v961
        %v965 = vadd.f32 %v953, %v963
        %v966 = vadd.f32 %v954, %v964
        %967 = vset.pattern.permute.xlu0 5
        %968 = vperm.xlu0 %967, %v847
        %v969 = vpop.permute.xlu0 %968
        %971 = vset.pattern.permute.xlu0 5
        %972 = vperm.xlu0 %971, %v850
        %v973 = vpop.permute.xlu0 %972
        %v975 = vmul.f32 %v871, %v969
        %v976 = vmul.f32 %v871, %v973
        %v977 = vadd.f32 %v965, %v975
        %v978 = vadd.f32 %v966, %v976
        %979 = vset.pattern.permute.xlu0 6
        %980 = vperm.xlu0 %979, %v847
        %v981 = vpop.permute.xlu0 %980
        %983 = vset.pattern.permute.xlu0 6
        %984 = vperm.xlu0 %983, %v850
        %v985 = vpop.permute.xlu0 %984
        %v987 = vmul.f32 %v874, %v981
        %v988 = vmul.f32 %v874, %v985
        %v989 = vadd.f32 %v977, %v987
        %v990 = vadd.f32 %v978, %v988
        %991 = vset.pattern.permute.xlu0 7
        %992 = vperm.xlu0 %991, %v847
        %v993 = vpop.permute.xlu0 %992
        %995 = vset.pattern.permute.xlu0 7
        %996 = vperm.xlu0 %995, %v850
        %v997 = vpop.permute.xlu0 %996
        %v999 = vmul.f32 %v877, %v993
        %v1000 = vmul.f32 %v877, %v997
        %v1001 = vadd.f32 %v989, %v999
        %v1002 = vadd.f32 %v990, %v1000
        %1003 = vset.pattern.permute.xlu0 8
        %1004 = vperm.xlu0 %1003, %v847
        %v1005 = vpop.permute.xlu0 %1004
        %1007 = vset.pattern.permute.xlu0 8
        %1008 = vperm.xlu0 %1007, %v850
        %v1009 = vpop.permute.xlu0 %1008
        %v1011 = vmul.f32 %v880, %v1005
        %v1012 = vmul.f32 %v880, %v1009
        %v1013 = vadd.f32 %v1001, %v1011
        %v1014 = vadd.f32 %v1002, %v1012
        %1015 = vset.pattern.permute.xlu0 9
        %1016 = vperm.xlu0 %1015, %v847
        %v1017 = vpop.permute.xlu0 %1016
        %1019 = vset.pattern.permute.xlu0 9
        %1020 = vperm.xlu0 %1019, %v850
        %v1021 = vpop.permute.xlu0 %1020
        %v1023 = vmul.f32 %v883, %v1017
        %v1024 = vmul.f32 %v883, %v1021
        %v1025 = vadd.f32 %v1013, %v1023
        %v1026 = vadd.f32 %v1014, %v1024
        %1027 = vset.pattern.permute.xlu0 10
        %1028 = vperm.xlu0 %1027, %v847
        %v1029 = vpop.permute.xlu0 %1028
        %1031 = vset.pattern.permute.xlu0 10
        %1032 = vperm.xlu0 %1031, %v850
        %v1033 = vpop.permute.xlu0 %1032
        %v1035 = vmul.f32 %v886, %v1029
        %v1036 = vmul.f32 %v886, %v1033
        %v1037 = vadd.f32 %v1025, %v1035
        %v1038 = vadd.f32 %v1026, %v1036
        %1039 = vset.pattern.permute.xlu0 11
        %1040 = vperm.xlu0 %1039, %v847
        %v1041 = vpop.permute.xlu0 %1040
        %1043 = vset.pattern.permute.xlu0 11
        %1044 = vperm.xlu0 %1043, %v850
        %v1045 = vpop.permute.xlu0 %1044
        %v1047 = vmul.f32 %v889, %v1041
        %v1048 = vmul.f32 %v889, %v1045
        %v1049 = vadd.f32 %v1037, %v1047
        %v1050 = vadd.f32 %v1038, %v1048
        %1051 = vset.pattern.permute.xlu0 12
        %1052 = vperm.xlu0 %1051, %v847
        %v1053 = vpop.permute.xlu0 %1052
        %1055 = vset.pattern.permute.xlu0 12
        %1056 = vperm.xlu0 %1055, %v850
        %v1057 = vpop.permute.xlu0 %1056
        %v1059 = vmul.f32 %v892, %v1053
        %v1060 = vmul.f32 %v892, %v1057
        %v1061 = vadd.f32 %v1049, %v1059
        %v1062 = vadd.f32 %v1050, %v1060
        %1063 = vset.pattern.permute.xlu0 13
        %1064 = vperm.xlu0 %1063, %v847
        %v1065 = vpop.permute.xlu0 %1064
        %1067 = vset.pattern.permute.xlu0 13
        %1068 = vperm.xlu0 %1067, %v850
        %v1069 = vpop.permute.xlu0 %1068
        %v1071 = vmul.f32 %v895, %v1065
        %v1072 = vmul.f32 %v895, %v1069
        %v1073 = vadd.f32 %v1061, %v1071
        %v1074 = vadd.f32 %v1062, %v1072
        %1075 = vset.pattern.permute.xlu0 14
        %1076 = vperm.xlu0 %1075, %v847
        %v1077 = vpop.permute.xlu0 %1076
        %1079 = vset.pattern.permute.xlu0 14
        %1080 = vperm.xlu0 %1079, %v850
        %v1081 = vpop.permute.xlu0 %1080
        %v1083 = vmul.f32 %v898, %v1077
        %v1084 = vmul.f32 %v898, %v1081
        %v1085 = vadd.f32 %v1073, %v1083
        %v1086 = vadd.f32 %v1074, %v1084
        %1087 = vset.pattern.permute.xlu0 15
        %1088 = vperm.xlu0 %1087, %v847
        %v1089 = vpop.permute.xlu0 %1088
        %1091 = vset.pattern.permute.xlu0 15
        %1092 = vperm.xlu0 %1091, %v850
        %v1093 = vpop.permute.xlu0 %1092
        %v1095 = vmul.f32 %v901, %v1089
        %v1096 = vmul.f32 %v901, %v1093
        %v1097 = vadd.f32 %v1085, %v1095
        %v1098 = vadd.f32 %v1086, %v1096
        %1099 = vset.pattern.permute.xlu0 16
        %1100 = vperm.xlu0 %1099, %v847
        %v1101 = vpop.permute.xlu0 %1100
        %1103 = vset.pattern.permute.xlu0 16
        %1104 = vperm.xlu0 %1103, %v850
        %v1105 = vpop.permute.xlu0 %1104
        %v1107 = vmul.f32 %v904, %v1101
        %v1108 = vmul.f32 %v904, %v1105
        %v1109 = vadd.f32 %v1097, %v1107
        %v1110 = vadd.f32 %v1098, %v1108
        %vm1111 = vcmask 64512
        %v1113 = vsel %vm1111, %v905, 0
        %v1116 = vsel %vm1111, %v789, 0
        %1118 = vmatprep.subr.bf16.mxu0 0
        %1119 = vmatpush1.bf16.xpose.msra.mxu0 %v1116
        %1120 = vmatprep.subr.bf16.mxu0 0
        %1121 = vmatpush1.bf16.xpose.msra.mxu0 0
        %1122 = vmatprep.subr.bf16.mxu0 0
        %1123 = vmatpush1.bf16.xpose.msra.mxu0 0
        %1124 = vmatprep.subr.bf16.mxu0 0
        %1125 = vmatpush1.bf16.xpose.msra.mxu0 0
        %1126 = vmatprep.subr.bf16.mxu0 0
        %1127 = vmatpush1.bf16.xpose.msra.mxu0 0
        %1128 = vmatprep.subr.bf16.mxu0 0
        %1129 = vmatpush1.bf16.xpose.msra.mxu0 0
        %1130 = vmatprep.subr.bf16.mxu0 0
        %1131 = vmatpush1.bf16.xpose.msra.mxu0 0
        %1132 = vmatprep.subr.bf16.mxu0 0
        %1133 = vmatpush1.bf16.xpose.msra.mxu0 0
        %1134 = vmatprep.subr.bf16.mxu0 0
        %1135 = vmatpush1.bf16.xpose.msra.mxu0 0
        %1136 = vmatprep.subr.bf16.mxu0 0
        %1137 = vmatpush1.bf16.xpose.msra.mxu0 0
        %1138 = vmatprep.subr.bf16.mxu0 0
        %1139 = vmatpush1.bf16.xpose.msra.mxu0 0
        %1140 = vmatprep.subr.bf16.mxu0 0
        %1141 = vmatpush1.bf16.xpose.msra.mxu0 0
        %1142 = vmatprep.subr.bf16.mxu0 0
        %1143 = vmatpush1.bf16.xpose.msra.mxu0 0
        %1144 = vmatprep.subr.bf16.mxu0 0
        %1145 = vmatpush1.bf16.xpose.msra.mxu0 0
        %1146 = vmatprep.subr.bf16.mxu0 0
        %1147 = vmatpush1.bf16.xpose.msra.mxu0 0
        %1148 = vmatprep.subr.bf16.mxu0 0
        %1149 = vmatpush1.bf16.xpose.msra.mxu0 0
        %1150 = vmatprep.mubr.bf16.mxu0 0
        %1151 = vmatmul.mubr.bf16.gmra.mrb[0].mxu0 %v1113
        %v1152 = vpop.f32.mrb[0].mxu0
        %v1153 = vadd.f32 %v1109, %v1152
        %v1154 = vpop.f32.mrb[0].mxu0
        %v1155 = vpop.f32.mrb[0].mxu0
        %v1156 = vpop.f32.mrb[0].mxu0
        %1157 = vdwg.mxu0
        %v1159 = vsel %vm1111, %v906, 0
        %v1162 = vsel %vm1111, %v790, 0
        %1164 = vmatprep.subr.bf16.mxu0 0
        %1165 = vmatpush1.bf16.xpose.msra.mxu0 %v1162
        %1166 = vmatprep.subr.bf16.mxu0 0
        %1167 = vmatpush1.bf16.xpose.msra.mxu0 0
        %1168 = vmatprep.subr.bf16.mxu0 0
        %1169 = vmatpush1.bf16.xpose.msra.mxu0 0
        %1170 = vmatprep.subr.bf16.mxu0 0
        %1171 = vmatpush1.bf16.xpose.msra.mxu0 0
        %1172 = vmatprep.subr.bf16.mxu0 0
        %1173 = vmatpush1.bf16.xpose.msra.mxu0 0
        %1174 = vmatprep.subr.bf16.mxu0 0
        %1175 = vmatpush1.bf16.xpose.msra.mxu0 0
        %1176 = vmatprep.subr.bf16.mxu0 0
        %1177 = vmatpush1.bf16.xpose.msra.mxu0 0
        %1178 = vmatprep.subr.bf16.mxu0 0
        %1179 = vmatpush1.bf16.xpose.msra.mxu0 0
        %1180 = vmatprep.subr.bf16.mxu0 0
        %1181 = vmatpush1.bf16.xpose.msra.mxu0 0
        %1182 = vmatprep.subr.bf16.mxu0 0
        %1183 = vmatpush1.bf16.xpose.msra.mxu0 0
        %1184 = vmatprep.subr.bf16.mxu0 0
        %1185 = vmatpush1.bf16.xpose.msra.mxu0 0
        %1186 = vmatprep.subr.bf16.mxu0 0
        %1187 = vmatpush1.bf16.xpose.msra.mxu0 0
        %1188 = vmatprep.subr.bf16.mxu0 0
        %1189 = vmatpush1.bf16.xpose.msra.mxu0 0
        %1190 = vmatprep.subr.bf16.mxu0 0
        %1191 = vmatpush1.bf16.xpose.msra.mxu0 0
        %1192 = vmatprep.subr.bf16.mxu0 0
        %1193 = vmatpush1.bf16.xpose.msra.mxu0 0
        %1194 = vmatprep.subr.bf16.mxu0 0
        %1195 = vmatpush1.bf16.xpose.msra.mxu0 0
        %1196 = vmatprep.mubr.bf16.mxu0 0
        %1197 = vmatmul.mubr.bf16.gmra.mrb[0].mxu0 %v1159
        %v1198 = vpop.f32.mrb[0].mxu0
        %v1199 = vadd.f32 %v1110, %v1198
        %v1200 = vpop.f32.mrb[0].mxu0
        %v1201 = vpop.f32.mrb[0].mxu0
        %v1202 = vpop.f32.mrb[0].mxu0
        %1203 = vdwg.mxu0
        %v1204 = vmul.f32 %v1153, 0.35355338
        %v1205 = vmul.f32 %v1199, 0.35355338
        %v1206 = vadd.f32 %v1204, %v791
        %v1207 = vadd.f32 %v1205, %v791
        %v1208 = vsel %vm1111, %v1206, -inf
        %1209 = vmax.xlane.f32.xlu0 %v1208
        %v1210 = vpop.xlane.xlu0 %1209
        %v1211 = vsel %vm1111, %v1207, -inf
        %1212 = vmax.xlane.f32.xlu0 %v1211
        %v1213 = vpop.xlane.xlu0 %1212
        %v1214 = vsub.f32 %v1206, %v1210
        %v1215 = vsub.f32 %v1207, %v1213
        %v1216 = vmul.f32 %v1214, 1.442695
        %v1217 = vpow.pop %v1216
        %v1218 = vmul.f32 %v1215, 1.442695
        %v1219 = vpow.pop %v1218
        %v1220 = vsel %vm1111, %v1217, 0.0
        %1221 = vadd.xlane.f32.xlu0 %v1220
        %v1222 = vpop.xlane.xlu0 %1221
        %v1223 = vsel %vm1111, %v1219, 0.0
        %1224 = vadd.xlane.f32.xlu0 %v1223
        %v1225 = vpop.xlane.xlu0 %1224
        %v1226 = vrcp.pop %v1222
        %v1227 = vrcp.pop %v1225
        %v1228 = vmul.f32 %v1217, %v1226
        %v1229 = vmul.f32 %v1219, %v1227
        %v1230 = vpack.c.bf16 %v1228, %v1228
        %v1231 = vpack.c.bf16 %v1229, %v1229
        %1233 = vrot.lane.b32.xlu0 %v789, 96
        %v1234 = vpop.permute.xlu0 %1233
        %v1236 = vsel %vm1111, %v1230, 0
        %vm1238 = vcmask 1043456
        %v1240 = vsel %vm1238, %v1234, 0
        %1242 = vmatprep.subr.bf16.mxu0 0
        %1243 = vmatpush1.bf16.msra.mxu0 %v1240
        %1244 = vmatprep.subr.bf16.mxu0 0
        %1245 = vmatpush1.bf16.msra.mxu0 0
        %1246 = vmatprep.subr.bf16.mxu0 0
        %1247 = vmatpush1.bf16.msra.mxu0 0
        %1248 = vmatprep.subr.bf16.mxu0 0
        %1249 = vmatpush1.bf16.msra.mxu0 0
        %1250 = vmatprep.subr.bf16.mxu0 0
        %1251 = vmatpush1.bf16.msra.mxu0 0
        %1252 = vmatprep.subr.bf16.mxu0 0
        %1253 = vmatpush1.bf16.msra.mxu0 0
        %1254 = vmatprep.subr.bf16.mxu0 0
        %1255 = vmatpush1.bf16.msra.mxu0 0
        %1256 = vmatprep.subr.bf16.mxu0 0
        %1257 = vmatpush1.bf16.msra.mxu0 0
        %1258 = vmatprep.subr.bf16.mxu0 0
        %1259 = vmatpush1.bf16.msra.mxu0 0
        %1260 = vmatprep.subr.bf16.mxu0 0
        %1261 = vmatpush1.bf16.msra.mxu0 0
        %1262 = vmatprep.subr.bf16.mxu0 0
        %1263 = vmatpush1.bf16.msra.mxu0 0
        %1264 = vmatprep.subr.bf16.mxu0 0
        %1265 = vmatpush1.bf16.msra.mxu0 0
        %1266 = vmatprep.subr.bf16.mxu0 0
        %1267 = vmatpush1.bf16.msra.mxu0 0
        %1268 = vmatprep.subr.bf16.mxu0 0
        %1269 = vmatpush1.bf16.msra.mxu0 0
        %1270 = vmatprep.subr.bf16.mxu0 0
        %1271 = vmatpush1.bf16.msra.mxu0 0
        %1272 = vmatprep.subr.bf16.mxu0 0
        %1273 = vmatpush1.bf16.msra.mxu0 0
        %1274 = vmatprep.mubr.bf16.mxu0 0
        %1275 = vmatmul.mubr.bf16.gmra.mrb[0].mxu0 %v1236
        %v1276 = vpop.f32.mrb[0].mxu0
        %v1277 = vadd.f32 0.0, %v1276
        %v1278 = vpop.f32.mrb[0].mxu0
        %v1279 = vpop.f32.mrb[0].mxu0
        %v1280 = vpop.f32.mrb[0].mxu0
        %1281 = vdwg.mxu0
        %1283 = vrot.lane.b32.xlu0 %v790, 96
        %v1284 = vpop.permute.xlu0 %1283
        %v1286 = vsel %vm1111, %v1231, 0
        %v1289 = vsel %vm1238, %v1284, 0
        %1291 = vmatprep.subr.bf16.mxu0 0
        %1292 = vmatpush1.bf16.msra.mxu0 %v1289
        %1293 = vmatprep.subr.bf16.mxu0 0
        %1294 = vmatpush1.bf16.msra.mxu0 0
        %1295 = vmatprep.subr.bf16.mxu0 0
        %1296 = vmatpush1.bf16.msra.mxu0 0
        %1297 = vmatprep.subr.bf16.mxu0 0
        %1298 = vmatpush1.bf16.msra.mxu0 0
        %1299 = vmatprep.subr.bf16.mxu0 0
        %1300 = vmatpush1.bf16.msra.mxu0 0
        %1301 = vmatprep.subr.bf16.mxu0 0
        %1302 = vmatpush1.bf16.msra.mxu0 0
        %1303 = vmatprep.subr.bf16.mxu0 0
        %1304 = vmatpush1.bf16.msra.mxu0 0
        %1305 = vmatprep.subr.bf16.mxu0 0
        %1306 = vmatpush1.bf16.msra.mxu0 0
        %1307 = vmatprep.subr.bf16.mxu0 0
        %1308 = vmatpush1.bf16.msra.mxu0 0
        %1309 = vmatprep.subr.bf16.mxu0 0
        %1310 = vmatpush1.bf16.msra.mxu0 0
        %1311 = vmatprep.subr.bf16.mxu0 0
        %1312 = vmatpush1.bf16.msra.mxu0 0
        %1313 = vmatprep.subr.bf16.mxu0 0
        %1314 = vmatpush1.bf16.msra.mxu0 0
        %1315 = vmatprep.subr.bf16.mxu0 0
        %1316 = vmatpush1.bf16.msra.mxu0 0
        %1317 = vmatprep.subr.bf16.mxu0 0
        %1318 = vmatpush1.bf16.msra.mxu0 0
        %1319 = vmatprep.subr.bf16.mxu0 0
        %1320 = vmatpush1.bf16.msra.mxu0 0
        %1321 = vmatprep.subr.bf16.mxu0 0
        %1322 = vmatpush1.bf16.msra.mxu0 0
        %1323 = vmatprep.mubr.bf16.mxu0 0
        %1324 = vmatmul.mubr.bf16.gmra.mrb[0].mxu0 %v1286
        %v1325 = vpop.f32.mrb[0].mxu0
        %v1326 = vadd.f32 0.0, %v1325
        %v1327 = vpop.f32.mrb[0].mxu0
        %v1328 = vpop.f32.mrb[0].mxu0
        %v1329 = vpop.f32.mrb[0].mxu0
        %1330 = vdwg.mxu0
        %1331 = vst.msk [vmem:[#allocation2] sm:$0xff] %vm1111, %v1277
        %1332 = vst.msk [vmem:[#allocation2 + $0x8] sm:$0xff] %vm1111, %v1326
        %1333 = vset.pattern.permute.xlu0 17
        %1334 = vperm.xlu0 %1333, %v847
        %v1335 = vpop.permute.xlu0 %1334
        %1337 = vset.pattern.permute.xlu0 17
        %1338 = vperm.xlu0 %1337, %v850
        %v1339 = vpop.permute.xlu0 %1338
        %v1341 = vmul.f32 %v856, %v1335
        %v1342 = vmul.f32 %v856, %v1339
        %1343 = vset.pattern.permute.xlu0 18
        %1344 = vperm.xlu0 %1343, %v847
        %v1345 = vpop.permute.xlu0 %1344
        %1347 = vset.pattern.permute.xlu0 18
        %1348 = vperm.xlu0 %1347, %v850
        %v1349 = vpop.permute.xlu0 %1348
        %v1351 = vmul.f32 %v859, %v1345
        %v1352 = vmul.f32 %v859, %v1349
        %v1353 = vadd.f32 %v1341, %v1351
        %v1354 = vadd.f32 %v1342, %v1352
        %1355 = vset.pattern.permute.xlu0 19
        %1356 = vperm.xlu0 %1355, %v847
        %v1357 = vpop.permute.xlu0 %1356
        %1359 = vset.pattern.permute.xlu0 19
        %1360 = vperm.xlu0 %1359, %v850
        %v1361 = vpop.permute.xlu0 %1360
        %v1363 = vmul.f32 %v862, %v1357
        %v1364 = vmul.f32 %v862, %v1361
        %v1365 = vadd.f32 %v1353, %v1363
        %v1366 = vadd.f32 %v1354, %v1364
        %1367 = vset.pattern.permute.xlu0 20
        %1368 = vperm.xlu0 %1367, %v847
        %v1369 = vpop.permute.xlu0 %1368
        %1371 = vset.pattern.permute.xlu0 20
        %1372 = vperm.xlu0 %1371, %v850
        %v1373 = vpop.permute.xlu0 %1372
        %v1375 = vmul.f32 %v865, %v1369
        %v1376 = vmul.f32 %v865, %v1373
        %v1377 = vadd.f32 %v1365, %v1375
        %v1378 = vadd.f32 %v1366, %v1376
        %1379 = vset.pattern.permute.xlu0 21
        %1380 = vperm.xlu0 %1379, %v847
        %v1381 = vpop.permute.xlu0 %1380
        %1383 = vset.pattern.permute.xlu0 21
        %1384 = vperm.xlu0 %1383, %v850
        %v1385 = vpop.permute.xlu0 %1384
        %v1387 = vmul.f32 %v868, %v1381
        %v1388 = vmul.f32 %v868, %v1385
        %v1389 = vadd.f32 %v1377, %v1387
        %v1390 = vadd.f32 %v1378, %v1388
        %1391 = vset.pattern.permute.xlu0 22
        %1392 = vperm.xlu0 %1391, %v847
        %v1393 = vpop.permute.xlu0 %1392
        %1395 = vset.pattern.permute.xlu0 22
        %1396 = vperm.xlu0 %1395, %v850
        %v1397 = vpop.permute.xlu0 %1396
        %v1399 = vmul.f32 %v871, %v1393
        %v1400 = vmul.f32 %v871, %v1397
        %v1401 = vadd.f32 %v1389, %v1399
        %v1402 = vadd.f32 %v1390, %v1400
        %1403 = vset.pattern.permute.xlu0 23
        %1404 = vperm.xlu0 %1403, %v847
        %v1405 = vpop.permute.xlu0 %1404
        %1407 = vset.pattern.permute.xlu0 23
        %1408 = vperm.xlu0 %1407, %v850
        %v1409 = vpop.permute.xlu0 %1408
        %v1411 = vmul.f32 %v874, %v1405
        %v1412 = vmul.f32 %v874, %v1409
        %v1413 = vadd.f32 %v1401, %v1411
        %v1414 = vadd.f32 %v1402, %v1412
        %1415 = vset.pattern.permute.xlu0 24
        %1416 = vperm.xlu0 %1415, %v847
        %v1417 = vpop.permute.xlu0 %1416
        %1419 = vset.pattern.permute.xlu0 24
        %1420 = vperm.xlu0 %1419, %v850
        %v1421 = vpop.permute.xlu0 %1420
        %v1423 = vmul.f32 %v877, %v1417
        %v1424 = vmul.f32 %v877, %v1421
        %v1425 = vadd.f32 %v1413, %v1423
        %v1426 = vadd.f32 %v1414, %v1424
        %1427 = vset.pattern.permute.xlu0 25
        %1428 = vperm.xlu0 %1427, %v847
        %v1429 = vpop.permute.xlu0 %1428
        %1431 = vset.pattern.permute.xlu0 25
        %1432 = vperm.xlu0 %1431, %v850
        %v1433 = vpop.permute.xlu0 %1432
        %v1435 = vmul.f32 %v880, %v1429
        %v1436 = vmul.f32 %v880, %v1433
        %v1437 = vadd.f32 %v1425, %v1435
        %v1438 = vadd.f32 %v1426, %v1436
        %1439 = vset.pattern.permute.xlu0 26
        %1440 = vperm.xlu0 %1439, %v847
        %v1441 = vpop.permute.xlu0 %1440
        %1443 = vset.pattern.permute.xlu0 26
        %1444 = vperm.xlu0 %1443, %v850
        %v1445 = vpop.permute.xlu0 %1444
        %v1447 = vmul.f32 %v883, %v1441
        %v1448 = vmul.f32 %v883, %v1445
        %v1449 = vadd.f32 %v1437, %v1447
        %v1450 = vadd.f32 %v1438, %v1448
        %1451 = vset.pattern.permute.xlu0 27
        %1452 = vperm.xlu0 %1451, %v847
        %v1453 = vpop.permute.xlu0 %1452
        %1455 = vset.pattern.permute.xlu0 27
        %1456 = vperm.xlu0 %1455, %v850
        %v1457 = vpop.permute.xlu0 %1456
        %v1459 = vmul.f32 %v886, %v1453
        %v1460 = vmul.f32 %v886, %v1457
        %v1461 = vadd.f32 %v1449, %v1459
        %v1462 = vadd.f32 %v1450, %v1460
        %1463 = vset.pattern.permute.xlu0 28
        %1464 = vperm.xlu0 %1463, %v847
        %v1465 = vpop.permute.xlu0 %1464
        %1467 = vset.pattern.permute.xlu0 28
        %1468 = vperm.xlu0 %1467, %v850
        %v1469 = vpop.permute.xlu0 %1468
        %v1471 = vmul.f32 %v889, %v1465
        %v1472 = vmul.f32 %v889, %v1469
        %v1473 = vadd.f32 %v1461, %v1471
        %v1474 = vadd.f32 %v1462, %v1472
        %1475 = vset.pattern.permute.xlu0 29
        %1476 = vperm.xlu0 %1475, %v847
        %v1477 = vpop.permute.xlu0 %1476
        %1479 = vset.pattern.permute.xlu0 29
        %1480 = vperm.xlu0 %1479, %v850
        %v1481 = vpop.permute.xlu0 %1480
        %v1483 = vmul.f32 %v892, %v1477
        %v1484 = vmul.f32 %v892, %v1481
        %v1485 = vadd.f32 %v1473, %v1483
        %v1486 = vadd.f32 %v1474, %v1484
        %1487 = vset.pattern.permute.xlu0 30
        %1488 = vperm.xlu0 %1487, %v847
        %v1489 = vpop.permute.xlu0 %1488
        %1491 = vset.pattern.permute.xlu0 30
        %1492 = vperm.xlu0 %1491, %v850
        %v1493 = vpop.permute.xlu0 %1492
        %v1495 = vmul.f32 %v895, %v1489
        %v1496 = vmul.f32 %v895, %v1493
        %v1497 = vadd.f32 %v1485, %v1495
        %v1498 = vadd.f32 %v1486, %v1496
        %1499 = vset.pattern.permute.xlu0 31
        %1500 = vperm.xlu0 %1499, %v847
        %v1501 = vpop.permute.xlu0 %1500
        %1503 = vset.pattern.permute.xlu0 31
        %1504 = vperm.xlu0 %1503, %v850
        %v1505 = vpop.permute.xlu0 %1504
        %v1507 = vmul.f32 %v898, %v1501
        %v1508 = vmul.f32 %v898, %v1505
        %v1509 = vadd.f32 %v1497, %v1507
        %v1510 = vadd.f32 %v1498, %v1508
        %1511 = vset.pattern.permute.xlu0 32
        %1512 = vperm.xlu0 %1511, %v847
        %v1513 = vpop.permute.xlu0 %1512
        %1515 = vset.pattern.permute.xlu0 32
        %1516 = vperm.xlu0 %1515, %v850
        %v1517 = vpop.permute.xlu0 %1516
        %v1519 = vmul.f32 %v901, %v1513
        %v1520 = vmul.f32 %v901, %v1517
        %v1521 = vadd.f32 %v1509, %v1519
        %v1522 = vadd.f32 %v1510, %v1520
        %1523 = vset.pattern.permute.xlu0 33
        %1524 = vperm.xlu0 %1523, %v847
        %v1525 = vpop.permute.xlu0 %1524
        %1527 = vset.pattern.permute.xlu0 33
        %1528 = vperm.xlu0 %1527, %v850
        %v1529 = vpop.permute.xlu0 %1528
        %v1531 = vmul.f32 %v904, %v1525
        %v1532 = vmul.f32 %v904, %v1529
        %v1533 = vadd.f32 %v1521, %v1531
        %v1534 = vadd.f32 %v1522, %v1532
        %1536 = vrot.lane.b32.xlu0 %v905, 120
        %v1537 = vpop.permute.xlu0 %1536
        %1538 = vrot.lane.b32.xlu0 %v789, 120
        %v1539 = vpop.permute.xlu0 %1538
        %v1541 = vsel %vm1111, %v1537, 0
        %v1544 = vsel %vm1111, %v1539, 0
        %1546 = vmatprep.subr.bf16.mxu0 0
        %1547 = vmatpush1.bf16.xpose.msra.mxu0 %v1544
        %1548 = vmatprep.subr.bf16.mxu0 0
        %1549 = vmatpush1.bf16.xpose.msra.mxu0 0
        %1550 = vmatprep.subr.bf16.mxu0 0
        %1551 = vmatpush1.bf16.xpose.msra.mxu0 0
        %1552 = vmatprep.subr.bf16.mxu0 0
        %1553 = vmatpush1.bf16.xpose.msra.mxu0 0
        %1554 = vmatprep.subr.bf16.mxu0 0
        %1555 = vmatpush1.bf16.xpose.msra.mxu0 0
        %1556 = vmatprep.subr.bf16.mxu0 0
        %1557 = vmatpush1.bf16.xpose.msra.mxu0 0
        %1558 = vmatprep.subr.bf16.mxu0 0
        %1559 = vmatpush1.bf16.xpose.msra.mxu0 0
        %1560 = vmatprep.subr.bf16.mxu0 0
        %1561 = vmatpush1.bf16.xpose.msra.mxu0 0
        %1562 = vmatprep.subr.bf16.mxu0 0
        %1563 = vmatpush1.bf16.xpose.msra.mxu0 0
        %1564 = vmatprep.subr.bf16.mxu0 0
        %1565 = vmatpush1.bf16.xpose.msra.mxu0 0
        %1566 = vmatprep.subr.bf16.mxu0 0
        %1567 = vmatpush1.bf16.xpose.msra.mxu0 0
        %1568 = vmatprep.subr.bf16.mxu0 0
        %1569 = vmatpush1.bf16.xpose.msra.mxu0 0
        %1570 = vmatprep.subr.bf16.mxu0 0
        %1571 = vmatpush1.bf16.xpose.msra.mxu0 0
        %1572 = vmatprep.subr.bf16.mxu0 0
        %1573 = vmatpush1.bf16.xpose.msra.mxu0 0
        %1574 = vmatprep.subr.bf16.mxu0 0
        %1575 = vmatpush1.bf16.xpose.msra.mxu0 0
        %1576 = vmatprep.subr.bf16.mxu0 0
        %1577 = vmatpush1.bf16.xpose.msra.mxu0 0
        %1578 = vmatprep.mubr.bf16.mxu0 0
        %1579 = vmatmul.mubr.bf16.gmra.mrb[0].mxu0 %v1541
        %v1580 = vpop.f32.mrb[0].mxu0
        %v1581 = vadd.f32 %v1533, %v1580
        %v1582 = vpop.f32.mrb[0].mxu0
        %v1583 = vpop.f32.mrb[0].mxu0
        %v1584 = vpop.f32.mrb[0].mxu0
        %1585 = vdwg.mxu0
        %1587 = vrot.lane.b32.xlu0 %v906, 120
        %v1588 = vpop.permute.xlu0 %1587
        %1589 = vrot.lane.b32.xlu0 %v790, 120
        %v1590 = vpop.permute.xlu0 %1589
        %v1592 = vsel %vm1111, %v1588, 0
        %v1595 = vsel %vm1111, %v1590, 0
        %1597 = vmatprep.subr.bf16.mxu0 0
        %1598 = vmatpush1.bf16.xpose.msra.mxu0 %v1595
        %1599 = vmatprep.subr.bf16.mxu0 0
        %1600 = vmatpush1.bf16.xpose.msra.mxu0 0
        %1601 = vmatprep.subr.bf16.mxu0 0
        %1602 = vmatpush1.bf16.xpose.msra.mxu0 0
        %1603 = vmatprep.subr.bf16.mxu0 0
        %1604 = vmatpush1.bf16.xpose.msra.mxu0 0
        %1605 = vmatprep.subr.bf16.mxu0 0
        %1606 = vmatpush1.bf16.xpose.msra.mxu0 0
        %1607 = vmatprep.subr.bf16.mxu0 0
        %1608 = vmatpush1.bf16.xpose.msra.mxu0 0
        %1609 = vmatprep.subr.bf16.mxu0 0
        %1610 = vmatpush1.bf16.xpose.msra.mxu0 0
        %1611 = vmatprep.subr.bf16.mxu0 0
        %1612 = vmatpush1.bf16.xpose.msra.mxu0 0
        %1613 = vmatprep.subr.bf16.mxu0 0
        %1614 = vmatpush1.bf16.xpose.msra.mxu0 0
        %1615 = vmatprep.subr.bf16.mxu0 0
        %1616 = vmatpush1.bf16.xpose.msra.mxu0 0
        %1617 = vmatprep.subr.bf16.mxu0 0
        %1618 = vmatpush1.bf16.xpose.msra.mxu0 0
        %1619 = vmatprep.subr.bf16.mxu0 0
        %1620 = vmatpush1.bf16.xpose.msra.mxu0 0
        %1621 = vmatprep.subr.bf16.mxu0 0
        %1622 = vmatpush1.bf16.xpose.msra.mxu0 0
        %1623 = vmatprep.subr.bf16.mxu0 0
        %1624 = vmatpush1.bf16.xpose.msra.mxu0 0
        %1625 = vmatprep.subr.bf16.mxu0 0
        %1626 = vmatpush1.bf16.xpose.msra.mxu0 0
        %1627 = vmatprep.subr.bf16.mxu0 0
        %1628 = vmatpush1.bf16.xpose.msra.mxu0 0
        %1629 = vmatprep.mubr.bf16.mxu0 0
        %1630 = vmatmul.mubr.bf16.gmra.mrb[0].mxu0 %v1592
        %v1631 = vpop.f32.mrb[0].mxu0
        %v1632 = vadd.f32 %v1534, %v1631
        %v1633 = vpop.f32.mrb[0].mxu0
        %v1634 = vpop.f32.mrb[0].mxu0
        %v1635 = vpop.f32.mrb[0].mxu0
        %1636 = vdwg.mxu0
        %v1637 = vmul.f32 %v1581, 0.35355338
        %v1638 = vmul.f32 %v1632, 0.35355338
        %v1639 = vadd.f32 %v1637, %v791
        %v1640 = vadd.f32 %v1638, %v791
        %v1641 = vsel %vm1111, %v1639, -inf
        %1642 = vmax.xlane.f32.xlu0 %v1641
        %v1643 = vpop.xlane.xlu0 %1642
        %v1644 = vsel %vm1111, %v1640, -inf
        %1645 = vmax.xlane.f32.xlu0 %v1644
        %v1646 = vpop.xlane.xlu0 %1645
        %v1647 = vsub.f32 %v1639, %v1643
        %v1648 = vsub.f32 %v1640, %v1646
        %v1649 = vmul.f32 %v1647, 1.442695
        %v1650 = vpow.pop %v1649
        %v1651 = vmul.f32 %v1648, 1.442695
        %v1652 = vpow.pop %v1651
        %v1653 = vsel %vm1111, %v1650, 0.0
        %1654 = vadd.xlane.f32.xlu0 %v1653
        %v1655 = vpop.xlane.xlu0 %1654
        %v1656 = vsel %vm1111, %v1652, 0.0
        %1657 = vadd.xlane.f32.xlu0 %v1656
        %v1658 = vpop.xlane.xlu0 %1657
        %v1659 = vrcp.pop %v1655
        %v1660 = vrcp.pop %v1658
        %v1661 = vmul.f32 %v1650, %v1659
        %v1662 = vmul.f32 %v1652, %v1660
        %v1663 = vpack.c.bf16 %v1661, %v1661
        %v1664 = vpack.c.bf16 %v1662, %v1662
        %1665 = vrot.lane.b32.xlu0 %v789, 88
        %v1666 = vpop.permute.xlu0 %1665
        %v1668 = vsel %vm1111, %v1663, 0
        %v1671 = vsel %vm1238, %v1666, 0
        %1673 = vmatprep.subr.bf16.mxu0 0
        %1674 = vmatpush1.bf16.msra.mxu0 %v1671
        %1675 = vmatprep.subr.bf16.mxu0 0
        %1676 = vmatpush1.bf16.msra.mxu0 0
        %1677 = vmatprep.subr.bf16.mxu0 0
        %1678 = vmatpush1.bf16.msra.mxu0 0
        %1679 = vmatprep.subr.bf16.mxu0 0
        %1680 = vmatpush1.bf16.msra.mxu0 0
        %1681 = vmatprep.subr.bf16.mxu0 0
        %1682 = vmatpush1.bf16.msra.mxu0 0
        %1683 = vmatprep.subr.bf16.mxu0 0
        %1684 = vmatpush1.bf16.msra.mxu0 0
        %1685 = vmatprep.subr.bf16.mxu0 0
        %1686 = vmatpush1.bf16.msra.mxu0 0
        %1687 = vmatprep.subr.bf16.mxu0 0
        %1688 = vmatpush1.bf16.msra.mxu0 0
        %1689 = vmatprep.subr.bf16.mxu0 0
        %1690 = vmatpush1.bf16.msra.mxu0 0
        %1691 = vmatprep.subr.bf16.mxu0 0
        %1692 = vmatpush1.bf16.msra.mxu0 0
        %1693 = vmatprep.subr.bf16.mxu0 0
        %1694 = vmatpush1.bf16.msra.mxu0 0
        %1695 = vmatprep.subr.bf16.mxu0 0
        %1696 = vmatpush1.bf16.msra.mxu0 0
        %1697 = vmatprep.subr.bf16.mxu0 0
        %1698 = vmatpush1.bf16.msra.mxu0 0
        %1699 = vmatprep.subr.bf16.mxu0 0
        %1700 = vmatpush1.bf16.msra.mxu0 0
        %1701 = vmatprep.subr.bf16.mxu0 0
        %1702 = vmatpush1.bf16.msra.mxu0 0
        %1703 = vmatprep.subr.bf16.mxu0 0
        %1704 = vmatpush1.bf16.msra.mxu0 0
        %1705 = vmatprep.mubr.bf16.mxu0 0
        %1706 = vmatmul.mubr.bf16.gmra.mrb[0].mxu0 %v1668
        %v1707 = vpop.f32.mrb[0].mxu0
        %v1708 = vadd.f32 0.0, %v1707
        %v1709 = vpop.f32.mrb[0].mxu0
        %v1710 = vpop.f32.mrb[0].mxu0
        %v1711 = vpop.f32.mrb[0].mxu0
        %1712 = vdwg.mxu0
        %1713 = vrot.lane.b32.xlu0 %v790, 88
        %v1714 = vpop.permute.xlu0 %1713
        %v1716 = vsel %vm1111, %v1664, 0
        %v1719 = vsel %vm1238, %v1714, 0
        %1721 = vmatprep.subr.bf16.mxu0 0
        %1722 = vmatpush1.bf16.msra.mxu0 %v1719
        %1723 = vmatprep.subr.bf16.mxu0 0
        %1724 = vmatpush1.bf16.msra.mxu0 0
        %1725 = vmatprep.subr.bf16.mxu0 0
        %1726 = vmatpush1.bf16.msra.mxu0 0
        %1727 = vmatprep.subr.bf16.mxu0 0
        %1728 = vmatpush1.bf16.msra.mxu0 0
        %1729 = vmatprep.subr.bf16.mxu0 0
        %1730 = vmatpush1.bf16.msra.mxu0 0
        %1731 = vmatprep.subr.bf16.mxu0 0
        %1732 = vmatpush1.bf16.msra.mxu0 0
        %1733 = vmatprep.subr.bf16.mxu0 0
        %1734 = vmatpush1.bf16.msra.mxu0 0
        %1735 = vmatprep.subr.bf16.mxu0 0
        %1736 = vmatpush1.bf16.msra.mxu0 0
        %1737 = vmatprep.subr.bf16.mxu0 0
        %1738 = vmatpush1.bf16.msra.mxu0 0
        %1739 = vmatprep.subr.bf16.mxu0 0
        %1740 = vmatpush1.bf16.msra.mxu0 0
        %1741 = vmatprep.subr.bf16.mxu0 0
        %1742 = vmatpush1.bf16.msra.mxu0 0
        %1743 = vmatprep.subr.bf16.mxu0 0
        %1744 = vmatpush1.bf16.msra.mxu0 0
        %1745 = vmatprep.subr.bf16.mxu0 0
        %1746 = vmatpush1.bf16.msra.mxu0 0
        %1747 = vmatprep.subr.bf16.mxu0 0
        %1748 = vmatpush1.bf16.msra.mxu0 0
        %1749 = vmatprep.subr.bf16.mxu0 0
        %1750 = vmatpush1.bf16.msra.mxu0 0
        %1751 = vmatprep.subr.bf16.mxu0 0
        %1752 = vmatpush1.bf16.msra.mxu0 0
        %1753 = vmatprep.mubr.bf16.mxu0 0
        %1754 = vmatmul.mubr.bf16.gmra.mrb[0].mxu0 %v1716
        %v1755 = vpop.f32.mrb[0].mxu0
        %v1756 = vadd.f32 0.0, %v1755
        %v1757 = vpop.f32.mrb[0].mxu0
        %v1758 = vpop.f32.mrb[0].mxu0
        %v1759 = vpop.f32.mrb[0].mxu0
        %1760 = vdwg.mxu0
        %1763 = vrot.lane.b32.xlu0 %v1708, 8
        %v1764 = vpop.permute.xlu0 %1763
        %1765 = vrot.lane.b32.xlu0 %v1756, 8
        %v1766 = vpop.permute.xlu0 %1765
        %vm1769 = vcmask 130112
        %1770 = vst.msk [vmem:[#allocation2] sm:$0xff] %vm1769, %v1764
        %1771 = vst.msk [vmem:[#allocation2 + $0x8] sm:$0xff] %vm1769, %v1766
        %1772 = vset.pattern.permute.xlu0 34
        %1773 = vperm.xlu0 %1772, %v847
        %v1774 = vpop.permute.xlu0 %1773
        %1776 = vset.pattern.permute.xlu0 34
        %1777 = vperm.xlu0 %1776, %v850
        %v1778 = vpop.permute.xlu0 %1777
        %v1780 = vmul.f32 %v856, %v1774
        %v1781 = vmul.f32 %v856, %v1778
        %1782 = vset.pattern.permute.xlu0 35
        %1783 = vperm.xlu0 %1782, %v847
        %v1784 = vpop.permute.xlu0 %1783
        %1786 = vset.pattern.permute.xlu0 35
        %1787 = vperm.xlu0 %1786, %v850
        %v1788 = vpop.permute.xlu0 %1787
        %v1790 = vmul.f32 %v859, %v1784
        %v1791 = vmul.f32 %v859, %v1788
        %v1792 = vadd.f32 %v1780, %v1790
        %v1793 = vadd.f32 %v1781, %v1791
        %1794 = vset.pattern.permute.xlu0 36
        %1795 = vperm.xlu0 %1794, %v847
        %v1796 = vpop.permute.xlu0 %1795
        %1798 = vset.pattern.permute.xlu0 36
        %1799 = vperm.xlu0 %1798, %v850
        %v1800 = vpop.permute.xlu0 %1799
        %v1802 = vmul.f32 %v862, %v1796
        %v1803 = vmul.f32 %v862, %v1800
        %v1804 = vadd.f32 %v1792, %v1802
        %v1805 = vadd.f32 %v1793, %v1803
        %1806 = vset.pattern.permute.xlu0 37
        %1807 = vperm.xlu0 %1806, %v847
        %v1808 = vpop.permute.xlu0 %1807
        %1810 = vset.pattern.permute.xlu0 37
        %1811 = vperm.xlu0 %1810, %v850
        %v1812 = vpop.permute.xlu0 %1811
        %v1814 = vmul.f32 %v865, %v1808
        %v1815 = vmul.f32 %v865, %v1812
        %v1816 = vadd.f32 %v1804, %v1814
        %v1817 = vadd.f32 %v1805, %v1815
        %1818 = vset.pattern.permute.xlu0 38
        %1819 = vperm.xlu0 %1818, %v847
        %v1820 = vpop.permute.xlu0 %1819
        %1822 = vset.pattern.permute.xlu0 38
        %1823 = vperm.xlu0 %1822, %v850
        %v1824 = vpop.permute.xlu0 %1823
        %v1826 = vmul.f32 %v868, %v1820
        %v1827 = vmul.f32 %v868, %v1824
        %v1828 = vadd.f32 %v1816, %v1826
        %v1829 = vadd.f32 %v1817, %v1827
        %1830 = vset.pattern.permute.xlu0 39
        %1831 = vperm.xlu0 %1830, %v847
        %v1832 = vpop.permute.xlu0 %1831
        %1834 = vset.pattern.permute.xlu0 39
        %1835 = vperm.xlu0 %1834, %v850
        %v1836 = vpop.permute.xlu0 %1835
        %v1838 = vmul.f32 %v871, %v1832
        %v1839 = vmul.f32 %v871, %v1836
        %v1840 = vadd.f32 %v1828, %v1838
        %v1841 = vadd.f32 %v1829, %v1839
        %1842 = vset.pattern.permute.xlu0 40
        %1843 = vperm.xlu0 %1842, %v847
        %v1844 = vpop.permute.xlu0 %1843
        %1846 = vset.pattern.permute.xlu0 40
        %1847 = vperm.xlu0 %1846, %v850
        %v1848 = vpop.permute.xlu0 %1847
        %v1850 = vmul.f32 %v874, %v1844
        %v1851 = vmul.f32 %v874, %v1848
        %v1852 = vadd.f32 %v1840, %v1850
        %v1853 = vadd.f32 %v1841, %v1851
        %1854 = vset.pattern.permute.xlu0 41
        %1855 = vperm.xlu0 %1854, %v847
        %v1856 = vpop.permute.xlu0 %1855
        %1858 = vset.pattern.permute.xlu0 41
        %1859 = vperm.xlu0 %1858, %v850
        %v1860 = vpop.permute.xlu0 %1859
        %v1862 = vmul.f32 %v877, %v1856
        %v1863 = vmul.f32 %v877, %v1860
        %v1864 = vadd.f32 %v1852, %v1862
        %v1865 = vadd.f32 %v1853, %v1863
        %1866 = vset.pattern.permute.xlu0 42
        %1867 = vperm.xlu0 %1866, %v847
        %v1868 = vpop.permute.xlu0 %1867
        %1870 = vset.pattern.permute.xlu0 42
        %1871 = vperm.xlu0 %1870, %v850
        %v1872 = vpop.permute.xlu0 %1871
        %v1874 = vmul.f32 %v880, %v1868
        %v1875 = vmul.f32 %v880, %v1872
        %v1876 = vadd.f32 %v1864, %v1874
        %v1877 = vadd.f32 %v1865, %v1875
        %1878 = vset.pattern.permute.xlu0 43
        %1879 = vperm.xlu0 %1878, %v847
        %v1880 = vpop.permute.xlu0 %1879
        %1882 = vset.pattern.permute.xlu0 43
        %1883 = vperm.xlu0 %1882, %v850
        %v1884 = vpop.permute.xlu0 %1883
        %v1886 = vmul.f32 %v883, %v1880
        %v1887 = vmul.f32 %v883, %v1884
        %v1888 = vadd.f32 %v1876, %v1886
        %v1889 = vadd.f32 %v1877, %v1887
        %1890 = vset.pattern.permute.xlu0 44
        %1891 = vperm.xlu0 %1890, %v847
        %v1892 = vpop.permute.xlu0 %1891
        %1894 = vset.pattern.permute.xlu0 44
        %1895 = vperm.xlu0 %1894, %v850
        %v1896 = vpop.permute.xlu0 %1895
        %v1898 = vmul.f32 %v886, %v1892
        %v1899 = vmul.f32 %v886, %v1896
        %v1900 = vadd.f32 %v1888, %v1898
        %v1901 = vadd.f32 %v1889, %v1899
        %1902 = vset.pattern.permute.xlu0 45
        %1903 = vperm.xlu0 %1902, %v847
        %v1904 = vpop.permute.xlu0 %1903
        %1906 = vset.pattern.permute.xlu0 45
        %1907 = vperm.xlu0 %1906, %v850
        %v1908 = vpop.permute.xlu0 %1907
        %v1910 = vmul.f32 %v889, %v1904
        %v1911 = vmul.f32 %v889, %v1908
        %v1912 = vadd.f32 %v1900, %v1910
        %v1913 = vadd.f32 %v1901, %v1911
        %1914 = vset.pattern.permute.xlu0 46
        %1915 = vperm.xlu0 %1914, %v847
        %v1916 = vpop.permute.xlu0 %1915
        %1918 = vset.pattern.permute.xlu0 46
        %1919 = vperm.xlu0 %1918, %v850
        %v1920 = vpop.permute.xlu0 %1919
        %v1922 = vmul.f32 %v892, %v1916
        %v1923 = vmul.f32 %v892, %v1920
        %v1924 = vadd.f32 %v1912, %v1922
        %v1925 = vadd.f32 %v1913, %v1923
        %1926 = vset.pattern.permute.xlu0 47
        %1927 = vperm.xlu0 %1926, %v847
        %v1928 = vpop.permute.xlu0 %1927
        %1930 = vset.pattern.permute.xlu0 47
        %1931 = vperm.xlu0 %1930, %v850
        %v1932 = vpop.permute.xlu0 %1931
        %v1934 = vmul.f32 %v895, %v1928
        %v1935 = vmul.f32 %v895, %v1932
        %v1936 = vadd.f32 %v1924, %v1934
        %v1937 = vadd.f32 %v1925, %v1935
        %1938 = vset.pattern.permute.xlu0 48
        %1939 = vperm.xlu0 %1938, %v847
        %v1940 = vpop.permute.xlu0 %1939
        %1942 = vset.pattern.permute.xlu0 48
        %1943 = vperm.xlu0 %1942, %v850
        %v1944 = vpop.permute.xlu0 %1943
        %v1946 = vmul.f32 %v898, %v1940
        %v1947 = vmul.f32 %v898, %v1944
        %v1948 = vadd.f32 %v1936, %v1946
        %v1949 = vadd.f32 %v1937, %v1947
        %1950 = vset.pattern.permute.xlu0 49
        %1951 = vperm.xlu0 %1950, %v847
        %v1952 = vpop.permute.xlu0 %1951
        %1954 = vset.pattern.permute.xlu0 49
        %1955 = vperm.xlu0 %1954, %v850
        %v1956 = vpop.permute.xlu0 %1955
        %v1958 = vmul.f32 %v901, %v1952
        %v1959 = vmul.f32 %v901, %v1956
        %v1960 = vadd.f32 %v1948, %v1958
        %v1961 = vadd.f32 %v1949, %v1959
        %1962 = vset.pattern.permute.xlu0 50
        %1963 = vperm.xlu0 %1962, %v847
        %v1964 = vpop.permute.xlu0 %1963
        %1966 = vset.pattern.permute.xlu0 50
        %1967 = vperm.xlu0 %1966, %v850
        %v1968 = vpop.permute.xlu0 %1967
        %v1970 = vmul.f32 %v904, %v1964
        %v1971 = vmul.f32 %v904, %v1968
        %v1972 = vadd.f32 %v1960, %v1970
        %v1973 = vadd.f32 %v1961, %v1971
        %1974 = vrot.lane.b32.xlu0 %v905, 112
        %v1975 = vpop.permute.xlu0 %1974
        %1976 = vrot.lane.b32.xlu0 %v789, 112
        %v1977 = vpop.permute.xlu0 %1976
        %v1979 = vsel %vm1111, %v1975, 0
        %v1982 = vsel %vm1111, %v1977, 0
        %1984 = vmatprep.subr.bf16.mxu0 0
        %1985 = vmatpush1.bf16.xpose.msra.mxu0 %v1982
        %1986 = vmatprep.subr.bf16.mxu0 0
        %1987 = vmatpush1.bf16.xpose.msra.mxu0 0
        %1988 = vmatprep.subr.bf16.mxu0 0
        %1989 = vmatpush1.bf16.xpose.msra.mxu0 0
        %1990 = vmatprep.subr.bf16.mxu0 0
        %1991 = vmatpush1.bf16.xpose.msra.mxu0 0
        %1992 = vmatprep.subr.bf16.mxu0 0
        %1993 = vmatpush1.bf16.xpose.msra.mxu0 0
        %1994 = vmatprep.subr.bf16.mxu0 0
        %1995 = vmatpush1.bf16.xpose.msra.mxu0 0
        %1996 = vmatprep.subr.bf16.mxu0 0
        %1997 = vmatpush1.bf16.xpose.msra.mxu0 0
        %1998 = vmatprep.subr.bf16.mxu0 0
        %1999 = vmatpush1.bf16.xpose.msra.mxu0 0
        %2000 = vmatprep.subr.bf16.mxu0 0
        %2001 = vmatpush1.bf16.xpose.msra.mxu0 0
        %2002 = vmatprep.subr.bf16.mxu0 0
        %2003 = vmatpush1.bf16.xpose.msra.mxu0 0
        %2004 = vmatprep.subr.bf16.mxu0 0
        %2005 = vmatpush1.bf16.xpose.msra.mxu0 0
        %2006 = vmatprep.subr.bf16.mxu0 0
        %2007 = vmatpush1.bf16.xpose.msra.mxu0 0
        %2008 = vmatprep.subr.bf16.mxu0 0
        %2009 = vmatpush1.bf16.xpose.msra.mxu0 0
        %2010 = vmatprep.subr.bf16.mxu0 0
        %2011 = vmatpush1.bf16.xpose.msra.mxu0 0
        %2012 = vmatprep.subr.bf16.mxu0 0
        %2013 = vmatpush1.bf16.xpose.msra.mxu0 0
        %2014 = vmatprep.subr.bf16.mxu0 0
        %2015 = vmatpush1.bf16.xpose.msra.mxu0 0
        %2016 = vmatprep.mubr.bf16.mxu0 0
        %2017 = vmatmul.mubr.bf16.gmra.mrb[0].mxu0 %v1979
        %v2018 = vpop.f32.mrb[0].mxu0
        %v2019 = vadd.f32 %v1972, %v2018
        %v2020 = vpop.f32.mrb[0].mxu0
        %v2021 = vpop.f32.mrb[0].mxu0
        %v2022 = vpop.f32.mrb[0].mxu0
        %2023 = vdwg.mxu0
        %2024 = vrot.lane.b32.xlu0 %v906, 112
        %v2025 = vpop.permute.xlu0 %2024
        %2026 = vrot.lane.b32.xlu0 %v790, 112
        %v2027 = vpop.permute.xlu0 %2026
        %v2029 = vsel %vm1111, %v2025, 0
        %v2032 = vsel %vm1111, %v2027, 0
        %2034 = vmatprep.subr.bf16.mxu0 0
        %2035 = vmatpush1.bf16.xpose.msra.mxu0 %v2032
        %2036 = vmatprep.subr.bf16.mxu0 0
        %2037 = vmatpush1.bf16.xpose.msra.mxu0 0
        %2038 = vmatprep.subr.bf16.mxu0 0
        %2039 = vmatpush1.bf16.xpose.msra.mxu0 0
        %2040 = vmatprep.subr.bf16.mxu0 0
        %2041 = vmatpush1.bf16.xpose.msra.mxu0 0
        %2042 = vmatprep.subr.bf16.mxu0 0
        %2043 = vmatpush1.bf16.xpose.msra.mxu0 0
        %2044 = vmatprep.subr.bf16.mxu0 0
        %2045 = vmatpush1.bf16.xpose.msra.mxu0 0
        %2046 = vmatprep.subr.bf16.mxu0 0
        %2047 = vmatpush1.bf16.xpose.msra.mxu0 0
        %2048 = vmatprep.subr.bf16.mxu0 0
        %2049 = vmatpush1.bf16.xpose.msra.mxu0 0
        %2050 = vmatprep.subr.bf16.mxu0 0
        %2051 = vmatpush1.bf16.xpose.msra.mxu0 0
        %2052 = vmatprep.subr.bf16.mxu0 0
        %2053 = vmatpush1.bf16.xpose.msra.mxu0 0
        %2054 = vmatprep.subr.bf16.mxu0 0
        %2055 = vmatpush1.bf16.xpose.msra.mxu0 0
        %2056 = vmatprep.subr.bf16.mxu0 0
        %2057 = vmatpush1.bf16.xpose.msra.mxu0 0
        %2058 = vmatprep.subr.bf16.mxu0 0
        %2059 = vmatpush1.bf16.xpose.msra.mxu0 0
        %2060 = vmatprep.subr.bf16.mxu0 0
        %2061 = vmatpush1.bf16.xpose.msra.mxu0 0
        %2062 = vmatprep.subr.bf16.mxu0 0
        %2063 = vmatpush1.bf16.xpose.msra.mxu0 0
        %2064 = vmatprep.subr.bf16.mxu0 0
        %2065 = vmatpush1.bf16.xpose.msra.mxu0 0
        %2066 = vmatprep.mubr.bf16.mxu0 0
        %2067 = vmatmul.mubr.bf16.gmra.mrb[0].mxu0 %v2029
        %v2068 = vpop.f32.mrb[0].mxu0
        %v2069 = vadd.f32 %v1973, %v2068
        %v2070 = vpop.f32.mrb[0].mxu0
        %v2071 = vpop.f32.mrb[0].mxu0
        %v2072 = vpop.f32.mrb[0].mxu0
        %2073 = vdwg.mxu0
        %v2074 = vmul.f32 %v2019, 0.35355338
        %v2075 = vmul.f32 %v2069, 0.35355338
        %v2076 = vadd.f32 %v2074, %v791
        %v2077 = vadd.f32 %v2075, %v791
        %v2078 = vsel %vm1111, %v2076, -inf
        %2079 = vmax.xlane.f32.xlu0 %v2078
        %v2080 = vpop.xlane.xlu0 %2079
        %v2081 = vsel %vm1111, %v2077, -inf
        %2082 = vmax.xlane.f32.xlu0 %v2081
        %v2083 = vpop.xlane.xlu0 %2082
        %v2084 = vsub.f32 %v2076, %v2080
        %v2085 = vsub.f32 %v2077, %v2083
        %v2086 = vmul.f32 %v2084, 1.442695
        %v2087 = vpow.pop %v2086
        %v2088 = vmul.f32 %v2085, 1.442695
        %v2089 = vpow.pop %v2088
        %v2090 = vsel %vm1111, %v2087, 0.0
        %2091 = vadd.xlane.f32.xlu0 %v2090
        %v2092 = vpop.xlane.xlu0 %2091
        %v2093 = vsel %vm1111, %v2089, 0.0
        %2094 = vadd.xlane.f32.xlu0 %v2093
        %v2095 = vpop.xlane.xlu0 %2094
        %v2096 = vrcp.pop %v2092
        %v2097 = vrcp.pop %v2095
        %v2098 = vmul.f32 %v2087, %v2096
        %v2099 = vmul.f32 %v2089, %v2097
        %v2100 = vpack.c.bf16 %v2098, %v2098
        %v2101 = vpack.c.bf16 %v2099, %v2099
        %2102 = vrot.lane.b32.xlu0 %v789, 80
        %v2103 = vpop.permute.xlu0 %2102
        %v2105 = vsel %vm1111, %v2100, 0
        %v2108 = vsel %vm1238, %v2103, 0
        %2110 = vmatprep.subr.bf16.mxu0 0
        %2111 = vmatpush1.bf16.msra.mxu0 %v2108
        %2112 = vmatprep.subr.bf16.mxu0 0
        %2113 = vmatpush1.bf16.msra.mxu0 0
        %2114 = vmatprep.subr.bf16.mxu0 0
        %2115 = vmatpush1.bf16.msra.mxu0 0
        %2116 = vmatprep.subr.bf16.mxu0 0
        %2117 = vmatpush1.bf16.msra.mxu0 0
        %2118 = vmatprep.subr.bf16.mxu0 0
        %2119 = vmatpush1.bf16.msra.mxu0 0
        %2120 = vmatprep.subr.bf16.mxu0 0
        %2121 = vmatpush1.bf16.msra.mxu0 0
        %2122 = vmatprep.subr.bf16.mxu0 0
        %2123 = vmatpush1.bf16.msra.mxu0 0
        %2124 = vmatprep.subr.bf16.mxu0 0
        %2125 = vmatpush1.bf16.msra.mxu0 0
        %2126 = vmatprep.subr.bf16.mxu0 0
        %2127 = vmatpush1.bf16.msra.mxu0 0
        %2128 = vmatprep.subr.bf16.mxu0 0
        %2129 = vmatpush1.bf16.msra.mxu0 0
        %2130 = vmatprep.subr.bf16.mxu0 0
        %2131 = vmatpush1.bf16.msra.mxu0 0
        %2132 = vmatprep.subr.bf16.mxu0 0
        %2133 = vmatpush1.bf16.msra.mxu0 0
        %2134 = vmatprep.subr.bf16.mxu0 0
        %2135 = vmatpush1.bf16.msra.mxu0 0
        %2136 = vmatprep.subr.bf16.mxu0 0
        %2137 = vmatpush1.bf16.msra.mxu0 0
        %2138 = vmatprep.subr.bf16.mxu0 0
        %2139 = vmatpush1.bf16.msra.mxu0 0
        %2140 = vmatprep.subr.bf16.mxu0 0
        %2141 = vmatpush1.bf16.msra.mxu0 0
        %2142 = vmatprep.mubr.bf16.mxu0 0
        %2143 = vmatmul.mubr.bf16.gmra.mrb[0].mxu0 %v2105
        %v2144 = vpop.f32.mrb[0].mxu0
        %v2145 = vadd.f32 0.0, %v2144
        %v2146 = vpop.f32.mrb[0].mxu0
        %v2147 = vpop.f32.mrb[0].mxu0
        %v2148 = vpop.f32.mrb[0].mxu0
        %2149 = vdwg.mxu0
        %2150 = vrot.lane.b32.xlu0 %v790, 80
        %v2151 = vpop.permute.xlu0 %2150
        %v2153 = vsel %vm1111, %v2101, 0
        %v2156 = vsel %vm1238, %v2151, 0
        %2158 = vmatprep.subr.bf16.mxu0 0
        %2159 = vmatpush1.bf16.msra.mxu0 %v2156
        %2160 = vmatprep.subr.bf16.mxu0 0
        %2161 = vmatpush1.bf16.msra.mxu0 0
        %2162 = vmatprep.subr.bf16.mxu0 0
        %2163 = vmatpush1.bf16.msra.mxu0 0
        %2164 = vmatprep.subr.bf16.mxu0 0
        %2165 = vmatpush1.bf16.msra.mxu0 0
        %2166 = vmatprep.subr.bf16.mxu0 0
        %2167 = vmatpush1.bf16.msra.mxu0 0
        %2168 = vmatprep.subr.bf16.mxu0 0
        %2169 = vmatpush1.bf16.msra.mxu0 0
        %2170 = vmatprep.subr.bf16.mxu0 0
        %2171 = vmatpush1.bf16.msra.mxu0 0
        %2172 = vmatprep.subr.bf16.mxu0 0
        %2173 = vmatpush1.bf16.msra.mxu0 0
        %2174 = vmatprep.subr.bf16.mxu0 0
        %2175 = vmatpush1.bf16.msra.mxu0 0
        %2176 = vmatprep.subr.bf16.mxu0 0
        %2177 = vmatpush1.bf16.msra.mxu0 0
        %2178 = vmatprep.subr.bf16.mxu0 0
        %2179 = vmatpush1.bf16.msra.mxu0 0
        %2180 = vmatprep.subr.bf16.mxu0 0
        %2181 = vmatpush1.bf16.msra.mxu0 0
        %2182 = vmatprep.subr.bf16.mxu0 0
        %2183 = vmatpush1.bf16.msra.mxu0 0
        %2184 = vmatprep.subr.bf16.mxu0 0
        %2185 = vmatpush1.bf16.msra.mxu0 0
        %2186 = vmatprep.subr.bf16.mxu0 0
        %2187 = vmatpush1.bf16.msra.mxu0 0
        %2188 = vmatprep.subr.bf16.mxu0 0
        %2189 = vmatpush1.bf16.msra.mxu0 0
        %2190 = vmatprep.mubr.bf16.mxu0 0
        %2191 = vmatmul.mubr.bf16.gmra.mrb[0].mxu0 %v2153
        %v2192 = vpop.f32.mrb[0].mxu0
        %v2193 = vadd.f32 0.0, %v2192
        %v2194 = vpop.f32.mrb[0].mxu0
        %v2195 = vpop.f32.mrb[0].mxu0
        %v2196 = vpop.f32.mrb[0].mxu0
        %2197 = vdwg.mxu0
        %2200 = vrot.lane.b32.xlu0 %v2145, 16
        %v2201 = vpop.permute.xlu0 %2200
        %2202 = vrot.lane.b32.xlu0 %v2193, 16
        %v2203 = vpop.permute.xlu0 %2202
        %vm2206 = vcmask 195712
        %2207 = vst.msk [vmem:[#allocation2] sm:$0xff] %vm2206, %v2201
        %2208 = vst.msk [vmem:[#allocation2 + $0x8] sm:$0xff] %vm2206, %v2203
        %2209 = vset.pattern.permute.xlu0 51
        %2210 = vperm.xlu0 %2209, %v847
        %v2211 = vpop.permute.xlu0 %2210
        %2213 = vset.pattern.permute.xlu0 51
        %2214 = vperm.xlu0 %2213, %v850
        %v2215 = vpop.permute.xlu0 %2214
        %v2217 = vmul.f32 %v856, %v2211
        %v2218 = vmul.f32 %v856, %v2215
        %2219 = vset.pattern.permute.xlu0 52
        %2220 = vperm.xlu0 %2219, %v847
        %v2221 = vpop.permute.xlu0 %2220
        %2223 = vset.pattern.permute.xlu0 52
        %2224 = vperm.xlu0 %2223, %v850
        %v2225 = vpop.permute.xlu0 %2224
        %v2227 = vmul.f32 %v859, %v2221
        %v2228 = vmul.f32 %v859, %v2225
        %v2229 = vadd.f32 %v2217, %v2227
        %v2230 = vadd.f32 %v2218, %v2228
        %2231 = vset.pattern.permute.xlu0 53
        %2232 = vperm.xlu0 %2231, %v847
        %v2233 = vpop.permute.xlu0 %2232
        %2235 = vset.pattern.permute.xlu0 53
        %2236 = vperm.xlu0 %2235, %v850
        %v2237 = vpop.permute.xlu0 %2236
        %v2239 = vmul.f32 %v862, %v2233
        %v2240 = vmul.f32 %v862, %v2237
        %v2241 = vadd.f32 %v2229, %v2239
        %v2242 = vadd.f32 %v2230, %v2240
        %2243 = vset.pattern.permute.xlu0 54
        %2244 = vperm.xlu0 %2243, %v847
        %v2245 = vpop.permute.xlu0 %2244
        %2247 = vset.pattern.permute.xlu0 54
        %2248 = vperm.xlu0 %2247, %v850
        %v2249 = vpop.permute.xlu0 %2248
        %v2251 = vmul.f32 %v865, %v2245
        %v2252 = vmul.f32 %v865, %v2249
        %v2253 = vadd.f32 %v2241, %v2251
        %v2254 = vadd.f32 %v2242, %v2252
        %2255 = vset.pattern.permute.xlu0 55
        %2256 = vperm.xlu0 %2255, %v847
        %v2257 = vpop.permute.xlu0 %2256
        %2259 = vset.pattern.permute.xlu0 55
        %2260 = vperm.xlu0 %2259, %v850
        %v2261 = vpop.permute.xlu0 %2260
        %v2263 = vmul.f32 %v868, %v2257
        %v2264 = vmul.f32 %v868, %v2261
        %v2265 = vadd.f32 %v2253, %v2263
        %v2266 = vadd.f32 %v2254, %v2264
        %2267 = vset.pattern.permute.xlu0 56
        %2268 = vperm.xlu0 %2267, %v847
        %v2269 = vpop.permute.xlu0 %2268
        %2271 = vset.pattern.permute.xlu0 56
        %2272 = vperm.xlu0 %2271, %v850
        %v2273 = vpop.permute.xlu0 %2272
        %v2275 = vmul.f32 %v871, %v2269
        %v2276 = vmul.f32 %v871, %v2273
        %v2277 = vadd.f32 %v2265, %v2275
        %v2278 = vadd.f32 %v2266, %v2276
        %2279 = vset.pattern.permute.xlu0 57
        %2280 = vperm.xlu0 %2279, %v847
        %v2281 = vpop.permute.xlu0 %2280
        %2283 = vset.pattern.permute.xlu0 57
        %2284 = vperm.xlu0 %2283, %v850
        %v2285 = vpop.permute.xlu0 %2284
        %v2287 = vmul.f32 %v874, %v2281
        %v2288 = vmul.f32 %v874, %v2285
        %v2289 = vadd.f32 %v2277, %v2287
        %v2290 = vadd.f32 %v2278, %v2288
        %2291 = vset.pattern.permute.xlu0 58
        %2292 = vperm.xlu0 %2291, %v847
        %v2293 = vpop.permute.xlu0 %2292
        %2295 = vset.pattern.permute.xlu0 58
        %2296 = vperm.xlu0 %2295, %v850
        %v2297 = vpop.permute.xlu0 %2296
        %v2299 = vmul.f32 %v877, %v2293
        %v2300 = vmul.f32 %v877, %v2297
        %v2301 = vadd.f32 %v2289, %v2299
        %v2302 = vadd.f32 %v2290, %v2300
        %2303 = vset.pattern.permute.xlu0 59
        %2304 = vperm.xlu0 %2303, %v847
        %v2305 = vpop.permute.xlu0 %2304
        %2307 = vset.pattern.permute.xlu0 59
        %2308 = vperm.xlu0 %2307, %v850
        %v2309 = vpop.permute.xlu0 %2308
        %v2311 = vmul.f32 %v880, %v2305
        %v2312 = vmul.f32 %v880, %v2309
        %v2313 = vadd.f32 %v2301, %v2311
        %v2314 = vadd.f32 %v2302, %v2312
        %2315 = vset.pattern.permute.xlu0 60
        %2316 = vperm.xlu0 %2315, %v847
        %v2317 = vpop.permute.xlu0 %2316
        %2319 = vset.pattern.permute.xlu0 60
        %2320 = vperm.xlu0 %2319, %v850
        %v2321 = vpop.permute.xlu0 %2320
        %v2323 = vmul.f32 %v883, %v2317
        %v2324 = vmul.f32 %v883, %v2321
        %v2325 = vadd.f32 %v2313, %v2323
        %v2326 = vadd.f32 %v2314, %v2324
        %2327 = vset.pattern.permute.xlu0 61
        %2328 = vperm.xlu0 %2327, %v847
        %v2329 = vpop.permute.xlu0 %2328
        %2331 = vset.pattern.permute.xlu0 61
        %2332 = vperm.xlu0 %2331, %v850
        %v2333 = vpop.permute.xlu0 %2332
        %v2335 = vmul.f32 %v886, %v2329
        %v2336 = vmul.f32 %v886, %v2333
        %v2337 = vadd.f32 %v2325, %v2335
        %v2338 = vadd.f32 %v2326, %v2336
        %2339 = vset.pattern.permute.xlu0 62
        %2340 = vperm.xlu0 %2339, %v847
        %v2341 = vpop.permute.xlu0 %2340
        %2343 = vset.pattern.permute.xlu0 62
        %2344 = vperm.xlu0 %2343, %v850
        %v2345 = vpop.permute.xlu0 %2344
        %v2347 = vmul.f32 %v889, %v2341
        %v2348 = vmul.f32 %v889, %v2345
        %v2349 = vadd.f32 %v2337, %v2347
        %v2350 = vadd.f32 %v2338, %v2348
        %2351 = vset.pattern.permute.xlu0 63
        %2352 = vperm.xlu0 %2351, %v847
        %v2353 = vpop.permute.xlu0 %2352
        %2355 = vset.pattern.permute.xlu0 63
        %2356 = vperm.xlu0 %2355, %v850
        %v2357 = vpop.permute.xlu0 %2356
        %v2359 = vmul.f32 %v892, %v2353
        %v2360 = vmul.f32 %v892, %v2357
        %v2361 = vadd.f32 %v2349, %v2359
        %v2362 = vadd.f32 %v2350, %v2360
        %2363 = vset.pattern.permute.xlu0 64
        %2364 = vperm.xlu0 %2363, %v847
        %v2365 = vpop.permute.xlu0 %2364
        %2367 = vset.pattern.permute.xlu0 64
        %2368 = vperm.xlu0 %2367, %v850
        %v2369 = vpop.permute.xlu0 %2368
        %v2371 = vmul.f32 %v895, %v2365
        %v2372 = vmul.f32 %v895, %v2369
        %v2373 = vadd.f32 %v2361, %v2371
        %v2374 = vadd.f32 %v2362, %v2372
        %2375 = vset.pattern.permute.xlu0 65
        %2376 = vperm.xlu0 %2375, %v847
        %v2377 = vpop.permute.xlu0 %2376
        %2379 = vset.pattern.permute.xlu0 65
        %2380 = vperm.xlu0 %2379, %v850
        %v2381 = vpop.permute.xlu0 %2380
        %v2383 = vmul.f32 %v898, %v2377
        %v2384 = vmul.f32 %v898, %v2381
        %v2385 = vadd.f32 %v2373, %v2383
        %v2386 = vadd.f32 %v2374, %v2384
        %2387 = vset.pattern.permute.xlu0 66
        %2388 = vperm.xlu0 %2387, %v847
        %v2389 = vpop.permute.xlu0 %2388
        %2391 = vset.pattern.permute.xlu0 66
        %2392 = vperm.xlu0 %2391, %v850
        %v2393 = vpop.permute.xlu0 %2392
        %v2395 = vmul.f32 %v901, %v2389
        %v2396 = vmul.f32 %v901, %v2393
        %v2397 = vadd.f32 %v2385, %v2395
        %v2398 = vadd.f32 %v2386, %v2396
        %2399 = vset.pattern.permute.xlu0 67
        %2400 = vperm.xlu0 %2399, %v847
        %v2401 = vpop.permute.xlu0 %2400
        %2403 = vset.pattern.permute.xlu0 67
        %2404 = vperm.xlu0 %2403, %v850
        %v2405 = vpop.permute.xlu0 %2404
        %v2407 = vmul.f32 %v904, %v2401
        %v2408 = vmul.f32 %v904, %v2405
        %v2409 = vadd.f32 %v2397, %v2407
        %v2410 = vadd.f32 %v2398, %v2408
        %2411 = vrot.lane.b32.xlu0 %v905, 104
        %v2412 = vpop.permute.xlu0 %2411
        %2413 = vrot.lane.b32.xlu0 %v789, 104
        %v2414 = vpop.permute.xlu0 %2413
        %v2416 = vsel %vm1111, %v2412, 0
        %v2419 = vsel %vm1111, %v2414, 0
        %2421 = vmatprep.subr.bf16.mxu0 0
        %2422 = vmatpush1.bf16.xpose.msra.mxu0 %v2419
        %2423 = vmatprep.subr.bf16.mxu0 0
        %2424 = vmatpush1.bf16.xpose.msra.mxu0 0
        %2425 = vmatprep.subr.bf16.mxu0 0
        %2426 = vmatpush1.bf16.xpose.msra.mxu0 0
        %2427 = vmatprep.subr.bf16.mxu0 0
        %2428 = vmatpush1.bf16.xpose.msra.mxu0 0
        %2429 = vmatprep.subr.bf16.mxu0 0
        %2430 = vmatpush1.bf16.xpose.msra.mxu0 0
        %2431 = vmatprep.subr.bf16.mxu0 0
        %2432 = vmatpush1.bf16.xpose.msra.mxu0 0
        %2433 = vmatprep.subr.bf16.mxu0 0
        %2434 = vmatpush1.bf16.xpose.msra.mxu0 0
        %2435 = vmatprep.subr.bf16.mxu0 0
        %2436 = vmatpush1.bf16.xpose.msra.mxu0 0
        %2437 = vmatprep.subr.bf16.mxu0 0
        %2438 = vmatpush1.bf16.xpose.msra.mxu0 0
        %2439 = vmatprep.subr.bf16.mxu0 0
        %2440 = vmatpush1.bf16.xpose.msra.mxu0 0
        %2441 = vmatprep.subr.bf16.mxu0 0
        %2442 = vmatpush1.bf16.xpose.msra.mxu0 0
        %2443 = vmatprep.subr.bf16.mxu0 0
        %2444 = vmatpush1.bf16.xpose.msra.mxu0 0
        %2445 = vmatprep.subr.bf16.mxu0 0
        %2446 = vmatpush1.bf16.xpose.msra.mxu0 0
        %2447 = vmatprep.subr.bf16.mxu0 0
        %2448 = vmatpush1.bf16.xpose.msra.mxu0 0
        %2449 = vmatprep.subr.bf16.mxu0 0
        %2450 = vmatpush1.bf16.xpose.msra.mxu0 0
        %2451 = vmatprep.subr.bf16.mxu0 0
        %2452 = vmatpush1.bf16.xpose.msra.mxu0 0
        %2453 = vmatprep.mubr.bf16.mxu0 0
        %2454 = vmatmul.mubr.bf16.gmra.mrb[0].mxu0 %v2416
        %v2455 = vpop.f32.mrb[0].mxu0
        %v2456 = vadd.f32 %v2409, %v2455
        %v2457 = vpop.f32.mrb[0].mxu0
        %v2458 = vpop.f32.mrb[0].mxu0
        %v2459 = vpop.f32.mrb[0].mxu0
        %2460 = vdwg.mxu0
        %2461 = vrot.lane.b32.xlu0 %v906, 104
        %v2462 = vpop.permute.xlu0 %2461
        %2463 = vrot.lane.b32.xlu0 %v790, 104
        %v2464 = vpop.permute.xlu0 %2463
        %v2466 = vsel %vm1111, %v2462, 0
        %v2469 = vsel %vm1111, %v2464, 0
        %2471 = vmatprep.subr.bf16.mxu0 0
        %2472 = vmatpush1.bf16.xpose.msra.mxu0 %v2469
        %2473 = vmatprep.subr.bf16.mxu0 0
        %2474 = vmatpush1.bf16.xpose.msra.mxu0 0
        %2475 = vmatprep.subr.bf16.mxu0 0
        %2476 = vmatpush1.bf16.xpose.msra.mxu0 0
        %2477 = vmatprep.subr.bf16.mxu0 0
        %2478 = vmatpush1.bf16.xpose.msra.mxu0 0
        %2479 = vmatprep.subr.bf16.mxu0 0
        %2480 = vmatpush1.bf16.xpose.msra.mxu0 0
        %2481 = vmatprep.subr.bf16.mxu0 0
        %2482 = vmatpush1.bf16.xpose.msra.mxu0 0
        %2483 = vmatprep.subr.bf16.mxu0 0
        %2484 = vmatpush1.bf16.xpose.msra.mxu0 0
        %2485 = vmatprep.subr.bf16.mxu0 0
        %2486 = vmatpush1.bf16.xpose.msra.mxu0 0
        %2487 = vmatprep.subr.bf16.mxu0 0
        %2488 = vmatpush1.bf16.xpose.msra.mxu0 0
        %2489 = vmatprep.subr.bf16.mxu0 0
        %2490 = vmatpush1.bf16.xpose.msra.mxu0 0
        %2491 = vmatprep.subr.bf16.mxu0 0
        %2492 = vmatpush1.bf16.xpose.msra.mxu0 0
        %2493 = vmatprep.subr.bf16.mxu0 0
        %2494 = vmatpush1.bf16.xpose.msra.mxu0 0
        %2495 = vmatprep.subr.bf16.mxu0 0
        %2496 = vmatpush1.bf16.xpose.msra.mxu0 0
        %2497 = vmatprep.subr.bf16.mxu0 0
        %2498 = vmatpush1.bf16.xpose.msra.mxu0 0
        %2499 = vmatprep.subr.bf16.mxu0 0
        %2500 = vmatpush1.bf16.xpose.msra.mxu0 0
        %2501 = vmatprep.subr.bf16.mxu0 0
        %2502 = vmatpush1.bf16.xpose.msra.mxu0 0
        %2503 = vmatprep.mubr.bf16.mxu0 0
        %2504 = vmatmul.mubr.bf16.gmra.mrb[0].mxu0 %v2466
        %v2505 = vpop.f32.mrb[0].mxu0
        %v2506 = vadd.f32 %v2410, %v2505
        %v2507 = vpop.f32.mrb[0].mxu0
        %v2508 = vpop.f32.mrb[0].mxu0
        %v2509 = vpop.f32.mrb[0].mxu0
        %2510 = vdwg.mxu0
        %v2511 = vmul.f32 %v2456, 0.35355338
        %v2512 = vmul.f32 %v2506, 0.35355338
        %v2513 = vadd.f32 %v2511, %v791
        %v2514 = vadd.f32 %v2512, %v791
        %v2515 = vsel %vm1111, %v2513, -inf
        %2516 = vmax.xlane.f32.xlu0 %v2515
        %v2517 = vpop.xlane.xlu0 %2516
        %v2518 = vsel %vm1111, %v2514, -inf
        %2519 = vmax.xlane.f32.xlu0 %v2518
        %v2520 = vpop.xlane.xlu0 %2519
        %v2521 = vsub.f32 %v2513, %v2517
        %v2522 = vsub.f32 %v2514, %v2520
        %v2523 = vmul.f32 %v2521, 1.442695
        %v2524 = vpow.pop %v2523
        %v2525 = vmul.f32 %v2522, 1.442695
        %v2526 = vpow.pop %v2525
        %v2527 = vsel %vm1111, %v2524, 0.0
        %2528 = vadd.xlane.f32.xlu0 %v2527
        %v2529 = vpop.xlane.xlu0 %2528
        %v2530 = vsel %vm1111, %v2526, 0.0
        %2531 = vadd.xlane.f32.xlu0 %v2530
        %v2532 = vpop.xlane.xlu0 %2531
        %v2533 = vrcp.pop %v2529
        %v2534 = vrcp.pop %v2532
        %v2535 = vmul.f32 %v2524, %v2533
        %v2536 = vmul.f32 %v2526, %v2534
        %v2537 = vpack.c.bf16 %v2535, %v2535
        %v2538 = vpack.c.bf16 %v2536, %v2536
        %2539 = vrot.lane.b32.xlu0 %v789, 72
        %v2540 = vpop.permute.xlu0 %2539
        %v2542 = vsel %vm1111, %v2537, 0
        %v2545 = vsel %vm1238, %v2540, 0
        %2547 = vmatprep.subr.bf16.mxu0 0
        %2548 = vmatpush1.bf16.msra.mxu0 %v2545
        %2549 = vmatprep.subr.bf16.mxu0 0
        %2550 = vmatpush1.bf16.msra.mxu0 0
        %2551 = vmatprep.subr.bf16.mxu0 0
        %2552 = vmatpush1.bf16.msra.mxu0 0
        %2553 = vmatprep.subr.bf16.mxu0 0
        %2554 = vmatpush1.bf16.msra.mxu0 0
        %2555 = vmatprep.subr.bf16.mxu0 0
        %2556 = vmatpush1.bf16.msra.mxu0 0
        %2557 = vmatprep.subr.bf16.mxu0 0
        %2558 = vmatpush1.bf16.msra.mxu0 0
        %2559 = vmatprep.subr.bf16.mxu0 0
        %2560 = vmatpush1.bf16.msra.mxu0 0
        %2561 = vmatprep.subr.bf16.mxu0 0
        %2562 = vmatpush1.bf16.msra.mxu0 0
        %2563 = vmatprep.subr.bf16.mxu0 0
        %2564 = vmatpush1.bf16.msra.mxu0 0
        %2565 = vmatprep.subr.bf16.mxu0 0
        %2566 = vmatpush1.bf16.msra.mxu0 0
        %2567 = vmatprep.subr.bf16.mxu0 0
        %2568 = vmatpush1.bf16.msra.mxu0 0
        %2569 = vmatprep.subr.bf16.mxu0 0
        %2570 = vmatpush1.bf16.msra.mxu0 0
        %2571 = vmatprep.subr.bf16.mxu0 0
        %2572 = vmatpush1.bf16.msra.mxu0 0
        %2573 = vmatprep.subr.bf16.mxu0 0
        %2574 = vmatpush1.bf16.msra.mxu0 0
        %2575 = vmatprep.subr.bf16.mxu0 0
        %2576 = vmatpush1.bf16.msra.mxu0 0
        %2577 = vmatprep.subr.bf16.mxu0 0
        %2578 = vmatpush1.bf16.msra.mxu0 0
        %2579 = vmatprep.mubr.bf16.mxu0 0
        %2580 = vmatmul.mubr.bf16.gmra.mrb[0].mxu0 %v2542
        %v2581 = vpop.f32.mrb[0].mxu0
        %v2582 = vadd.f32 0.0, %v2581
        %v2583 = vpop.f32.mrb[0].mxu0
        %v2584 = vpop.f32.mrb[0].mxu0
        %v2585 = vpop.f32.mrb[0].mxu0
        %2586 = vdwg.mxu0
        %2587 = vrot.lane.b32.xlu0 %v790, 72
        %v2588 = vpop.permute.xlu0 %2587
        %v2590 = vsel %vm1111, %v2538, 0
        %v2593 = vsel %vm1238, %v2588, 0
        %2595 = vmatprep.subr.bf16.mxu0 0
        %2596 = vmatpush1.bf16.msra.mxu0 %v2593
        %2597 = vmatprep.subr.bf16.mxu0 0
        %2598 = vmatpush1.bf16.msra.mxu0 0
        %2599 = vmatprep.subr.bf16.mxu0 0
        %2600 = vmatpush1.bf16.msra.mxu0 0
        %2601 = vmatprep.subr.bf16.mxu0 0
        %2602 = vmatpush1.bf16.msra.mxu0 0
        %2603 = vmatprep.subr.bf16.mxu0 0
        %2604 = vmatpush1.bf16.msra.mxu0 0
        %2605 = vmatprep.subr.bf16.mxu0 0
        %2606 = vmatpush1.bf16.msra.mxu0 0
        %2607 = vmatprep.subr.bf16.mxu0 0
        %2608 = vmatpush1.bf16.msra.mxu0 0
        %2609 = vmatprep.subr.bf16.mxu0 0
        %2610 = vmatpush1.bf16.msra.mxu0 0
        %2611 = vmatprep.subr.bf16.mxu0 0
        %2612 = vmatpush1.bf16.msra.mxu0 0
        %2613 = vmatprep.subr.bf16.mxu0 0
        %2614 = vmatpush1.bf16.msra.mxu0 0
        %2615 = vmatprep.subr.bf16.mxu0 0
        %2616 = vmatpush1.bf16.msra.mxu0 0
        %2617 = vmatprep.subr.bf16.mxu0 0
        %2618 = vmatpush1.bf16.msra.mxu0 0
        %2619 = vmatprep.subr.bf16.mxu0 0
        %2620 = vmatpush1.bf16.msra.mxu0 0
        %2621 = vmatprep.subr.bf16.mxu0 0
        %2622 = vmatpush1.bf16.msra.mxu0 0
        %2623 = vmatprep.subr.bf16.mxu0 0
        %2624 = vmatpush1.bf16.msra.mxu0 0
        %2625 = vmatprep.subr.bf16.mxu0 0
        %2626 = vmatpush1.bf16.msra.mxu0 0
        %2627 = vmatprep.mubr.bf16.mxu0 0
        %2628 = vmatmul.mubr.bf16.gmra.mrb[0].mxu0 %v2590
        %v2629 = vpop.f32.mrb[0].mxu0
        %v2630 = vadd.f32 0.0, %v2629
        %v2631 = vpop.f32.mrb[0].mxu0
        %v2632 = vpop.f32.mrb[0].mxu0
        %v2633 = vpop.f32.mrb[0].mxu0
        %2634 = vdwg.mxu0
        %2637 = vrot.lane.b32.xlu0 %v2582, 24
        %v2638 = vpop.permute.xlu0 %2637
        %2639 = vrot.lane.b32.xlu0 %v2630, 24
        %v2640 = vpop.permute.xlu0 %2639
        %vm2643 = vcmask 261312
        %2644 = vst.msk [vmem:[#allocation2] sm:$0xff] %vm2643, %v2638
        %2645 = vst.msk [vmem:[#allocation2 + $0x8] sm:$0xff] %vm2643, %v2640
        %v2646 = vld [vmem:[#allocation2] sm:$0xff]
        %v2647 = vld [vmem:[#allocation2 + $0x8] sm:$0xff]
        %v2648 = vpack.c.bf16 %v2647, %v2646
        %v2649 = vld [vmem:[#allocation18] sm:$0xf]
        %v2650 = vld [vmem:[#allocation18 + $0x4] sm:$0xf]
        %v2651 = vld [vmem:[#allocation18 + $0x8] sm:$0xf]
        %v2652 = vld [vmem:[#allocation18 + $0xc] sm:$0xf]
        %v2653 = vld [vmem:[#allocation20] sm:$0x1]
        %v2655 = vlaneseq
        %v2656 = vshrl.u32 %v2655, 7
        %v2657 = vsub.s32 0, %v2656
        %v2658 = vrot.slane %v2653, %v2657
        %v2664 = vunpack.c.l.b16 %v2649
        %v2665 = vunpack.c.l.b16 %v2650
        %v2666 = vunpack.c.l.b16 %v2651
        %v2667 = vunpack.c.l.b16 %v2652
        %v2668 = vpack.c.b16 %v2665, %v2664
        %v2669 = vpack.c.b16 %v2667, %v2666
        %v2673 = vsel %vm677, %v2648, 0
        %2675 = vmatprep.subr.bf16.mxu0 0
        %2676 = vmatpush1.bf16.msra.mxu0 %v2668
        %2677 = vmatprep.subr.bf16.mxu0 0
        %2678 = vmatpush1.bf16.msra.mxu0 %v2669
        %2679 = vmatprep.subr.bf16.mxu0 0
        %2680 = vmatpush1.bf16.msra.mxu0 0
        %2681 = vmatprep.subr.bf16.mxu0 0
        %2682 = vmatpush1.bf16.msra.mxu0 0
        %2683 = vmatprep.subr.bf16.mxu0 0
        %2684 = vmatpush1.bf16.msra.mxu0 0
        %2685 = vmatprep.subr.bf16.mxu0 0
        %2686 = vmatpush1.bf16.msra.mxu0 0
        %2687 = vmatprep.subr.bf16.mxu0 0
        %2688 = vmatpush1.bf16.msra.mxu0 0
        %2689 = vmatprep.subr.bf16.mxu0 0
        %2690 = vmatpush1.bf16.msra.mxu0 0
        %2691 = vmatprep.subr.bf16.mxu0 0
        %2692 = vmatpush1.bf16.msra.mxu0 0
        %2693 = vmatprep.subr.bf16.mxu0 0
        %2694 = vmatpush1.bf16.msra.mxu0 0
        %2695 = vmatprep.subr.bf16.mxu0 0
        %2696 = vmatpush1.bf16.msra.mxu0 0
        %2697 = vmatprep.subr.bf16.mxu0 0
        %2698 = vmatpush1.bf16.msra.mxu0 0
        %2699 = vmatprep.subr.bf16.mxu0 0
        %2700 = vmatpush1.bf16.msra.mxu0 0
        %2701 = vmatprep.subr.bf16.mxu0 0
        %2702 = vmatpush1.bf16.msra.mxu0 0
        %2703 = vmatprep.subr.bf16.mxu0 0
        %2704 = vmatpush1.bf16.msra.mxu0 0
        %2705 = vmatprep.subr.bf16.mxu0 0
        %2706 = vmatpush1.bf16.msra.mxu0 0
        %2707 = vmatprep.mubr.bf16.mxu0 0
        %2708 = vmatmul.mubr.bf16.gmra.mrb[0].mxu0 %v2673
        %v2709 = vpop.f32.mrb[0].mxu0
        %v2710 = vadd.f32 %v2658, %v2709
        %v2711 = vpop.f32.mrb[0].mxu0
        %v2712 = vpop.f32.mrb[0].mxu0
        %v2713 = vadd.f32 %v2658, %v2712
        %v2714 = vpop.f32.mrb[0].mxu0
        %2715 = vdwg.mxu0
        %v2716 = vadd.f32 %v2710, %v648
        %v2717 = vadd.f32 %v2713, %v649
        %v2718 = vsel %vm677, %v2716, 0.0
        %2719 = vadd.xlane.f32.xlu0 %v2718
        %v2720 = vpop.xlane.xlu0 %2719
        %v2721 = vsel %vm677, %v2717, 0.0
        %2722 = vadd.xlane.f32.xlu0 %v2721
        %v2723 = vpop.xlane.xlu0 %2722
        %v2724 = vrcp.pop 32.0
        %v2725 = vmul.f32 %v2720, %v2724
        %v2726 = vmul.f32 %v2723, %v2724
        %v2727 = vsub.f32 %v2716, %v2725
        %v2728 = vsub.f32 %v2717, %v2726
        %v2729 = vmul.f32 %v2727, %v2727
        %v2730 = vmul.f32 %v2728, %v2728
        %v2731 = vsel %vm677, %v2729, 0.0
        %2732 = vadd.xlane.f32.xlu0 %v2731
        %v2733 = vpop.xlane.xlu0 %2732
        %v2734 = vsel %vm677, %v2730, 0.0
        %2735 = vadd.xlane.f32.xlu0 %v2734
        %v2736 = vpop.xlane.xlu0 %2735
        %v2737 = vmul.f32 %v2733, %v2724
        %v2738 = vmul.f32 %v2736, %v2724
        %v2739 = vadd.f32 %v2737, 1e-05
        %v2740 = vadd.f32 %v2738, 1e-05
        %v2741 = vrsqrt.pop %v2739
        %v2742 = vrsqrt.pop %v2740
        %v2743 = vmul.f32 %v2727, %v2741
        %v2744 = vmul.f32 %v2728, %v2742
        %v2745 = vld [vmem:[#allocation21] sm:$0x1]
        %v2747 = vlaneseq
        %v2748 = vshrl.u32 %v2747, 7
        %v2749 = vsub.s32 0, %v2748
        %v2750 = vrot.slane %v2745, %v2749
        %v2752 = vmul.f32 %v2743, %v2750
        %v2753 = vmul.f32 %v2744, %v2750
        %v2754 = vld [vmem:[#allocation23] sm:$0x1]
        %v2756 = vlaneseq
        %v2757 = vshrl.u32 %v2756, 7
        %v2758 = vsub.s32 0, %v2757
        %v2759 = vrot.slane %v2754, %v2758
        %v2761 = vadd.f32 %v2752, %v2759
        %v2762 = vadd.f32 %v2753, %v2759
        %2763 = vst.msk [vmem:[%s643] sm:$0xff] %vm677, %v2761
        %2764 = vst.msk [vmem:[%s643 + $0x8] sm:$0xff] %vm677, %v2762
        %s2765 = sand.u32 %s329, 1
        %s2766 = scalar_lea.sflag [#allocation5], %s2765
        %s2767 = sand.u32 %s329, 1
        %s2768 = smul.addr %s2767, 16
        %s2769 = scalar_lea.vmem [#allocation24], %s2768
        // Predicated region
        $region125: #{tpu_custom_call.1} parent=71 // pred_check
          %p2770 = pneg %p339
        $region126: #{tpu_custom_call.1} parent=71 // pred_check_branch
          %2772 = sbr.rel (%p2770) target = $region128
        $region127: #{tpu_custom_call.1} parent=71 // pred_region
          %s2773 = smul.u32 2, %s38
          %s2775 = ssub.s32 256, 256
          %2776 = vsyncadd %s2766, %s2775
          %s2777 = smul.addr %s2773, 128
          %s2778 = scalar_lea.hbm %s13, %s2777
          %s2779 = sshll.u32 %s2769, 4
          %s2780 = int_to_ptr.vmem [resolvable:$true] %s2779
          %2785 = dma.vmem_to_hbm [thread:$0]  %s2780, 256, %s2778, %s2766, 128, 128, 8
        $region128: #{tpu_custom_call.1} parent=71 // pred_fallthru
          _
      $region72: #{tpu_custom_call.1} parent=5 // pred_fallthru
        _
      %p2786 = scmp.le.s32.totalorder 2, %s33
      // Predicated region
      $region129: #{tpu_custom_call.1} parent=5 // pred_check
        %p2787 = pneg %p2786
      $region130: #{tpu_custom_call.1} parent=5 // pred_check_branch
        %2789 = sbr.rel (%p2787) target = $region132
      $region131: #{tpu_custom_call.1} parent=5 // pred_region
        %s2790 = ssub.s32 %s33, 2
        // Predicated region
        $region133: #{tpu_custom_call.1} parent=131 // pred_check
          %p2791 = pneg %p345
        $region134: #{tpu_custom_call.1} parent=131 // pred_check_branch
          %2793 = sbr.rel (%p2791) target = $region136
        $region135: #{tpu_custom_call.1} parent=131 // pred_region
          %s2794 = sand.u32 %s330, 1
          %s2795 = scalar_lea.sflag [#allocation5], %s2794
          %s2796 = sand.u32 %s330, 1
          %s2797 = smul.addr %s2796, 16
          %s2798 = scalar_lea.vmem [#allocation24], %s2797
          %2799 = dma.done %s2795, 256
        $region136: #{tpu_custom_call.1} parent=131 // pred_fallthru
          _
      $region132: #{tpu_custom_call.1} parent=5 // pred_fallthru
        _
    $region6: #{tpu_custom_call.1} parent=1 // loop_footer
      %s37 = sadd.s32 1, %s33
    $region7: #{tpu_custom_call.1} parent=1 // loop_footer_branch
      %32 = sbr.rel target = $region3
    $region8: #{tpu_custom_call.1} parent=1 // loop_exit
      _
    %2800 = vsyncpa [#allocation4], 1
    %s2801 = scalar_lea.sflag [#allocation4], 1
    %2802 = vsyncpa %s2801, 1
    %2803 = vsyncpa [#allocation7], 1
    %s2804 = scalar_lea.sflag [#allocation7], 1
    %2805 = vsyncpa %s2804, 1
    %2806 = vsyncpa [#allocation10], 1
    %2807 = vsyncpa [#allocation13], 1
    %2808 = vsyncpa [#allocation16], 1
    %2809 = vsyncpa [#allocation19], 1
    %2810 = vsyncpa [#allocation22], 1
    %2811 = vsyncpa [#allocation5], 1
    %s2812 = scalar_lea.sflag [#allocation5], 1
    %2813 = vsyncpa %s2812, 1

</llo_original>
